<compile_context>
chip_gen: v5e
topology: v5e:2x2
jax: 0.10.0
libtpu: 0.0.40
codegen_flags: <defaults>
</compile_context>

<pallas_src>
import jax
import jax.numpy as jnp
from jax.experimental import pallas as pl
from jax.experimental.pallas import tpu as pltpu

_B_BLK = 8     # samples per grid step
_TAIL_X = 16   # zero halo rows per input block       (>= kernel_size - 1)
_TAIL_P = 8    # zero halo rows per pooled scratch    (>= kernel_size - 1)


# ---------------------------------------------------------------------------
# Host-side packing: block-Toeplitz conv weights and lane-expanded biases.
# ---------------------------------------------------------------------------
def _conv_toeplitz(w_hwio, w_in, wp):
    """Build T of shape (K*W_in*Cin, 2*WP*Cout) such that, for activations laid
    out as rows (=h) x lanes (=w*Cin + c),
        conv_row[h] = sum_kh in_row[h + kh] @ T[kh*W_in*Cin : (kh+1)*W_in*Cin]
    with output lanes ordered (j = w_out & 1, wp = w_out // 2, c) so the 2x2
    width-pool is a max of two contiguous lane slices."""
    k, _, cin, cout = w_hwio.shape
    wu = 2 * wp
    grp = jnp.arange(wu)
    w_out = 2 * (grp % wp) + (grp // wp)                        # (Wu,)
    kw = jnp.arange(w_in)[:, None] - w_out[None, :]             # (W_in, Wu)
    mask = (kw >= 0) & (kw < k)
    blocks = jnp.take(w_hwio, jnp.clip(kw, 0, k - 1), axis=1)   # (K, W_in, Wu, Cin, Cout)
    blocks = jnp.where(mask[None, :, :, None, None], blocks, 0.0)
    blocks = jnp.transpose(blocks, (0, 1, 3, 2, 4))             # (K, W_in, Cin, Wu, Cout)
    return blocks.reshape(k * w_in * cin, wu * cout)


def _conv_geometry(h, w, c, conv_params, batch_block):
    layers = []
    rows_in, h_valid, w_in, cin = h, h, w, c
    for wk, _ in conv_params:
        k, k2, wcin, cout = wk.shape
        assert k == k2 and wcin == cin, (wk.shape, cin)
        assert rows_in % 2 == 0, "per-sample row count must stay even"
        assert k - 1 <= _TAIL_X and k - 1 <= _TAIL_P
        hp, wp = (h_valid - k + 1) // 2, (w_in - k + 1) // 2
        assert hp >= 1 and wp >= 1
        layers.append(dict(K=k, rows_in=rows_in, w_in=w_in, cin=cin, cout=cout,
                           hp=hp, wp=wp, m=batch_block * rows_in,
                           lanes_in=w_in * cin, lanes_out=2 * wp * cout,
                           lanes_pool=wp * cout))
        rows_in, h_valid, w_in, cin = rows_in // 2, hp, wp, cout
    return layers


# ---------------------------------------------------------------------------
# Fused kernel: all conv/pool/fc/softmax for one block of _B_BLK samples.
# ---------------------------------------------------------------------------
def _make_kernel(layers, n_fc, batch_block):
    n_conv = len(layers)

    def kernel(*args):
        x_ref = args[0]
        conv_wb = [(args[1 + 2 * i], args[2 + 2 * i]) for i in range(n_conv)]
        off = 1 + 2 * n_conv
        fc_wb = [(args[off + 2 * i], args[off + 1 + 2 * i]) for i in range(n_fc)]
        o_ref = args[off + 2 * n_fc]
        scr = args[off + 2 * n_fc + 1:]

        in_ref = x_ref
        for i, g in enumerate(layers):
            t_ref, b_ref = conv_wb[i]
            wsc, psc = scr[2 * i], scr[2 * i + 1]
            m, lin, lpool = g["m"], g["lanes_in"], g["lanes_pool"]

            # Conv: K row-shifted bf16 matmuls against the block-Toeplitz
            # weight (one MXU push per tap for the whole 8-sample block).
            acc = None
            for kh in range(g["K"]):
                xs = in_ref[pl.ds(kh, m), :].astype(jnp.bfloat16)      # (m, lanes_in)
                ts = t_ref[pl.ds(kh * lin, lin), :]                    # (lanes_in, lanes_out) bf16
                d = jnp.dot(xs, ts, preferred_element_type=jnp.float32)
                acc = d if acc is None else acc + d
            y = jnp.maximum(acc + b_ref[...], 0.0)                     # bias + relu, f32

            # 2x2 max-pool.  Width: output lanes are ordered (w&1, w//2, c) so
            # it is a max of two contiguous lane slices.  Height: two static
            # stride-2 sublane reads over the whole block.
            wsc[...] = jnp.maximum(y[:, :lpool], y[:, lpool:])
            half = m // 2
            psc[pl.ds(0, half), :] = jnp.maximum(
                wsc[pl.ds(0, half, stride=2), :],
                wsc[pl.ds(1, half, stride=2), :])
            tail = psc.shape[0] - half
            psc[pl.ds(half, tail), :] = jnp.zeros((tail, lpool), jnp.float32)
            in_ref = psc

        # FC head: one (8, WP*Cout) @ (WP*Cout, F1) matmul per valid pooled row
        # (all 8 sublanes are real samples), then remaining fcs + softmax.
        last = layers[-1]
        rows_per_sample = last["rows_in"] // 2
        lpool = last["lanes_pool"]
        w1_ref, b1_ref = fc_wb[0]
        z = None
        for hp in range(last["hp"]):
            p = in_ref[pl.ds(hp, batch_block, stride=rows_per_sample), :]
            wt = w1_ref[pl.ds(hp * lpool, lpool), :]
            d = jnp.dot(p.astype(jnp.bfloat16), wt,
                        preferred_element_type=jnp.float32)
            z = d if z is None else z + d
        z = z + b1_ref[...]
        for w_ref, b_ref in fc_wb[1:]:
            z = jnp.maximum(z, 0.0)
            z = jnp.dot(z.astype(jnp.bfloat16), w_ref[...],
                        preferred_element_type=jnp.float32) + b_ref[...]
        z = z - jnp.max(z, axis=-1, keepdims=True)
        e = jnp.exp(z)
        o_ref[...] = e * pl.reciprocal(jnp.sum(e, axis=-1, keepdims=True))

    return kernel


# ---------------------------------------------------------------------------
# Host-side wrapper: single pallas_call for the whole forward pass.
# ---------------------------------------------------------------------------
def net_forward(x_nchw, params):
    n, c, h, w = x_nchw.shape
    assert params["conv"] and params["fc"]
    bb = _B_BLK
    layers = _conv_geometry(h, w, c, params["conv"], bb)
    last = layers[-1]
    assert params["fc"][0][0].shape[0] == last["hp"] * last["wp"] * last["cout"]
    labels = params["fc"][-1][0].shape[1]

    n_blocks = -(-n // bb)
    n_pad = n_blocks * bb
    rb = bb * h + _TAIL_X

    # NCHW -> per-block row slabs: row = sample_in_block*h + y, lanes = w*c + ch.
    # Batch zero-padded to a block multiple; each block carries a zero halo so
    # the shifted conv reads stay in bounds.
    x_rows = jnp.transpose(x_nchw, (0, 2, 3, 1)).reshape(n, h, w * c)
    x_rows = jnp.pad(x_rows, ((0, n_pad - n), (0, 0), (0, 0)))
    x_rows = x_rows.reshape(n_blocks, bb * h, w * c)
    x_rows = jnp.pad(x_rows, ((0, 0), (0, _TAIL_X), (0, 0)))
    x2d = x_rows.reshape(n_blocks * rb, w * c).astype(jnp.float32)

    inputs, in_specs = [x2d], [pl.BlockSpec((rb, w * c), lambda i: (i, 0))]
    for g, (wk, bk) in zip(layers, params["conv"]):
        t = _conv_toeplitz(wk, g["w_in"], g["wp"]).astype(jnp.bfloat16)
        bl = jnp.tile(bk.astype(jnp.float32), 2 * g["wp"])[None, :]
        inputs += [t, bl]
        in_specs += [pl.BlockSpec(t.shape, lambda i: (0, 0)),
                     pl.BlockSpec(bl.shape, lambda i: (0, 0))]
    for wk, bk in params["fc"]:
        wb = wk.astype(jnp.bfloat16)
        bl = bk.astype(jnp.float32)[None, :]
        inputs += [wb, bl]
        in_specs += [pl.BlockSpec(wb.shape, lambda i: (0, 0)),
                     pl.BlockSpec(bl.shape, lambda i: (0, 0))]

    scratch_shapes = []
    for g in layers:
        scratch_shapes.append(pltpu.VMEM((g["m"], g["lanes_pool"]), jnp.float32))
        scratch_shapes.append(
            pltpu.VMEM((g["m"] // 2 + _TAIL_P, g["lanes_pool"]), jnp.float32))

    out = pl.pallas_call(
        _make_kernel(layers, len(params["fc"]), bb),
        out_shape=jax.ShapeDtypeStruct((n_pad, labels), jnp.float32),
        grid=(n_blocks,),
        in_specs=in_specs,
        out_specs=pl.BlockSpec((bb, labels), lambda i: (i, 0)),
        scratch_shapes=scratch_shapes,
        compiler_params=pltpu.CompilerParams(
            dimension_semantics=("parallel",)),
    )(*inputs)
    return out[:n]


# ---------------------------------------------------------------------------
# Deterministic parameter init (same shape logic as Net.__init__).
# Conv weights are HWIO; a torch Conv2d weight (cout,cin,kh,kw) maps via
# w.transpose(2, 3, 1, 0).  fc1 rows are in NHWC-flatten order (hp, wp, c).
# ---------------------------------------------------------------------------
def init_params(key, img_channel, img_width, img_height, img_label,
                conv_channels, fc_channels, kernel_size=5, padding=0, stride=1):
    # TODO(synk): general stride/padding not supported by the fused kernel.
    assert padding == 0 and stride == 1
    params = {"conv": [], "fc": []}
    cur_c, cur_w, cur_h = img_channel, img_width, img_height
    for cc in conv_channels:
        cur_w = ((cur_w - kernel_size) + 1) // 2
        cur_h = ((cur_h - kernel_size) + 1) // 2
        key, k1, k2 = jax.random.split(key, 3)
        fan_in = cur_c * kernel_size * kernel_size
        wk = jax.random.normal(
            k1, (kernel_size, kernel_size, cur_c, cc), jnp.float32) / jnp.sqrt(fan_in)
        bk = jax.random.normal(k2, (cc,), jnp.float32) * 0.01
        params["conv"].append((wk, bk))
        cur_c = cc
    cur = cur_c * cur_w * cur_h
    for fc in list(fc_channels) + [img_label]:
        key, k1, k2 = jax.random.split(key, 3)
        wk = jax.random.normal(k1, (cur, fc), jnp.float32) / jnp.sqrt(cur)
        bk = jax.random.normal(k2, (fc,), jnp.float32) * 0.01
        params["fc"].append((wk, bk))
        cur = fc
    return params


def _reference_forward(x_nchw, params):
    """Pure-JAX/XLA reference, used only for the numerical self-check."""
    x = jnp.transpose(x_nchw, (0, 2, 3, 1))
    for wk, bk in params["conv"]:
        y = jax.lax.conv_general_dilated(
            x, wk, (1, 1), "VALID",
            dimension_numbers=("NHWC", "HWIO", "NHWC")) + bk
        y = jnp.maximum(y, 0.0)
        b, ho, wo, cc = y.shape
        hp, wp = ho // 2, wo // 2
        x = y[:, :hp * 2, :wp * 2, :].reshape(b, hp, 2, wp, 2, cc).max(axis=(2, 4))
    z = x.reshape(x.shape[0], -1)          # NHWC flatten, same order as kernel
    for wk, bk in params["fc"][:-1]:
        z = jnp.maximum(z @ wk + bk, 0.0)
    wk, bk = params["fc"][-1]
    return jax.nn.softmax(z @ wk + bk, axis=-1)


if __name__ == "__main__":
    key = jax.random.PRNGKey(0)
    kx, kp = jax.random.split(key)

    # Net(img_channel=3, img_width=32, img_height=32, img_label=10,
    #     conv_channels=[6, 16], fc_channels=[32]), batch = 2.
    N, C, H, W = 2, 3, 32, 32
    # Round test data/weights to bf16-exact values so the bf16-operand kernel
    # and the f32 XLA reference agree independently of matmul precision.
    q = lambda a: a.astype(jnp.bfloat16).astype(jnp.float32)
    x = q(jax.random.normal(kx, (N, C, H, W), jnp.float32))
    params = jax.tree.map(q, init_params(kp, C, W, H, 10, [6, 16], [32]))

    fwd = jax.jit(lambda inp: net_forward(inp, params))
    out = fwd(x)
    jax.block_until_ready(out)

    assert out.shape == (N, 10), out.shape
    assert bool(jnp.all(jnp.isfinite(out)))
    assert bool(jnp.allclose(jnp.sum(out, axis=1), 1.0, atol=1e-5))

    ref = _reference_forward(x, params)
    err = float(jnp.max(jnp.abs(out - ref)))
    assert err < 2e-2, err

    print("KERNEL_OK")
</pallas_src>

<mosaic_0001>
module attributes {stable_mosaic.version = 11 : i64} {
  func.func @kernel(%arg0: i32, %arg1: memref<272x96xf32, #tpu.memory_space<vmem>>, %arg2: memref<480x168xbf16, #tpu.memory_space<vmem>>, %arg3: memref<1x168xf32, #tpu.memory_space<vmem>>, %arg4: memref<420x160xbf16, #tpu.memory_space<vmem>>, %arg5: memref<1x160xf32, #tpu.memory_space<vmem>>, %arg6: memref<400x32xbf16, #tpu.memory_space<vmem>>, %arg7: memref<1x32xf32, #tpu.memory_space<vmem>>, %arg8: memref<32x10xbf16, #tpu.memory_space<vmem>>, %arg9: memref<1x10xf32, #tpu.memory_space<vmem>>, %arg10: memref<8x10xf32, #tpu.memory_space<vmem>>, %arg11: memref<256x84xf32, #tpu.memory_space<vmem>>, %arg12: memref<136x84xf32, #tpu.memory_space<vmem>>, %arg13: memref<128x80xf32, #tpu.memory_space<vmem>>, %arg14: memref<72x80xf32, #tpu.memory_space<vmem>>) attributes {dimension_semantics = [#tpu.dimension_semantics<parallel>], iteration_bounds = array<i64: 1>, scalar_prefetch = 0 : i64, scratch_operands = 4 : i64, tpu.core_type = #tpu.core_type<tc>, window_params = [{transform_indices = @transform_0, window_bounds = array<i64: 272, 96>}, {pipeline_mode = #tpu.pipeline_mode<synchronous>, transform_indices = @transform_1, window_bounds = array<i64: 480, 168>}, {pipeline_mode = #tpu.pipeline_mode<synchronous>, transform_indices = @transform_2, window_bounds = array<i64: 1, 168>}, {pipeline_mode = #tpu.pipeline_mode<synchronous>, transform_indices = @transform_3, window_bounds = array<i64: 420, 160>}, {pipeline_mode = #tpu.pipeline_mode<synchronous>, transform_indices = @transform_4, window_bounds = array<i64: 1, 160>}, {pipeline_mode = #tpu.pipeline_mode<synchronous>, transform_indices = @transform_5, window_bounds = array<i64: 400, 32>}, {pipeline_mode = #tpu.pipeline_mode<synchronous>, transform_indices = @transform_6, window_bounds = array<i64: 1, 32>}, {pipeline_mode = #tpu.pipeline_mode<synchronous>, transform_indices = @transform_7, window_bounds = array<i64: 32, 10>}, {pipeline_mode = #tpu.pipeline_mode<synchronous>, transform_indices = @transform_8, window_bounds = array<i64: 1, 10>}, {transform_indices = @transform_9, window_bounds = array<i64: 8, 10>}]} {
    %c0 = arith.constant 0 : index
    %c0_0 = arith.constant 0 : index
    %0 = vector.load %arg1[%c0, %c0_0] : memref<272x96xf32, #tpu.memory_space<vmem>>, vector<256x96xf32>
    %1 = arith.truncf %0 : vector<256x96xf32> to vector<256x96xbf16>
    %c0_1 = arith.constant 0 : index
    %c0_2 = arith.constant 0 : index
    %2 = vector.load %arg2[%c0_1, %c0_2] : memref<480x168xbf16, #tpu.memory_space<vmem>>, vector<96x168xbf16>
    %cst = arith.constant dense<0.000000e+00> : vector<256x168xf32>
    %3 = tpu.matmul %1, %2, %cst {dimension_numbers = #tpu.dot_dimension_numbers<[1], [0], [0], [1], [0, 0, 1, 1], [], []>} : vector<256x96xbf16>, vector<96x168xbf16>, vector<256x168xf32> -> vector<256x168xf32>
    %c1 = arith.constant 1 : index
    %c0_3 = arith.constant 0 : index
    %4 = vector.load %arg1[%c1, %c0_3] : memref<272x96xf32, #tpu.memory_space<vmem>>, vector<256x96xf32>
    %5 = arith.truncf %4 : vector<256x96xf32> to vector<256x96xbf16>
    %c96 = arith.constant 96 : index
    %c0_4 = arith.constant 0 : index
    %6 = vector.load %arg2[%c96, %c0_4] : memref<480x168xbf16, #tpu.memory_space<vmem>>, vector<96x168xbf16>
    %cst_5 = arith.constant dense<0.000000e+00> : vector<256x168xf32>
    %7 = tpu.matmul %5, %6, %cst_5 {dimension_numbers = #tpu.dot_dimension_numbers<[1], [0], [0], [1], [0, 0, 1, 1], [], []>} : vector<256x96xbf16>, vector<96x168xbf16>, vector<256x168xf32> -> vector<256x168xf32>
    %8 = arith.addf %3, %7 : vector<256x168xf32>
    %c2 = arith.constant 2 : index
    %c0_6 = arith.constant 0 : index
    %9 = vector.load %arg1[%c2, %c0_6] : memref<272x96xf32, #tpu.memory_space<vmem>>, vector<256x96xf32>
    %10 = arith.truncf %9 : vector<256x96xf32> to vector<256x96xbf16>
    %c192 = arith.constant 192 : index
    %c0_7 = arith.constant 0 : index
    %11 = vector.load %arg2[%c192, %c0_7] : memref<480x168xbf16, #tpu.memory_space<vmem>>, vector<96x168xbf16>
    %cst_8 = arith.constant dense<0.000000e+00> : vector<256x168xf32>
    %12 = tpu.matmul %10, %11, %cst_8 {dimension_numbers = #tpu.dot_dimension_numbers<[1], [0], [0], [1], [0, 0, 1, 1], [], []>} : vector<256x96xbf16>, vector<96x168xbf16>, vector<256x168xf32> -> vector<256x168xf32>
    %13 = arith.addf %8, %12 : vector<256x168xf32>
    %c3 = arith.constant 3 : index
    %c0_9 = arith.constant 0 : index
    %14 = vector.load %arg1[%c3, %c0_9] : memref<272x96xf32, #tpu.memory_space<vmem>>, vector<256x96xf32>
    %15 = arith.truncf %14 : vector<256x96xf32> to vector<256x96xbf16>
    %c288 = arith.constant 288 : index
    %c0_10 = arith.constant 0 : index
    %16 = vector.load %arg2[%c288, %c0_10] : memref<480x168xbf16, #tpu.memory_space<vmem>>, vector<96x168xbf16>
    %cst_11 = arith.constant dense<0.000000e+00> : vector<256x168xf32>
    %17 = tpu.matmul %15, %16, %cst_11 {dimension_numbers = #tpu.dot_dimension_numbers<[1], [0], [0], [1], [0, 0, 1, 1], [], []>} : vector<256x96xbf16>, vector<96x168xbf16>, vector<256x168xf32> -> vector<256x168xf32>
    %18 = arith.addf %13, %17 : vector<256x168xf32>
    %c4 = arith.constant 4 : index
    %c0_12 = arith.constant 0 : index
    %19 = vector.load %arg1[%c4, %c0_12] : memref<272x96xf32, #tpu.memory_space<vmem>>, vector<256x96xf32>
    %20 = arith.truncf %19 : vector<256x96xf32> to vector<256x96xbf16>
    %c384 = arith.constant 384 : index
    %c0_13 = arith.constant 0 : index
    %21 = vector.load %arg2[%c384, %c0_13] : memref<480x168xbf16, #tpu.memory_space<vmem>>, vector<96x168xbf16>
    %cst_14 = arith.constant dense<0.000000e+00> : vector<256x168xf32>
    %22 = tpu.matmul %20, %21, %cst_14 {dimension_numbers = #tpu.dot_dimension_numbers<[1], [0], [0], [1], [0, 0, 1, 1], [], []>} : vector<256x96xbf16>, vector<96x168xbf16>, vector<256x168xf32> -> vector<256x168xf32>
    %23 = arith.addf %18, %22 : vector<256x168xf32>
    %c0_15 = arith.constant 0 : index
    %c0_16 = arith.constant 0 : index
    %24 = vector.load %arg3[%c0_15, %c0_16] : memref<1x168xf32, #tpu.memory_space<vmem>>, vector<1x168xf32>
    %25 = vector.broadcast %24 : vector<1x168xf32> to vector<256x168xf32>
    %26 = arith.addf %23, %25 : vector<256x168xf32>
    %cst_17 = arith.constant 0.000000e+00 : f32
    %27 = vector.broadcast %cst_17 : f32 to vector<256x168xf32>
    %28 = arith.maximumf %26, %27 : vector<256x168xf32>
    %29 = vector.extract_strided_slice %28 {offsets = [0, 0], sizes = [256, 84], strides = [1, 1]} : vector<256x168xf32> to vector<256x84xf32>
    %30 = vector.extract_strided_slice %28 {offsets = [0, 84], sizes = [256, 84], strides = [1, 1]} : vector<256x168xf32> to vector<256x84xf32>
    %31 = arith.maximumf %29, %30 : vector<256x84xf32>
    %c0_18 = arith.constant 0 : index
    %c0_19 = arith.constant 0 : index
    %32 = vector.load %arg11[%c0_18, %c0_19] : memref<256x84xf32, #tpu.memory_space<vmem>>, vector<256x84xf32>
    tpu.vector_store %arg11[%c0_18, %c0_19], %31 {strides = array<i32>} : memref<256x84xf32, #tpu.memory_space<vmem>>, vector<256x84xf32>,
    %c0_20 = arith.constant 0 : index
    %c0_21 = arith.constant 0 : index
    %33 = tpu.strided_load %arg11[%c0_20, %c0_21] {strides = array<i32: 2, 1>} : memref<256x84xf32, #tpu.memory_space<vmem>>, vector<128x84xf32>
    %c1_22 = arith.constant 1 : index
    %c0_23 = arith.constant 0 : index
    %34 = tpu.strided_load %arg11[%c1_22, %c0_23] {strides = array<i32: 2, 1>} : memref<256x84xf32, #tpu.memory_space<vmem>>, vector<128x84xf32>
    %35 = arith.maximumf %33, %34 : vector<128x84xf32>
    %c0_24 = arith.constant 0 : index
    %c0_25 = arith.constant 0 : index
    %36 = vector.load %arg12[%c0_24, %c0_25] : memref<136x84xf32, #tpu.memory_space<vmem>>, vector<128x84xf32>
    tpu.vector_store %arg12[%c0_24, %c0_25], %35 {strides = array<i32>} : memref<136x84xf32, #tpu.memory_space<vmem>>, vector<128x84xf32>,
    %cst_26 = arith.constant 0.000000e+00 : f32
    %37 = vector.broadcast %cst_26 : f32 to vector<8x84xf32>
    %c128 = arith.constant 128 : index
    %c0_27 = arith.constant 0 : index
    %38 = vector.load %arg12[%c128, %c0_27] : memref<136x84xf32, #tpu.memory_space<vmem>>, vector<8x84xf32>
    tpu.vector_store %arg12[%c128, %c0_27], %37 {strides = array<i32>} : memref<136x84xf32, #tpu.memory_space<vmem>>, vector<8x84xf32>,
    %c0_28 = arith.constant 0 : index
    %c0_29 = arith.constant 0 : index
    %39 = vector.load %arg12[%c0_28, %c0_29] : memref<136x84xf32, #tpu.memory_space<vmem>>, vector<128x84xf32>
    %40 = arith.truncf %39 : vector<128x84xf32> to vector<128x84xbf16>
    %c0_30 = arith.constant 0 : index
    %c0_31 = arith.constant 0 : index
    %41 = vector.load %arg4[%c0_30, %c0_31] : memref<420x160xbf16, #tpu.memory_space<vmem>>, vector<84x160xbf16>
    %cst_32 = arith.constant dense<0.000000e+00> : vector<128x160xf32>
    %42 = tpu.matmul %40, %41, %cst_32 {dimension_numbers = #tpu.dot_dimension_numbers<[1], [0], [0], [1], [0, 0, 1, 1], [], []>} : vector<128x84xbf16>, vector<84x160xbf16>, vector<128x160xf32> -> vector<128x160xf32>
    %c1_33 = arith.constant 1 : index
    %c0_34 = arith.constant 0 : index
    %43 = vector.load %arg12[%c1_33, %c0_34] : memref<136x84xf32, #tpu.memory_space<vmem>>, vector<128x84xf32>
    %44 = arith.truncf %43 : vector<128x84xf32> to vector<128x84xbf16>
    %c84 = arith.constant 84 : index
    %c0_35 = arith.constant 0 : index
    %45 = vector.load %arg4[%c84, %c0_35] : memref<420x160xbf16, #tpu.memory_space<vmem>>, vector<84x160xbf16>
    %cst_36 = arith.constant dense<0.000000e+00> : vector<128x160xf32>
    %46 = tpu.matmul %44, %45, %cst_36 {dimension_numbers = #tpu.dot_dimension_numbers<[1], [0], [0], [1], [0, 0, 1, 1], [], []>} : vector<128x84xbf16>, vector<84x160xbf16>, vector<128x160xf32> -> vector<128x160xf32>
    %47 = arith.addf %42, %46 : vector<128x160xf32>
    %c2_37 = arith.constant 2 : index
    %c0_38 = arith.constant 0 : index
    %48 = vector.load %arg12[%c2_37, %c0_38] : memref<136x84xf32, #tpu.memory_space<vmem>>, vector<128x84xf32>
    %49 = arith.truncf %48 : vector<128x84xf32> to vector<128x84xbf16>
    %c168 = arith.constant 168 : index
    %c0_39 = arith.constant 0 : index
    %50 = vector.load %arg4[%c168, %c0_39] : memref<420x160xbf16, #tpu.memory_space<vmem>>, vector<84x160xbf16>
    %cst_40 = arith.constant dense<0.000000e+00> : vector<128x160xf32>
    %51 = tpu.matmul %49, %50, %cst_40 {dimension_numbers = #tpu.dot_dimension_numbers<[1], [0], [0], [1], [0, 0, 1, 1], [], []>} : vector<128x84xbf16>, vector<84x160xbf16>, vector<128x160xf32> -> vector<128x160xf32>
    %52 = arith.addf %47, %51 : vector<128x160xf32>
    %c3_41 = arith.constant 3 : index
    %c0_42 = arith.constant 0 : index
    %53 = vector.load %arg12[%c3_41, %c0_42] : memref<136x84xf32, #tpu.memory_space<vmem>>, vector<128x84xf32>
    %54 = arith.truncf %53 : vector<128x84xf32> to vector<128x84xbf16>
    %c252 = arith.constant 252 : index
    %c0_43 = arith.constant 0 : index
    %55 = vector.load %arg4[%c252, %c0_43] : memref<420x160xbf16, #tpu.memory_space<vmem>>, vector<84x160xbf16>
    %cst_44 = arith.constant dense<0.000000e+00> : vector<128x160xf32>
    %56 = tpu.matmul %54, %55, %cst_44 {dimension_numbers = #tpu.dot_dimension_numbers<[1], [0], [0], [1], [0, 0, 1, 1], [], []>} : vector<128x84xbf16>, vector<84x160xbf16>, vector<128x160xf32> -> vector<128x160xf32>
    %57 = arith.addf %52, %56 : vector<128x160xf32>
    %c4_45 = arith.constant 4 : index
    %c0_46 = arith.constant 0 : index
    %58 = vector.load %arg12[%c4_45, %c0_46] : memref<136x84xf32, #tpu.memory_space<vmem>>, vector<128x84xf32>
    %59 = arith.truncf %58 : vector<128x84xf32> to vector<128x84xbf16>
    %c336 = arith.constant 336 : index
    %c0_47 = arith.constant 0 : index
    %60 = vector.load %arg4[%c336, %c0_47] : memref<420x160xbf16, #tpu.memory_space<vmem>>, vector<84x160xbf16>
    %cst_48 = arith.constant dense<0.000000e+00> : vector<128x160xf32>
    %61 = tpu.matmul %59, %60, %cst_48 {dimension_numbers = #tpu.dot_dimension_numbers<[1], [0], [0], [1], [0, 0, 1, 1], [], []>} : vector<128x84xbf16>, vector<84x160xbf16>, vector<128x160xf32> -> vector<128x160xf32>
    %62 = arith.addf %57, %61 : vector<128x160xf32>
    %c0_49 = arith.constant 0 : index
    %c0_50 = arith.constant 0 : index
    %63 = vector.load %arg5[%c0_49, %c0_50] : memref<1x160xf32, #tpu.memory_space<vmem>>, vector<1x160xf32>
    %64 = vector.broadcast %63 : vector<1x160xf32> to vector<128x160xf32>
    %65 = arith.addf %62, %64 : vector<128x160xf32>
    %cst_51 = arith.constant 0.000000e+00 : f32
    %66 = vector.broadcast %cst_51 : f32 to vector<128x160xf32>
    %67 = arith.maximumf %65, %66 : vector<128x160xf32>
    %68 = vector.extract_strided_slice %67 {offsets = [0, 0], sizes = [128, 80], strides = [1, 1]} : vector<128x160xf32> to vector<128x80xf32>
    %69 = vector.extract_strided_slice %67 {offsets = [0, 80], sizes = [128, 80], strides = [1, 1]} : vector<128x160xf32> to vector<128x80xf32>
    %70 = arith.maximumf %68, %69 : vector<128x80xf32>
    %c0_52 = arith.constant 0 : index
    %c0_53 = arith.constant 0 : index
    %71 = vector.load %arg13[%c0_52, %c0_53] : memref<128x80xf32, #tpu.memory_space<vmem>>, vector<128x80xf32>
    tpu.vector_store %arg13[%c0_52, %c0_53], %70 {strides = array<i32>} : memref<128x80xf32, #tpu.memory_space<vmem>>, vector<128x80xf32>,
    %c0_54 = arith.constant 0 : index
    %c0_55 = arith.constant 0 : index
    %72 = tpu.strided_load %arg13[%c0_54, %c0_55] {strides = array<i32: 2, 1>} : memref<128x80xf32, #tpu.memory_space<vmem>>, vector<64x80xf32>
    %c1_56 = arith.constant 1 : index
    %c0_57 = arith.constant 0 : index
    %73 = tpu.strided_load %arg13[%c1_56, %c0_57] {strides = array<i32: 2, 1>} : memref<128x80xf32, #tpu.memory_space<vmem>>, vector<64x80xf32>
    %74 = arith.maximumf %72, %73 : vector<64x80xf32>
    %c0_58 = arith.constant 0 : index
    %c0_59 = arith.constant 0 : index
    %75 = vector.load %arg14[%c0_58, %c0_59] : memref<72x80xf32, #tpu.memory_space<vmem>>, vector<64x80xf32>
    tpu.vector_store %arg14[%c0_58, %c0_59], %74 {strides = array<i32>} : memref<72x80xf32, #tpu.memory_space<vmem>>, vector<64x80xf32>,
    %cst_60 = arith.constant 0.000000e+00 : f32
    %76 = vector.broadcast %cst_60 : f32 to vector<8x80xf32>
    %c64 = arith.constant 64 : index
    %c0_61 = arith.constant 0 : index
    %77 = vector.load %arg14[%c64, %c0_61] : memref<72x80xf32, #tpu.memory_space<vmem>>, vector<8x80xf32>
    tpu.vector_store %arg14[%c64, %c0_61], %76 {strides = array<i32>} : memref<72x80xf32, #tpu.memory_space<vmem>>, vector<8x80xf32>,
    %c0_62 = arith.constant 0 : index
    %c0_63 = arith.constant 0 : index
    %78 = tpu.strided_load %arg14[%c0_62, %c0_63] {strides = array<i32: 8, 1>} : memref<72x80xf32, #tpu.memory_space<vmem>>, vector<8x80xf32>
    %c0_64 = arith.constant 0 : index
    %c0_65 = arith.constant 0 : index
    %79 = vector.load %arg6[%c0_64, %c0_65] : memref<400x32xbf16, #tpu.memory_space<vmem>>, vector<80x32xbf16>
    %80 = arith.truncf %78 : vector<8x80xf32> to vector<8x80xbf16>
    %cst_66 = arith.constant dense<0.000000e+00> : vector<8x32xf32>
    %81 = tpu.matmul %80, %79, %cst_66 {dimension_numbers = #tpu.dot_dimension_numbers<[1], [0], [0], [1], [0, 0, 1, 1], [], []>} : vector<8x80xbf16>, vector<80x32xbf16>, vector<8x32xf32> -> vector<8x32xf32>
    %c1_67 = arith.constant 1 : index
    %c0_68 = arith.constant 0 : index
    %82 = tpu.strided_load %arg14[%c1_67, %c0_68] {strides = array<i32: 8, 1>} : memref<72x80xf32, #tpu.memory_space<vmem>>, vector<8x80xf32>
    %c80 = arith.constant 80 : index
    %c0_69 = arith.constant 0 : index
    %83 = vector.load %arg6[%c80, %c0_69] : memref<400x32xbf16, #tpu.memory_space<vmem>>, vector<80x32xbf16>
    %84 = arith.truncf %82 : vector<8x80xf32> to vector<8x80xbf16>
    %cst_70 = arith.constant dense<0.000000e+00> : vector<8x32xf32>
    %85 = tpu.matmul %84, %83, %cst_70 {dimension_numbers = #tpu.dot_dimension_numbers<[1], [0], [0], [1], [0, 0, 1, 1], [], []>} : vector<8x80xbf16>, vector<80x32xbf16>, vector<8x32xf32> -> vector<8x32xf32>
    %86 = arith.addf %81, %85 : vector<8x32xf32>
    %c2_71 = arith.constant 2 : index
    %c0_72 = arith.constant 0 : index
    %87 = tpu.strided_load %arg14[%c2_71, %c0_72] {strides = array<i32: 8, 1>} : memref<72x80xf32, #tpu.memory_space<vmem>>, vector<8x80xf32>
    %c160 = arith.constant 160 : index
    %c0_73 = arith.constant 0 : index
    %88 = vector.load %arg6[%c160, %c0_73] : memref<400x32xbf16, #tpu.memory_space<vmem>>, vector<80x32xbf16>
    %89 = arith.truncf %87 : vector<8x80xf32> to vector<8x80xbf16>
    %cst_74 = arith.constant dense<0.000000e+00> : vector<8x32xf32>
    %90 = tpu.matmul %89, %88, %cst_74 {dimension_numbers = #tpu.dot_dimension_numbers<[1], [0], [0], [1], [0, 0, 1, 1], [], []>} : vector<8x80xbf16>, vector<80x32xbf16>, vector<8x32xf32> -> vector<8x32xf32>
    %91 = arith.addf %86, %90 : vector<8x32xf32>
    %c3_75 = arith.constant 3 : index
    %c0_76 = arith.constant 0 : index
    %92 = tpu.strided_load %arg14[%c3_75, %c0_76] {strides = array<i32: 8, 1>} : memref<72x80xf32, #tpu.memory_space<vmem>>, vector<8x80xf32>
    %c240 = arith.constant 240 : index
    %c0_77 = arith.constant 0 : index
    %93 = vector.load %arg6[%c240, %c0_77] : memref<400x32xbf16, #tpu.memory_space<vmem>>, vector<80x32xbf16>
    %94 = arith.truncf %92 : vector<8x80xf32> to vector<8x80xbf16>
    %cst_78 = arith.constant dense<0.000000e+00> : vector<8x32xf32>
    %95 = tpu.matmul %94, %93, %cst_78 {dimension_numbers = #tpu.dot_dimension_numbers<[1], [0], [0], [1], [0, 0, 1, 1], [], []>} : vector<8x80xbf16>, vector<80x32xbf16>, vector<8x32xf32> -> vector<8x32xf32>
    %96 = arith.addf %91, %95 : vector<8x32xf32>
    %c4_79 = arith.constant 4 : index
    %c0_80 = arith.constant 0 : index
    %97 = tpu.strided_load %arg14[%c4_79, %c0_80] {strides = array<i32: 8, 1>} : memref<72x80xf32, #tpu.memory_space<vmem>>, vector<8x80xf32>
    %c320 = arith.constant 320 : index
    %c0_81 = arith.constant 0 : index
    %98 = vector.load %arg6[%c320, %c0_81] : memref<400x32xbf16, #tpu.memory_space<vmem>>, vector<80x32xbf16>
    %99 = arith.truncf %97 : vector<8x80xf32> to vector<8x80xbf16>
    %cst_82 = arith.constant dense<0.000000e+00> : vector<8x32xf32>
    %100 = tpu.matmul %99, %98, %cst_82 {dimension_numbers = #tpu.dot_dimension_numbers<[1], [0], [0], [1], [0, 0, 1, 1], [], []>} : vector<8x80xbf16>, vector<80x32xbf16>, vector<8x32xf32> -> vector<8x32xf32>
    %101 = arith.addf %96, %100 : vector<8x32xf32>
    %c0_83 = arith.constant 0 : index
    %c0_84 = arith.constant 0 : index
    %102 = vector.load %arg7[%c0_83, %c0_84] : memref<1x32xf32, #tpu.memory_space<vmem>>, vector<1x32xf32>
    %103 = vector.broadcast %102 : vector<1x32xf32> to vector<8x32xf32>
    %104 = arith.addf %101, %103 : vector<8x32xf32>
    %cst_85 = arith.constant 0.000000e+00 : f32
    %105 = vector.broadcast %cst_85 : f32 to vector<8x32xf32>
    %106 = arith.maximumf %104, %105 : vector<8x32xf32>
    %107 = arith.truncf %106 : vector<8x32xf32> to vector<8x32xbf16>
    %c0_86 = arith.constant 0 : index
    %c0_87 = arith.constant 0 : index
    %108 = vector.load %arg8[%c0_86, %c0_87] : memref<32x10xbf16, #tpu.memory_space<vmem>>, vector<32x10xbf16>
    %cst_88 = arith.constant dense<0.000000e+00> : vector<8x10xf32>
    %109 = tpu.matmul %107, %108, %cst_88 {dimension_numbers = #tpu.dot_dimension_numbers<[1], [0], [0], [1], [0, 0, 1, 1], [], []>} : vector<8x32xbf16>, vector<32x10xbf16>, vector<8x10xf32> -> vector<8x10xf32>
    %c0_89 = arith.constant 0 : index
    %c0_90 = arith.constant 0 : index
    %110 = vector.load %arg9[%c0_89, %c0_90] : memref<1x10xf32, #tpu.memory_space<vmem>>, vector<1x10xf32>
    %111 = vector.broadcast %110 : vector<1x10xf32> to vector<8x10xf32>
    %112 = arith.addf %109, %111 : vector<8x10xf32>
    %cst_91 = arith.constant dense<0xFF800000> : vector<8xf32>
    %113 = vector.multi_reduction <maximumf>, %112, %cst_91 [1] : vector<8x10xf32> to vector<8xf32>
    %114 = vector.shape_cast %113 : vector<8xf32> to vector<8x1xf32>
    %115 = vector.broadcast %114 : vector<8x1xf32> to vector<8x10xf32>
    %116 = arith.subf %112, %115 : vector<8x10xf32>
    %117 = math.exp %116 : vector<8x10xf32>
    %cst_92 = arith.constant dense<0.000000e+00> : vector<8xf32>
    %118 = vector.multi_reduction <add>, %117, %cst_92 [1] : vector<8x10xf32> to vector<8xf32>
    %119 = vector.shape_cast %118 : vector<8xf32> to vector<8x1xf32>
    %120 = tpu.reciprocal %119 : vector<8x1xf32> -> vector<8x1xf32>
    %121 = vector.broadcast %120 : vector<8x1xf32> to vector<8x10xf32>
    %122 = arith.mulf %117, %121 : vector<8x10xf32>
    %c0_93 = arith.constant 0 : index
    %c0_94 = arith.constant 0 : index
    %123 = vector.load %arg10[%c0_93, %c0_94] : memref<8x10xf32, #tpu.memory_space<vmem>>, vector<8x10xf32>
    tpu.vector_store %arg10[%c0_93, %c0_94], %122 {strides = array<i32>} : memref<8x10xf32, #tpu.memory_space<vmem>>, vector<8x10xf32>,
    return
  }
  func.func @transform_0(%arg0: i32) -> (i32, i32) {
    %c0_i32 = arith.constant 0 : i32
    %c0_i32_0 = arith.constant 0 : i32
    return %arg0, %c0_i32 : i32, i32
  }
  func.func @transform_1(%arg0: i32) -> (i32, i32) {
    %c0_i32 = arith.constant 0 : i32
    %c0_i32_0 = arith.constant 0 : i32
    %c0_i32_1 = arith.constant 0 : i32
    return %c0_i32, %c0_i32_0 : i32, i32
  }
  func.func @transform_2(%arg0: i32) -> (i32, i32) {
    %c0_i32 = arith.constant 0 : i32
    %c0_i32_0 = arith.constant 0 : i32
    %c0_i32_1 = arith.constant 0 : i32
    return %c0_i32, %c0_i32_0 : i32, i32
  }
  func.func @transform_3(%arg0: i32) -> (i32, i32) {
    %c0_i32 = arith.constant 0 : i32
    %c0_i32_0 = arith.constant 0 : i32
    %c0_i32_1 = arith.constant 0 : i32
    return %c0_i32, %c0_i32_0 : i32, i32
  }
  func.func @transform_4(%arg0: i32) -> (i32, i32) {
    %c0_i32 = arith.constant 0 : i32
    %c0_i32_0 = arith.constant 0 : i32
    %c0_i32_1 = arith.constant 0 : i32
    return %c0_i32, %c0_i32_0 : i32, i32
  }
  func.func @transform_5(%arg0: i32) -> (i32, i32) {
    %c0_i32 = arith.constant 0 : i32
    %c0_i32_0 = arith.constant 0 : i32
    %c0_i32_1 = arith.constant 0 : i32
    return %c0_i32, %c0_i32_0 : i32, i32
  }
  func.func @transform_6(%arg0: i32) -> (i32, i32) {
    %c0_i32 = arith.constant 0 : i32
    %c0_i32_0 = arith.constant 0 : i32
    %c0_i32_1 = arith.constant 0 : i32
    return %c0_i32, %c0_i32_0 : i32, i32
  }
  func.func @transform_7(%arg0: i32) -> (i32, i32) {
    %c0_i32 = arith.constant 0 : i32
    %c0_i32_0 = arith.constant 0 : i32
    %c0_i32_1 = arith.constant 0 : i32
    return %c0_i32, %c0_i32_0 : i32, i32
  }
  func.func @transform_8(%arg0: i32) -> (i32, i32) {
    %c0_i32 = arith.constant 0 : i32
    %c0_i32_0 = arith.constant 0 : i32
    %c0_i32_1 = arith.constant 0 : i32
    return %c0_i32, %c0_i32_0 : i32, i32
  }
  func.func @transform_9(%arg0: i32) -> (i32, i32) {
    %c0_i32 = arith.constant 0 : i32
    %c0_i32_0 = arith.constant 0 : i32
    return %arg0, %c0_i32 : i32, i32
  }
}

</mosaic_0001>

<llo_original>
// kernel: tile.10
$region0: #{tile.10}
  #allocation0 [shape = 's32[1]{0}', space=sflag, size = 0x4, scoped, tag = 'scoped memory for tile.10']
  %s0 = inlined_call_operand.vmem [shape: f32[6], index: 0, kind: input, shape index: {}]
  %s1 = inlined_call_operand.vmem [shape: f32[28,6], index: 1, kind: output, shape index: {}]
  // Predicated region
  $region2: #{tile.10} parent=0 // pred_check
    _
  $region3: #{tile.10} parent=0 // pred_check_branch
    %3 = sbr.rel (0) target = $region5
  $region4: #{tile.10} parent=0 // pred_region
    _
  $region5: #{tile.10} parent=0 // pred_fallthru
    _
  %v4 = vld [vmem:[%s0] ss:$0 sm:$0xff]
  %5 = vst [vmem:[%s1] sm:$0xff] %v4
  %s6 = scalar_lea.vmem %s1, 8
  %7 = vst [vmem:[%s6] sm:$0xff] %v4
  %s8 = scalar_lea.vmem %s1, 16
  %9 = vst [vmem:[%s8] sm:$0xff] %v4
  %s10 = scalar_lea.vmem %s1, 24
  %11 = vst [vmem:[%s10] sm:$0xff] %v4

// kernel: tile.14
$region0: #{tile.14}
  #allocation0 [shape = 's32[1]{0}', space=sflag, size = 0x4, scoped, tag = 'scoped memory for tile.14']
  %s0 = inlined_call_operand.vmem [shape: f32[16], index: 0, kind: input, shape index: {}]
  %s1 = inlined_call_operand.vmem [shape: f32[10,16], index: 1, kind: output, shape index: {}]
  // Predicated region
  $region2: #{tile.14} parent=0 // pred_check
    _
  $region3: #{tile.14} parent=0 // pred_check_branch
    %3 = sbr.rel (0) target = $region5
  $region4: #{tile.14} parent=0 // pred_region
    _
  $region5: #{tile.14} parent=0 // pred_fallthru
    _
  %v4 = vld [vmem:[%s0] ss:$0 sm:$0xff]
  %5 = vst [vmem:[%s1] sm:$0xff] %v4
  %s6 = scalar_lea.vmem %s1, 8
  %7 = vst [vmem:[%s6] sm:$0xff] %v4

// kernel: tile.11
$region0: #{tile.11}
  %s0 = inlined_call_operand.vmem [shape: f32[28,6], index: 0, kind: input, shape index: {}]
  %s1 = inlined_call_operand.vmem [shape: f32[1,168], index: 1, kind: output, shape index: {}]
  $region1: #{tile.11} parent=0
    #allocation0 [shape = 'u8[8192]{0}', space=vmem, size = 0x2000, scoped, tag = 'scoped mem for output reshape']
    %v2 = vld [vmem:[%s0] sm:$0x1]
    %vm3 = vcmask 48128
    %4 = vst.msk [vmem:[#allocation0] sm:$0x1] %vm3, %v2
    %s5 = scalar_lea.vmem %s0, 21
    %v6 = vld [vmem:[%s5] sm:$0x1]
    %s7 = scalar_lea.vmem %s0, 21
    %v8 = vld [vmem:[%s7] sm:$0x1]
    %vm9 = vcmask 15360
    %v10 = vsel %vm9, %v8, %v6
    %11 = vrot.lane.b32.xlu0 %v10, 126
    %v12 = vpop.permute.xlu0 %11
    %vm13 = vcmask 31744
    %s14 = scalar_lea.vmem [#allocation0], 8
    %15 = vst.msk [vmem:[%s14] sm:$0x1] %vm13, %v12
    %vm16 = vcmask 1048560
    %17 = vst.msk [vmem:[#allocation0] sm:$0x1] %vm16, %v12
    %s18 = scalar_lea.vmem %s0, 20
    %v19 = vld [vmem:[%s18] sm:$0x1]
    %20 = vrot.lane.b32.xlu0 %v19, 120
    %v21 = vpop.permute.xlu0 %20
    %vm22 = vcmask 1032128
    %23 = vst.msk [vmem:[#allocation0] sm:$0x1] %vm22, %v21
    %s24 = scalar_lea.vmem %s0, 19
    %v25 = vld [vmem:[%s24] sm:$0x1]
    %26 = vrot.lane.b32.xlu0 %v25, 114
    %v27 = vpop.permute.xlu0 %26
    %vm28 = vcmask 982928
    %29 = vst.msk [vmem:[#allocation0] sm:$0x1] %vm28, %v27
    %s30 = scalar_lea.vmem %s0, 18
    %v31 = vld [vmem:[%s30] sm:$0x1]
    %32 = vrot.lane.b32.xlu0 %v31, 108
    %v33 = vpop.permute.xlu0 %32
    %vm34 = vcmask 933728
    %35 = vst.msk [vmem:[#allocation0] sm:$0x1] %vm34, %v33
    %s36 = scalar_lea.vmem %s0, 17
    %v37 = vld [vmem:[%s36] sm:$0x1]
    %38 = vrot.lane.b32.xlu0 %v37, 102
    %v39 = vpop.permute.xlu0 %38
    %vm40 = vcmask 884528
    %41 = vst.msk [vmem:[#allocation0] sm:$0x1] %vm40, %v39
    %s42 = scalar_lea.vmem %s0, 16
    %v43 = vld [vmem:[%s42] sm:$0x1]
    %44 = vrot.lane.b32.xlu0 %v43, 96
    %v45 = vpop.permute.xlu0 %44
    %vm46 = vcmask 835328
    %47 = vst.msk [vmem:[#allocation0] sm:$0x1] %vm46, %v45
    %s48 = scalar_lea.vmem %s0, 15
    %v49 = vld [vmem:[%s48] sm:$0x1]
    %50 = vrot.lane.b32.xlu0 %v49, 90
    %v51 = vpop.permute.xlu0 %50
    %vm52 = vcmask 786128
    %53 = vst.msk [vmem:[#allocation0] sm:$0x1] %vm52, %v51
    %s54 = scalar_lea.vmem %s0, 14
    %v55 = vld [vmem:[%s54] sm:$0x1]
    %56 = vrot.lane.b32.xlu0 %v55, 84
    %v57 = vpop.permute.xlu0 %56
    %vm58 = vcmask 736928
    %59 = vst.msk [vmem:[#allocation0] sm:$0x1] %vm58, %v57
    %s60 = scalar_lea.vmem %s0, 13
    %v61 = vld [vmem:[%s60] sm:$0x1]
    %62 = vrot.lane.b32.xlu0 %v61, 78
    %v63 = vpop.permute.xlu0 %62
    %vm64 = vcmask 687728
    %65 = vst.msk [vmem:[#allocation0] sm:$0x1] %vm64, %v63
    %s66 = scalar_lea.vmem %s0, 12
    %v67 = vld [vmem:[%s66] sm:$0x1]
    %68 = vrot.lane.b32.xlu0 %v67, 72
    %v69 = vpop.permute.xlu0 %68
    %vm70 = vcmask 638528
    %71 = vst.msk [vmem:[#allocation0] sm:$0x1] %vm70, %v69
    %s72 = scalar_lea.vmem %s0, 11
    %v73 = vld [vmem:[%s72] sm:$0x1]
    %74 = vrot.lane.b32.xlu0 %v73, 66
    %v75 = vpop.permute.xlu0 %74
    %vm76 = vcmask 589328
    %77 = vst.msk [vmem:[#allocation0] sm:$0x1] %vm76, %v75
    %s78 = scalar_lea.vmem %s0, 10
    %v79 = vld [vmem:[%s78] sm:$0x1]
    %80 = vrot.lane.b32.xlu0 %v79, 60
    %v81 = vpop.permute.xlu0 %80
    %vm82 = vcmask 540128
    %83 = vst.msk [vmem:[#allocation0] sm:$0x1] %vm82, %v81
    %s84 = scalar_lea.vmem %s0, 9
    %v85 = vld [vmem:[%s84] sm:$0x1]
    %86 = vrot.lane.b32.xlu0 %v85, 54
    %v87 = vpop.permute.xlu0 %86
    %vm88 = vcmask 490928
    %89 = vst.msk [vmem:[#allocation0] sm:$0x1] %vm88, %v87
    %s90 = scalar_lea.vmem %s0, 8
    %v91 = vld [vmem:[%s90] sm:$0x1]
    %92 = vrot.lane.b32.xlu0 %v91, 48
    %v93 = vpop.permute.xlu0 %92
    %vm94 = vcmask 441728
    %95 = vst.msk [vmem:[#allocation0] sm:$0x1] %vm94, %v93
    %s96 = scalar_lea.vmem %s0, 7
    %v97 = vld [vmem:[%s96] sm:$0x1]
    %98 = vrot.lane.b32.xlu0 %v97, 42
    %v99 = vpop.permute.xlu0 %98
    %vm100 = vcmask 392528
    %101 = vst.msk [vmem:[#allocation0] sm:$0x1] %vm100, %v99
    %s102 = scalar_lea.vmem %s0, 6
    %v103 = vld [vmem:[%s102] sm:$0x1]
    %104 = vrot.lane.b32.xlu0 %v103, 36
    %v105 = vpop.permute.xlu0 %104
    %vm106 = vcmask 343328
    %107 = vst.msk [vmem:[#allocation0] sm:$0x1] %vm106, %v105
    %s108 = scalar_lea.vmem %s0, 27
    %v109 = vld [vmem:[%s108] sm:$0x1]
    %110 = vrot.lane.b32.xlu0 %v109, 34
    %v111 = vpop.permute.xlu0 %110
    %vm112 = vcmask 326928
    %s113 = scalar_lea.vmem [#allocation0], 8
    %114 = vst.msk [vmem:[%s113] sm:$0x1] %vm112, %v111
    %s115 = scalar_lea.vmem %s0, 5
    %v116 = vld [vmem:[%s115] sm:$0x1]
    %117 = vrot.lane.b32.xlu0 %v116, 30
    %v118 = vpop.permute.xlu0 %117
    %vm119 = vcmask 294128
    %120 = vst.msk [vmem:[#allocation0] sm:$0x1] %vm119, %v118
    %s121 = scalar_lea.vmem %s0, 26
    %v122 = vld [vmem:[%s121] sm:$0x1]
    %123 = vrot.lane.b32.xlu0 %v122, 28
    %v124 = vpop.permute.xlu0 %123
    %vm125 = vcmask 277728
    %s126 = scalar_lea.vmem [#allocation0], 8
    %127 = vst.msk [vmem:[%s126] sm:$0x1] %vm125, %v124
    %s128 = scalar_lea.vmem %s0, 4
    %v129 = vld [vmem:[%s128] sm:$0x1]
    %130 = vrot.lane.b32.xlu0 %v129, 24
    %v131 = vpop.permute.xlu0 %130
    %vm132 = vcmask 244928
    %133 = vst.msk [vmem:[#allocation0] sm:$0x1] %vm132, %v131
    %s134 = scalar_lea.vmem %s0, 25
    %v135 = vld [vmem:[%s134] sm:$0x1]
    %136 = vrot.lane.b32.xlu0 %v135, 22
    %v137 = vpop.permute.xlu0 %136
    %vm138 = vcmask 228528
    %s139 = scalar_lea.vmem [#allocation0], 8
    %140 = vst.msk [vmem:[%s139] sm:$0x1] %vm138, %v137
    %s141 = scalar_lea.vmem %s0, 3
    %v142 = vld [vmem:[%s141] sm:$0x1]
    %143 = vrot.lane.b32.xlu0 %v142, 18
    %v144 = vpop.permute.xlu0 %143
    %vm145 = vcmask 195728
    %146 = vst.msk [vmem:[#allocation0] sm:$0x1] %vm145, %v144
    %s147 = scalar_lea.vmem %s0, 24
    %v148 = vld [vmem:[%s147] sm:$0x1]
    %149 = vrot.lane.b32.xlu0 %v148, 16
    %v150 = vpop.permute.xlu0 %149
    %vm151 = vcmask 179328
    %s152 = scalar_lea.vmem [#allocation0], 8
    %153 = vst.msk [vmem:[%s152] sm:$0x1] %vm151, %v150
    %s154 = scalar_lea.vmem %s0, 2
    %v155 = vld [vmem:[%s154] sm:$0x1]
    %156 = vrot.lane.b32.xlu0 %v155, 12
    %v157 = vpop.permute.xlu0 %156
    %vm158 = vcmask 146528
    %159 = vst.msk [vmem:[#allocation0] sm:$0x1] %vm158, %v157
    %s160 = scalar_lea.vmem %s0, 23
    %v161 = vld [vmem:[%s160] sm:$0x1]
    %162 = vrot.lane.b32.xlu0 %v161, 10
    %v163 = vpop.permute.xlu0 %162
    %vm164 = vcmask 130128
    %s165 = scalar_lea.vmem [#allocation0], 8
    %166 = vst.msk [vmem:[%s165] sm:$0x1] %vm164, %v163
    %s167 = scalar_lea.vmem %s0, 1
    %v168 = vld [vmem:[%s167] sm:$0x1]
    %169 = vrot.lane.b32.xlu0 %v168, 6
    %v170 = vpop.permute.xlu0 %169
    %vm171 = vcmask 97328
    %172 = vst.msk [vmem:[#allocation0] sm:$0x1] %vm171, %v170
    %s173 = scalar_lea.vmem %s0, 22
    %v174 = vld [vmem:[%s173] sm:$0x1]
    %175 = vrot.lane.b32.xlu0 %v174, 4
    %v176 = vpop.permute.xlu0 %175
    %vm177 = vcmask 80928
    %s178 = scalar_lea.vmem [#allocation0], 8
    %179 = vst.msk [vmem:[%s178] sm:$0x1] %vm177, %v176
    %s181 = ssub.s32 2, 1
    %v182 = vld [vmem:[#allocation0] sm:%s181]
    %s184 = ssub.s32 2, 1
    %185 = vst [vmem:[%s1] sm:%s184] %v182
    %s186 = scalar_lea.vmem [#allocation0], 8
    %v187 = vld [vmem:[%s186] sm:%s181]
    %s189 = ssub.s32 2, 1
    %s190 = scalar_lea.vmem %s1, 1
    %191 = vst [vmem:[%s190] sm:%s189] %v187

// kernel: tile.15
$region0: #{tile.15}
  %s0 = inlined_call_operand.vmem [shape: f32[10,16], index: 0, kind: input, shape index: {}]
  %s1 = inlined_call_operand.vmem [shape: f32[1,160], index: 1, kind: output, shape index: {}]
  $region1: #{tile.15} parent=0
    #allocation0 [shape = 'u8[8192]{0}', space=vmem, size = 0x2000, scoped, tag = 'scoped mem for output reshape']
    %s2 = smov 3
    %v3 = vld [vmem:[%s0] ss:$8 sm:%s2]
    %vm4 = vcmask 130048
    %5 = vst.msk [vmem:[#allocation0] ss:$8 sm:$0x3] %vm4, %v3
    %s6 = scalar_lea.vmem %s0, 7
    %v7 = vld [vmem:[%s6] sm:$0x1]
    %8 = vrot.lane.b32.xlu0 %v7, 112
    %v9 = vpop.permute.xlu0 %8
    %vm10 = vcmask 1048448
    %11 = vst.msk [vmem:[#allocation0] sm:$0x1] %vm10, %v9
    %s12 = scalar_lea.vmem %s0, 6
    %v13 = vld [vmem:[%s12] sm:$0x1]
    %14 = vrot.lane.b32.xlu0 %v13, 96
    %v15 = vpop.permute.xlu0 %14
    %vm16 = vcmask 917248
    %17 = vst.msk [vmem:[#allocation0] sm:$0x1] %vm16, %v15
    %s18 = scalar_lea.vmem %s0, 5
    %v19 = vld [vmem:[%s18] sm:$0x1]
    %20 = vrot.lane.b32.xlu0 %v19, 80
    %v21 = vpop.permute.xlu0 %20
    %vm22 = vcmask 786048
    %23 = vst.msk [vmem:[#allocation0] sm:$0x1] %vm22, %v21
    %s24 = scalar_lea.vmem %s0, 4
    %v25 = vld [vmem:[%s24] sm:$0x1]
    %26 = vrot.lane.b32.xlu0 %v25, 64
    %v27 = vpop.permute.xlu0 %26
    %vm28 = vcmask 654848
    %29 = vst.msk [vmem:[#allocation0] sm:$0x1] %vm28, %v27
    %s30 = scalar_lea.vmem %s0, 3
    %v31 = vld [vmem:[%s30] sm:$0x1]
    %32 = vrot.lane.b32.xlu0 %v31, 48
    %v33 = vpop.permute.xlu0 %32
    %vm34 = vcmask 523648
    %35 = vst.msk [vmem:[#allocation0] sm:$0x1] %vm34, %v33
    %s36 = scalar_lea.vmem %s0, 2
    %v37 = vld [vmem:[%s36] sm:$0x1]
    %38 = vrot.lane.b32.xlu0 %v37, 32
    %v39 = vpop.permute.xlu0 %38
    %vm40 = vcmask 392448
    %41 = vst.msk [vmem:[#allocation0] sm:$0x1] %vm40, %v39
    %s42 = scalar_lea.vmem %s0, 1
    %s43 = smov 3
    %v44 = vld [vmem:[%s42] ss:$8 sm:%s43]
    %45 = vrot.lane.b32.xlu0 %v44, 16
    %v46 = vpop.permute.xlu0 %45
    %vm47 = vcmask 261248
    %48 = vst.msk [vmem:[#allocation0] ss:$8 sm:$0x3] %vm47, %v46
    %s50 = ssub.s32 2, 1
    %v51 = vld [vmem:[#allocation0] sm:%s50]
    %s53 = ssub.s32 2, 1
    %54 = vst [vmem:[%s1] sm:%s53] %v51
    %s55 = scalar_lea.vmem [#allocation0], 8
    %v56 = vld [vmem:[%s55] sm:%s50]
    %s58 = ssub.s32 2, 1
    %s59 = scalar_lea.vmem %s1, 1
    %60 = vst [vmem:[%s59] sm:%s58] %v56

// kernel: _lambda_.1
$region0: #{_lambda_.1}
  #allocation0 [shape = 'u32[]', space=smem, size = 0x4, offset = 0x4, fixed_abs, tag = 'smem constant byte address 0x4 - core index']
  #allocation1 [shape = 'u32[72,128]{1,0:T(1,128)}', space=vmem, size = 0x9000, scoped, tag = 'internal scratch']
  #allocation2 [shape = 'f32[256,84]{1,0:T(8,128)}', space=vmem, size = 0x20000, scoped, tag = 'scratch operand']
  #allocation3 [shape = 'f32[136,84]{1,0:T(8,128)}', space=vmem, size = 0x11000, scoped, tag = 'scratch operand']
  #allocation4 [shape = 'f32[128,80]{1,0:T(8,128)}', space=vmem, size = 0x10000, scoped, tag = 'scratch operand']
  #allocation5 [shape = 'f32[72,80]{1,0:T(8,128)}', space=vmem, size = 0x9000, scoped, tag = 'scratch operand']
  %s0 = inlined_call_operand.vmem [shape: f32[272,96], index: 0, kind: input, shape index: {}]
  %s1 = inlined_call_operand.vmem [shape: bf16[480,168], index: 1, kind: input, shape index: {}]
  %s2 = inlined_call_operand.vmem [shape: f32[1,168], index: 2, kind: input, shape index: {}]
  %s3 = inlined_call_operand.vmem [shape: bf16[420,160], index: 3, kind: input, shape index: {}]
  %s4 = inlined_call_operand.vmem [shape: f32[1,160], index: 4, kind: input, shape index: {}]
  %s5 = inlined_call_operand.vmem [shape: bf16[400,32], index: 5, kind: input, shape index: {}]
  %s6 = inlined_call_operand.vmem [shape: f32[1,32], index: 6, kind: input, shape index: {}]
  %s7 = inlined_call_operand.vmem [shape: bf16[32,10], index: 7, kind: input, shape index: {}]
  %s8 = inlined_call_operand.vmem [shape: f32[1,10], index: 8, kind: input, shape index: {}]
  %s9 = inlined_call_operand.vmem [shape: f32[8,10], index: 9, kind: output, shape index: {}]
  %s10 = sld [smem:[#allocation0]]
  $region46: #{_lambda_.1} parent=0
    _
  %s12 = ssub.s32 1, %s10
  %s13 = scalar_select 0, %s12, %s10
  // Predicated region
  $region2: #{_lambda_.1} parent=0 // pred_check
    _
  $region3: #{_lambda_.1} parent=0 // pred_check_branch
    %15 = sbr.rel (0) target = $region5
  $region4: #{_lambda_.1} parent=0 // pred_region
    _
  $region5: #{_lambda_.1} parent=0 // pred_fallthru
    _
  // Predicated region
  $region6: #{_lambda_.1} parent=0 // pred_check
    _
  $region7: #{_lambda_.1} parent=0 // pred_check_branch
    %17 = sbr.rel (0) target = $region9
  $region8: #{_lambda_.1} parent=0 // pred_region
    _
  $region9: #{_lambda_.1} parent=0 // pred_fallthru
    _
  // Predicated region
  $region10: #{_lambda_.1} parent=0 // pred_check
    _
  $region11: #{_lambda_.1} parent=0 // pred_check_branch
    %19 = sbr.rel (0) target = $region13
  $region12: #{_lambda_.1} parent=0 // pred_region
    _
  $region13: #{_lambda_.1} parent=0 // pred_fallthru
    _
  // Predicated region
  $region14: #{_lambda_.1} parent=0 // pred_check
    _
  $region15: #{_lambda_.1} parent=0 // pred_check_branch
    %21 = sbr.rel (0) target = $region17
  $region16: #{_lambda_.1} parent=0 // pred_region
    _
  $region17: #{_lambda_.1} parent=0 // pred_fallthru
    _
  // Predicated region
  $region18: #{_lambda_.1} parent=0 // pred_check
    _
  $region19: #{_lambda_.1} parent=0 // pred_check_branch
    %23 = sbr.rel (0) target = $region21
  $region20: #{_lambda_.1} parent=0 // pred_region
    _
  $region21: #{_lambda_.1} parent=0 // pred_fallthru
    _
  // Predicated region
  $region22: #{_lambda_.1} parent=0 // pred_check
    _
  $region23: #{_lambda_.1} parent=0 // pred_check_branch
    %25 = sbr.rel (0) target = $region25
  $region24: #{_lambda_.1} parent=0 // pred_region
    _
  $region25: #{_lambda_.1} parent=0 // pred_fallthru
    _
  // Predicated region
  $region26: #{_lambda_.1} parent=0 // pred_check
    _
  $region27: #{_lambda_.1} parent=0 // pred_check_branch
    %27 = sbr.rel (0) target = $region29
  $region28: #{_lambda_.1} parent=0 // pred_region
    _
  $region29: #{_lambda_.1} parent=0 // pred_fallthru
    _
  // Predicated region
  $region30: #{_lambda_.1} parent=0 // pred_check
    _
  $region31: #{_lambda_.1} parent=0 // pred_check_branch
    %29 = sbr.rel (0) target = $region33
  $region32: #{_lambda_.1} parent=0 // pred_region
    _
  $region33: #{_lambda_.1} parent=0 // pred_fallthru
    _
  // Predicated region
  $region34: #{_lambda_.1} parent=0 // pred_check
    _
  $region35: #{_lambda_.1} parent=0 // pred_check_branch
    %31 = sbr.rel (0) target = $region37
  $region36: #{_lambda_.1} parent=0 // pred_region
    _
  $region37: #{_lambda_.1} parent=0 // pred_fallthru
    _
  %v33 = vld [vmem:[%s0] sm:$0xff]
  %v34 = vld [vmem:[%s0 + $0x8] sm:$0xff]
  %v35 = vld [vmem:[%s0 + $0x10] sm:$0xff]
  %v36 = vld [vmem:[%s0 + $0x18] sm:$0xff]
  %v37 = vld [vmem:[%s0 + $0x20] sm:$0xff]
  %v38 = vld [vmem:[%s0 + $0x28] sm:$0xff]
  %v39 = vld [vmem:[%s0 + $0x30] sm:$0xff]
  %v40 = vld [vmem:[%s0 + $0x38] sm:$0xff]
  %v41 = vld [vmem:[%s0 + $0x40] sm:$0xff]
  %v42 = vld [vmem:[%s0 + $0x48] sm:$0xff]
  %v43 = vld [vmem:[%s0 + $0x50] sm:$0xff]
  %v44 = vld [vmem:[%s0 + $0x58] sm:$0xff]
  %v45 = vld [vmem:[%s0 + $0x60] sm:$0xff]
  %v46 = vld [vmem:[%s0 + $0x68] sm:$0xff]
  %v47 = vld [vmem:[%s0 + $0x70] sm:$0xff]
  %v48 = vld [vmem:[%s0 + $0x78] sm:$0xff]
  %v49 = vld [vmem:[%s0 + $0x80] sm:$0xff]
  %v50 = vld [vmem:[%s0 + $0x88] sm:$0xff]
  %v51 = vld [vmem:[%s0 + $0x90] sm:$0xff]
  %v52 = vld [vmem:[%s0 + $0x98] sm:$0xff]
  %v53 = vld [vmem:[%s0 + $0xa0] sm:$0xff]
  %v54 = vld [vmem:[%s0 + $0xa8] sm:$0xff]
  %v55 = vld [vmem:[%s0 + $0xb0] sm:$0xff]
  %v56 = vld [vmem:[%s0 + $0xb8] sm:$0xff]
  %v57 = vld [vmem:[%s0 + $0xc0] sm:$0xff]
  %v58 = vld [vmem:[%s0 + $0xc8] sm:$0xff]
  %v59 = vld [vmem:[%s0 + $0xd0] sm:$0xff]
  %v60 = vld [vmem:[%s0 + $0xd8] sm:$0xff]
  %v61 = vld [vmem:[%s0 + $0xe0] sm:$0xff]
  %v62 = vld [vmem:[%s0 + $0xe8] sm:$0xff]
  %v63 = vld [vmem:[%s0 + $0xf0] sm:$0xff]
  %v64 = vld [vmem:[%s0 + $0xf8] sm:$0xff]
  %v65 = vpack.c.bf16 %v34, %v33
  %v66 = vpack.c.bf16 %v36, %v35
  %v67 = vpack.c.bf16 %v38, %v37
  %v68 = vpack.c.bf16 %v40, %v39
  %v69 = vpack.c.bf16 %v42, %v41
  %v70 = vpack.c.bf16 %v44, %v43
  %v71 = vpack.c.bf16 %v46, %v45
  %v72 = vpack.c.bf16 %v48, %v47
  %v73 = vpack.c.bf16 %v50, %v49
  %v74 = vpack.c.bf16 %v52, %v51
  %v75 = vpack.c.bf16 %v54, %v53
  %v76 = vpack.c.bf16 %v56, %v55
  %v77 = vpack.c.bf16 %v58, %v57
  %v78 = vpack.c.bf16 %v60, %v59
  %v79 = vpack.c.bf16 %v62, %v61
  %v80 = vpack.c.bf16 %v64, %v63
  %v81 = vld [vmem:[%s1] sm:$0xff]
  %v82 = vld [vmem:[%s1 + $0x8] sm:$0xff]
  %v83 = vld [vmem:[%s1 + $0x10] sm:$0xff]
  %v84 = vld [vmem:[%s1 + $0x18] sm:$0xff]
  %v85 = vld [vmem:[%s1 + $0x20] sm:$0xff]
  %v86 = vld [vmem:[%s1 + $0x28] sm:$0xff]
  %v87 = vld [vmem:[%s1 + $0x30] sm:$0xff]
  %v88 = vld [vmem:[%s1 + $0x38] sm:$0xff]
  %v89 = vld [vmem:[%s1 + $0x40] sm:$0xff]
  %v90 = vld [vmem:[%s1 + $0x48] sm:$0xff]
  %v91 = vld [vmem:[%s1 + $0x50] sm:$0xff]
  %v92 = vld [vmem:[%s1 + $0x58] sm:$0xff]
  %v93 = vld [vmem:[%s0 + $0x1] sm:$0xff]
  %v94 = vld [vmem:[%s0 + $0x9] sm:$0xff]
  %v95 = vld [vmem:[%s0 + $0x11] sm:$0xff]
  %v96 = vld [vmem:[%s0 + $0x19] sm:$0xff]
  %v97 = vld [vmem:[%s0 + $0x21] sm:$0xff]
  %v98 = vld [vmem:[%s0 + $0x29] sm:$0xff]
  %v99 = vld [vmem:[%s0 + $0x31] sm:$0xff]
  %v100 = vld [vmem:[%s0 + $0x39] sm:$0xff]
  %v101 = vld [vmem:[%s0 + $0x41] sm:$0xff]
  %v102 = vld [vmem:[%s0 + $0x49] sm:$0xff]
  %v103 = vld [vmem:[%s0 + $0x51] sm:$0xff]
  %v104 = vld [vmem:[%s0 + $0x59] sm:$0xff]
  %v105 = vld [vmem:[%s0 + $0x61] sm:$0xff]
  %v106 = vld [vmem:[%s0 + $0x69] sm:$0xff]
  %v107 = vld [vmem:[%s0 + $0x71] sm:$0xff]
  %v108 = vld [vmem:[%s0 + $0x79] sm:$0xff]
  %v109 = vld [vmem:[%s0 + $0x81] sm:$0xff]
  %v110 = vld [vmem:[%s0 + $0x89] sm:$0xff]
  %v111 = vld [vmem:[%s0 + $0x91] sm:$0xff]
  %v112 = vld [vmem:[%s0 + $0x99] sm:$0xff]
  %v113 = vld [vmem:[%s0 + $0xa1] sm:$0xff]
  %v114 = vld [vmem:[%s0 + $0xa9] sm:$0xff]
  %v115 = vld [vmem:[%s0 + $0xb1] sm:$0xff]
  %v116 = vld [vmem:[%s0 + $0xb9] sm:$0xff]
  %v117 = vld [vmem:[%s0 + $0xc1] sm:$0xff]
  %v118 = vld [vmem:[%s0 + $0xc9] sm:$0xff]
  %v119 = vld [vmem:[%s0 + $0xd1] sm:$0xff]
  %v120 = vld [vmem:[%s0 + $0xd9] sm:$0xff]
  %v121 = vld [vmem:[%s0 + $0xe1] sm:$0xff]
  %v122 = vld [vmem:[%s0 + $0xe9] sm:$0xff]
  %v123 = vld [vmem:[%s0 + $0xf1] sm:$0xff]
  %v124 = vld [vmem:[%s0 + $0xf9] sm:$0xff]
  %v125 = vpack.c.bf16 %v94, %v93
  %v126 = vpack.c.bf16 %v96, %v95
  %v127 = vpack.c.bf16 %v98, %v97
  %v128 = vpack.c.bf16 %v100, %v99
  %v129 = vpack.c.bf16 %v102, %v101
  %v130 = vpack.c.bf16 %v104, %v103
  %v131 = vpack.c.bf16 %v106, %v105
  %v132 = vpack.c.bf16 %v108, %v107
  %v133 = vpack.c.bf16 %v110, %v109
  %v134 = vpack.c.bf16 %v112, %v111
  %v135 = vpack.c.bf16 %v114, %v113
  %v136 = vpack.c.bf16 %v116, %v115
  %v137 = vpack.c.bf16 %v118, %v117
  %v138 = vpack.c.bf16 %v120, %v119
  %v139 = vpack.c.bf16 %v122, %v121
  %v140 = vpack.c.bf16 %v124, %v123
  %v141 = vld [vmem:[%s1 + $0x60] sm:$0xff]
  %v142 = vld [vmem:[%s1 + $0x68] sm:$0xff]
  %v143 = vld [vmem:[%s1 + $0x70] sm:$0xff]
  %v144 = vld [vmem:[%s1 + $0x78] sm:$0xff]
  %v145 = vld [vmem:[%s1 + $0x80] sm:$0xff]
  %v146 = vld [vmem:[%s1 + $0x88] sm:$0xff]
  %v147 = vld [vmem:[%s1 + $0x90] sm:$0xff]
  %v148 = vld [vmem:[%s1 + $0x98] sm:$0xff]
  %v149 = vld [vmem:[%s1 + $0xa0] sm:$0xff]
  %v150 = vld [vmem:[%s1 + $0xa8] sm:$0xff]
  %v151 = vld [vmem:[%s1 + $0xb0] sm:$0xff]
  %v152 = vld [vmem:[%s1 + $0xb8] sm:$0xff]
  %v165 = vunpack.c.l.b16 %v141
  %v166 = vunpack.c.h.b16 %v141
  %v167 = vunpack.c.l.b16 %v142
  %v168 = vunpack.c.h.b16 %v142
  %v169 = vunpack.c.l.b16 %v143
  %v170 = vunpack.c.h.b16 %v143
  %v171 = vunpack.c.l.b16 %v144
  %v172 = vunpack.c.h.b16 %v144
  %v173 = vunpack.c.l.b16 %v145
  %v174 = vunpack.c.h.b16 %v145
  %v175 = vunpack.c.l.b16 %v146
  %v176 = vunpack.c.h.b16 %v146
  %v177 = vunpack.c.l.b16 %v147
  %v178 = vunpack.c.h.b16 %v147
  %v179 = vunpack.c.l.b16 %v148
  %v180 = vunpack.c.h.b16 %v148
  %v181 = vunpack.c.l.b16 %v149
  %v182 = vunpack.c.h.b16 %v149
  %v183 = vunpack.c.l.b16 %v150
  %v184 = vunpack.c.h.b16 %v150
  %v185 = vunpack.c.l.b16 %v151
  %v186 = vunpack.c.h.b16 %v151
  %v187 = vunpack.c.l.b16 %v152
  %v188 = vunpack.c.h.b16 %v152
  %v189 = vpack.c.b16 %v167, %v165
  %v190 = vpack.c.b16 %v168, %v166
  %v191 = vpack.c.b16 %v171, %v169
  %v192 = vpack.c.b16 %v172, %v170
  %v193 = vpack.c.b16 %v175, %v173
  %v194 = vpack.c.b16 %v176, %v174
  %v195 = vpack.c.b16 %v179, %v177
  %v196 = vpack.c.b16 %v180, %v178
  %v197 = vpack.c.b16 %v183, %v181
  %v198 = vpack.c.b16 %v184, %v182
  %v199 = vpack.c.b16 %v187, %v185
  %v200 = vpack.c.b16 %v188, %v186
  %vm213 = vcmask 785408
  %v215 = vsel %vm213, %v125, 0
  %v218 = vsel %vm213, %v126, 0
  %v221 = vsel %vm213, %v127, 0
  %v224 = vsel %vm213, %v128, 0
  %v227 = vsel %vm213, %v129, 0
  %v230 = vsel %vm213, %v130, 0
  %v233 = vsel %vm213, %v131, 0
  %v236 = vsel %vm213, %v132, 0
  %v239 = vsel %vm213, %v133, 0
  %v242 = vsel %vm213, %v134, 0
  %v245 = vsel %vm213, %v135, 0
  %v248 = vsel %vm213, %v136, 0
  %v251 = vsel %vm213, %v137, 0
  %v254 = vsel %vm213, %v138, 0
  %v257 = vsel %vm213, %v139, 0
  %v260 = vsel %vm213, %v140, 0
  %262 = vmatpush.bf16.msra.mxu0 0
  %263 = vmatpush.bf16.msra.mxu0 0
  %264 = vmatpush.bf16.msra.mxu0 %v199
  %265 = vmatpush.bf16.msra.mxu0 %v197
  %266 = vmatpush.bf16.msra.mxu0 %v195
  %267 = vmatpush.bf16.msra.mxu0 %v193
  %268 = vmatpush.bf16.msra.mxu0 %v191
  %269 = vmatpush.bf16.msra.mxu0 %v189
  %270 = vmatmul.bf16.gmra.mxu0 %v215
  %v271 = vpop.f32.mrf.mxu0
  %v272 = vadd.f32 0.0, %v271
  %v273 = vpop.f32.mrf.mxu0
  %v274 = vadd.f32 0.0, %v273
  %275 = vmatmul.bf16.gmra.mxu0 %v218
  %v276 = vpop.f32.mrf.mxu0
  %v277 = vadd.f32 0.0, %v276
  %v278 = vpop.f32.mrf.mxu0
  %v279 = vadd.f32 0.0, %v278
  %280 = vmatmul.bf16.gmra.mxu0 %v221
  %v281 = vpop.f32.mrf.mxu0
  %v282 = vadd.f32 0.0, %v281
  %v283 = vpop.f32.mrf.mxu0
  %v284 = vadd.f32 0.0, %v283
  %285 = vmatmul.bf16.gmra.mxu0 %v224
  %v286 = vpop.f32.mrf.mxu0
  %v287 = vadd.f32 0.0, %v286
  %v288 = vpop.f32.mrf.mxu0
  %v289 = vadd.f32 0.0, %v288
  %290 = vmatmul.bf16.gmra.mxu0 %v227
  %v291 = vpop.f32.mrf.mxu0
  %v292 = vadd.f32 0.0, %v291
  %v293 = vpop.f32.mrf.mxu0
  %v294 = vadd.f32 0.0, %v293
  %295 = vmatmul.bf16.gmra.mxu0 %v230
  %v296 = vpop.f32.mrf.mxu0
  %v297 = vadd.f32 0.0, %v296
  %v298 = vpop.f32.mrf.mxu0
  %v299 = vadd.f32 0.0, %v298
  %300 = vmatmul.bf16.gmra.mxu0 %v233
  %v301 = vpop.f32.mrf.mxu0
  %v302 = vadd.f32 0.0, %v301
  %v303 = vpop.f32.mrf.mxu0
  %v304 = vadd.f32 0.0, %v303
  %305 = vmatmul.bf16.gmra.mxu0 %v236
  %v306 = vpop.f32.mrf.mxu0
  %v307 = vadd.f32 0.0, %v306
  %v308 = vpop.f32.mrf.mxu0
  %v309 = vadd.f32 0.0, %v308
  %310 = vmatmul.bf16.gmra.mxu0 %v239
  %v311 = vpop.f32.mrf.mxu0
  %v312 = vadd.f32 0.0, %v311
  %v313 = vpop.f32.mrf.mxu0
  %v314 = vadd.f32 0.0, %v313
  %315 = vmatmul.bf16.gmra.mxu0 %v242
  %v316 = vpop.f32.mrf.mxu0
  %v317 = vadd.f32 0.0, %v316
  %v318 = vpop.f32.mrf.mxu0
  %v319 = vadd.f32 0.0, %v318
  %320 = vmatmul.bf16.gmra.mxu0 %v245
  %v321 = vpop.f32.mrf.mxu0
  %v322 = vadd.f32 0.0, %v321
  %v323 = vpop.f32.mrf.mxu0
  %v324 = vadd.f32 0.0, %v323
  %325 = vmatmul.bf16.gmra.mxu0 %v248
  %v326 = vpop.f32.mrf.mxu0
  %v327 = vadd.f32 0.0, %v326
  %v328 = vpop.f32.mrf.mxu0
  %v329 = vadd.f32 0.0, %v328
  %330 = vmatmul.bf16.gmra.mxu0 %v251
  %v331 = vpop.f32.mrf.mxu0
  %v332 = vadd.f32 0.0, %v331
  %v333 = vpop.f32.mrf.mxu0
  %v334 = vadd.f32 0.0, %v333
  %335 = vmatmul.bf16.gmra.mxu0 %v254
  %v336 = vpop.f32.mrf.mxu0
  %v337 = vadd.f32 0.0, %v336
  %v338 = vpop.f32.mrf.mxu0
  %v339 = vadd.f32 0.0, %v338
  %340 = vmatmul.bf16.gmra.mxu0 %v257
  %v341 = vpop.f32.mrf.mxu0
  %v342 = vadd.f32 0.0, %v341
  %v343 = vpop.f32.mrf.mxu0
  %v344 = vadd.f32 0.0, %v343
  %345 = vmatmul.bf16.gmra.mxu0 %v260
  %v346 = vpop.f32.mrf.mxu0
  %v347 = vadd.f32 0.0, %v346
  %v348 = vpop.f32.mrf.mxu0
  %v349 = vadd.f32 0.0, %v348
  %350 = vdwg.mxu0
  %351 = vmatpush.bf16.msra.mxu0 0
  %352 = vmatpush.bf16.msra.mxu0 0
  %353 = vmatpush.bf16.msra.mxu0 %v200
  %354 = vmatpush.bf16.msra.mxu0 %v198
  %355 = vmatpush.bf16.msra.mxu0 %v196
  %356 = vmatpush.bf16.msra.mxu0 %v194
  %357 = vmatpush.bf16.msra.mxu0 %v192
  %358 = vmatpush.bf16.msra.mxu0 %v190
  %359 = vmatmul.bf16.gmra.mxu0 %v215
  %v360 = vpop.f32.mrf.mxu0
  %v361 = vadd.f32 0.0, %v360
  %v362 = vpop.f32.mrf.mxu0
  %v363 = vadd.f32 0.0, %v362
  %364 = vmatmul.bf16.gmra.mxu0 %v218
  %v365 = vpop.f32.mrf.mxu0
  %v366 = vadd.f32 0.0, %v365
  %v367 = vpop.f32.mrf.mxu0
  %v368 = vadd.f32 0.0, %v367
  %369 = vmatmul.bf16.gmra.mxu0 %v221
  %v370 = vpop.f32.mrf.mxu0
  %v371 = vadd.f32 0.0, %v370
  %v372 = vpop.f32.mrf.mxu0
  %v373 = vadd.f32 0.0, %v372
  %374 = vmatmul.bf16.gmra.mxu0 %v224
  %v375 = vpop.f32.mrf.mxu0
  %v376 = vadd.f32 0.0, %v375
  %v377 = vpop.f32.mrf.mxu0
  %v378 = vadd.f32 0.0, %v377
  %379 = vmatmul.bf16.gmra.mxu0 %v227
  %v380 = vpop.f32.mrf.mxu0
  %v381 = vadd.f32 0.0, %v380
  %v382 = vpop.f32.mrf.mxu0
  %v383 = vadd.f32 0.0, %v382
  %384 = vmatmul.bf16.gmra.mxu0 %v230
  %v385 = vpop.f32.mrf.mxu0
  %v386 = vadd.f32 0.0, %v385
  %v387 = vpop.f32.mrf.mxu0
  %v388 = vadd.f32 0.0, %v387
  %389 = vmatmul.bf16.gmra.mxu0 %v233
  %v390 = vpop.f32.mrf.mxu0
  %v391 = vadd.f32 0.0, %v390
  %v392 = vpop.f32.mrf.mxu0
  %v393 = vadd.f32 0.0, %v392
  %394 = vmatmul.bf16.gmra.mxu0 %v236
  %v395 = vpop.f32.mrf.mxu0
  %v396 = vadd.f32 0.0, %v395
  %v397 = vpop.f32.mrf.mxu0
  %v398 = vadd.f32 0.0, %v397
  %399 = vmatmul.bf16.gmra.mxu0 %v239
  %v400 = vpop.f32.mrf.mxu0
  %v401 = vadd.f32 0.0, %v400
  %v402 = vpop.f32.mrf.mxu0
  %v403 = vadd.f32 0.0, %v402
  %404 = vmatmul.bf16.gmra.mxu0 %v242
  %v405 = vpop.f32.mrf.mxu0
  %v406 = vadd.f32 0.0, %v405
  %v407 = vpop.f32.mrf.mxu0
  %v408 = vadd.f32 0.0, %v407
  %409 = vmatmul.bf16.gmra.mxu0 %v245
  %v410 = vpop.f32.mrf.mxu0
  %v411 = vadd.f32 0.0, %v410
  %v412 = vpop.f32.mrf.mxu0
  %v413 = vadd.f32 0.0, %v412
  %414 = vmatmul.bf16.gmra.mxu0 %v248
  %v415 = vpop.f32.mrf.mxu0
  %v416 = vadd.f32 0.0, %v415
  %v417 = vpop.f32.mrf.mxu0
  %v418 = vadd.f32 0.0, %v417
  %419 = vmatmul.bf16.gmra.mxu0 %v251
  %v420 = vpop.f32.mrf.mxu0
  %v421 = vadd.f32 0.0, %v420
  %v422 = vpop.f32.mrf.mxu0
  %v423 = vadd.f32 0.0, %v422
  %424 = vmatmul.bf16.gmra.mxu0 %v254
  %v425 = vpop.f32.mrf.mxu0
  %v426 = vadd.f32 0.0, %v425
  %v427 = vpop.f32.mrf.mxu0
  %v428 = vadd.f32 0.0, %v427
  %429 = vmatmul.bf16.gmra.mxu0 %v257
  %v430 = vpop.f32.mrf.mxu0
  %v431 = vadd.f32 0.0, %v430
  %v432 = vpop.f32.mrf.mxu0
  %v433 = vadd.f32 0.0, %v432
  %434 = vmatmul.bf16.gmra.mxu0 %v260
  %v435 = vpop.f32.mrf.mxu0
  %v436 = vadd.f32 0.0, %v435
  %v437 = vpop.f32.mrf.mxu0
  %v438 = vadd.f32 0.0, %v437
  %439 = vdwg.mxu0
  %v452 = vunpack.c.l.b16 %v81
  %v453 = vunpack.c.h.b16 %v81
  %v454 = vunpack.c.l.b16 %v82
  %v455 = vunpack.c.h.b16 %v82
  %v456 = vunpack.c.l.b16 %v83
  %v457 = vunpack.c.h.b16 %v83
  %v458 = vunpack.c.l.b16 %v84
  %v459 = vunpack.c.h.b16 %v84
  %v460 = vunpack.c.l.b16 %v85
  %v461 = vunpack.c.h.b16 %v85
  %v462 = vunpack.c.l.b16 %v86
  %v463 = vunpack.c.h.b16 %v86
  %v464 = vunpack.c.l.b16 %v87
  %v465 = vunpack.c.h.b16 %v87
  %v466 = vunpack.c.l.b16 %v88
  %v467 = vunpack.c.h.b16 %v88
  %v468 = vunpack.c.l.b16 %v89
  %v469 = vunpack.c.h.b16 %v89
  %v470 = vunpack.c.l.b16 %v90
  %v471 = vunpack.c.h.b16 %v90
  %v472 = vunpack.c.l.b16 %v91
  %v473 = vunpack.c.h.b16 %v91
  %v474 = vunpack.c.l.b16 %v92
  %v475 = vunpack.c.h.b16 %v92
  %v476 = vpack.c.b16 %v454, %v452
  %v477 = vpack.c.b16 %v455, %v453
  %v478 = vpack.c.b16 %v458, %v456
  %v479 = vpack.c.b16 %v459, %v457
  %v480 = vpack.c.b16 %v462, %v460
  %v481 = vpack.c.b16 %v463, %v461
  %v482 = vpack.c.b16 %v466, %v464
  %v483 = vpack.c.b16 %v467, %v465
  %v484 = vpack.c.b16 %v470, %v468
  %v485 = vpack.c.b16 %v471, %v469
  %v486 = vpack.c.b16 %v474, %v472
  %v487 = vpack.c.b16 %v475, %v473
  %v501 = vsel %vm213, %v65, 0
  %v504 = vsel %vm213, %v66, 0
  %v507 = vsel %vm213, %v67, 0
  %v510 = vsel %vm213, %v68, 0
  %v513 = vsel %vm213, %v69, 0
  %v516 = vsel %vm213, %v70, 0
  %v519 = vsel %vm213, %v71, 0
  %v522 = vsel %vm213, %v72, 0
  %v525 = vsel %vm213, %v73, 0
  %v528 = vsel %vm213, %v74, 0
  %v531 = vsel %vm213, %v75, 0
  %v534 = vsel %vm213, %v76, 0
  %v537 = vsel %vm213, %v77, 0
  %v540 = vsel %vm213, %v78, 0
  %v543 = vsel %vm213, %v79, 0
  %v546 = vsel %vm213, %v80, 0
  %548 = vmatpush.bf16.msra.mxu0 0
  %549 = vmatpush.bf16.msra.mxu0 0
  %550 = vmatpush.bf16.msra.mxu0 %v486
  %551 = vmatpush.bf16.msra.mxu0 %v484
  %552 = vmatpush.bf16.msra.mxu0 %v482
  %553 = vmatpush.bf16.msra.mxu0 %v480
  %554 = vmatpush.bf16.msra.mxu0 %v478
  %555 = vmatpush.bf16.msra.mxu0 %v476
  %556 = vmatmul.bf16.gmra.mxu0 %v501
  %v557 = vpop.f32.mrf.mxu0
  %v558 = vadd.f32 %v272, %v557
  %v559 = vpop.f32.mrf.mxu0
  %v560 = vadd.f32 %v274, %v559
  %561 = vmatmul.bf16.gmra.mxu0 %v504
  %v562 = vpop.f32.mrf.mxu0
  %v563 = vadd.f32 %v277, %v562
  %v564 = vpop.f32.mrf.mxu0
  %v565 = vadd.f32 %v279, %v564
  %566 = vmatmul.bf16.gmra.mxu0 %v507
  %v567 = vpop.f32.mrf.mxu0
  %v568 = vadd.f32 %v282, %v567
  %v569 = vpop.f32.mrf.mxu0
  %v570 = vadd.f32 %v284, %v569
  %571 = vmatmul.bf16.gmra.mxu0 %v510
  %v572 = vpop.f32.mrf.mxu0
  %v573 = vadd.f32 %v287, %v572
  %v574 = vpop.f32.mrf.mxu0
  %v575 = vadd.f32 %v289, %v574
  %576 = vmatmul.bf16.gmra.mxu0 %v513
  %v577 = vpop.f32.mrf.mxu0
  %v578 = vadd.f32 %v292, %v577
  %v579 = vpop.f32.mrf.mxu0
  %v580 = vadd.f32 %v294, %v579
  %581 = vmatmul.bf16.gmra.mxu0 %v516
  %v582 = vpop.f32.mrf.mxu0
  %v583 = vadd.f32 %v297, %v582
  %v584 = vpop.f32.mrf.mxu0
  %v585 = vadd.f32 %v299, %v584
  %586 = vmatmul.bf16.gmra.mxu0 %v519
  %v587 = vpop.f32.mrf.mxu0
  %v588 = vadd.f32 %v302, %v587
  %v589 = vpop.f32.mrf.mxu0
  %v590 = vadd.f32 %v304, %v589
  %591 = vmatmul.bf16.gmra.mxu0 %v522
  %v592 = vpop.f32.mrf.mxu0
  %v593 = vadd.f32 %v307, %v592
  %v594 = vpop.f32.mrf.mxu0
  %v595 = vadd.f32 %v309, %v594
  %596 = vmatmul.bf16.gmra.mxu0 %v525
  %v597 = vpop.f32.mrf.mxu0
  %v598 = vadd.f32 %v312, %v597
  %v599 = vpop.f32.mrf.mxu0
  %v600 = vadd.f32 %v314, %v599
  %601 = vmatmul.bf16.gmra.mxu0 %v528
  %v602 = vpop.f32.mrf.mxu0
  %v603 = vadd.f32 %v317, %v602
  %v604 = vpop.f32.mrf.mxu0
  %v605 = vadd.f32 %v319, %v604
  %606 = vmatmul.bf16.gmra.mxu0 %v531
  %v607 = vpop.f32.mrf.mxu0
  %v608 = vadd.f32 %v322, %v607
  %v609 = vpop.f32.mrf.mxu0
  %v610 = vadd.f32 %v324, %v609
  %611 = vmatmul.bf16.gmra.mxu0 %v534
  %v612 = vpop.f32.mrf.mxu0
  %v613 = vadd.f32 %v327, %v612
  %v614 = vpop.f32.mrf.mxu0
  %v615 = vadd.f32 %v329, %v614
  %616 = vmatmul.bf16.gmra.mxu0 %v537
  %v617 = vpop.f32.mrf.mxu0
  %v618 = vadd.f32 %v332, %v617
  %v619 = vpop.f32.mrf.mxu0
  %v620 = vadd.f32 %v334, %v619
  %621 = vmatmul.bf16.gmra.mxu0 %v540
  %v622 = vpop.f32.mrf.mxu0
  %v623 = vadd.f32 %v337, %v622
  %v624 = vpop.f32.mrf.mxu0
  %v625 = vadd.f32 %v339, %v624
  %626 = vmatmul.bf16.gmra.mxu0 %v543
  %v627 = vpop.f32.mrf.mxu0
  %v628 = vadd.f32 %v342, %v627
  %v629 = vpop.f32.mrf.mxu0
  %v630 = vadd.f32 %v344, %v629
  %631 = vmatmul.bf16.gmra.mxu0 %v546
  %v632 = vpop.f32.mrf.mxu0
  %v633 = vadd.f32 %v347, %v632
  %v634 = vpop.f32.mrf.mxu0
  %v635 = vadd.f32 %v349, %v634
  %636 = vdwg.mxu0
  %637 = vmatpush.bf16.msra.mxu0 0
  %638 = vmatpush.bf16.msra.mxu0 0
  %639 = vmatpush.bf16.msra.mxu0 %v487
  %640 = vmatpush.bf16.msra.mxu0 %v485
  %641 = vmatpush.bf16.msra.mxu0 %v483
  %642 = vmatpush.bf16.msra.mxu0 %v481
  %643 = vmatpush.bf16.msra.mxu0 %v479
  %644 = vmatpush.bf16.msra.mxu0 %v477
  %645 = vmatmul.bf16.gmra.mxu0 %v501
  %v646 = vpop.f32.mrf.mxu0
  %v647 = vadd.f32 %v361, %v646
  %v648 = vpop.f32.mrf.mxu0
  %v649 = vadd.f32 %v363, %v648
  %650 = vmatmul.bf16.gmra.mxu0 %v504
  %v651 = vpop.f32.mrf.mxu0
  %v652 = vadd.f32 %v366, %v651
  %v653 = vpop.f32.mrf.mxu0
  %v654 = vadd.f32 %v368, %v653
  %655 = vmatmul.bf16.gmra.mxu0 %v507
  %v656 = vpop.f32.mrf.mxu0
  %v657 = vadd.f32 %v371, %v656
  %v658 = vpop.f32.mrf.mxu0
  %v659 = vadd.f32 %v373, %v658
  %660 = vmatmul.bf16.gmra.mxu0 %v510
  %v661 = vpop.f32.mrf.mxu0
  %v662 = vadd.f32 %v376, %v661
  %v663 = vpop.f32.mrf.mxu0
  %v664 = vadd.f32 %v378, %v663
  %665 = vmatmul.bf16.gmra.mxu0 %v513
  %v666 = vpop.f32.mrf.mxu0
  %v667 = vadd.f32 %v381, %v666
  %v668 = vpop.f32.mrf.mxu0
  %v669 = vadd.f32 %v383, %v668
  %670 = vmatmul.bf16.gmra.mxu0 %v516
  %v671 = vpop.f32.mrf.mxu0
  %v672 = vadd.f32 %v386, %v671
  %v673 = vpop.f32.mrf.mxu0
  %v674 = vadd.f32 %v388, %v673
  %675 = vmatmul.bf16.gmra.mxu0 %v519
  %v676 = vpop.f32.mrf.mxu0
  %v677 = vadd.f32 %v391, %v676
  %v678 = vpop.f32.mrf.mxu0
  %v679 = vadd.f32 %v393, %v678
  %680 = vmatmul.bf16.gmra.mxu0 %v522
  %v681 = vpop.f32.mrf.mxu0
  %v682 = vadd.f32 %v396, %v681
  %v683 = vpop.f32.mrf.mxu0
  %v684 = vadd.f32 %v398, %v683
  %685 = vmatmul.bf16.gmra.mxu0 %v525
  %v686 = vpop.f32.mrf.mxu0
  %v687 = vadd.f32 %v401, %v686
  %v688 = vpop.f32.mrf.mxu0
  %v689 = vadd.f32 %v403, %v688
  %690 = vmatmul.bf16.gmra.mxu0 %v528
  %v691 = vpop.f32.mrf.mxu0
  %v692 = vadd.f32 %v406, %v691
  %v693 = vpop.f32.mrf.mxu0
  %v694 = vadd.f32 %v408, %v693
  %695 = vmatmul.bf16.gmra.mxu0 %v531
  %v696 = vpop.f32.mrf.mxu0
  %v697 = vadd.f32 %v411, %v696
  %v698 = vpop.f32.mrf.mxu0
  %v699 = vadd.f32 %v413, %v698
  %700 = vmatmul.bf16.gmra.mxu0 %v534
  %v701 = vpop.f32.mrf.mxu0
  %v702 = vadd.f32 %v416, %v701
  %v703 = vpop.f32.mrf.mxu0
  %v704 = vadd.f32 %v418, %v703
  %705 = vmatmul.bf16.gmra.mxu0 %v537
  %v706 = vpop.f32.mrf.mxu0
  %v707 = vadd.f32 %v421, %v706
  %v708 = vpop.f32.mrf.mxu0
  %v709 = vadd.f32 %v423, %v708
  %710 = vmatmul.bf16.gmra.mxu0 %v540
  %v711 = vpop.f32.mrf.mxu0
  %v712 = vadd.f32 %v426, %v711
  %v713 = vpop.f32.mrf.mxu0
  %v714 = vadd.f32 %v428, %v713
  %715 = vmatmul.bf16.gmra.mxu0 %v543
  %v716 = vpop.f32.mrf.mxu0
  %v717 = vadd.f32 %v431, %v716
  %v718 = vpop.f32.mrf.mxu0
  %v719 = vadd.f32 %v433, %v718
  %720 = vmatmul.bf16.gmra.mxu0 %v546
  %v721 = vpop.f32.mrf.mxu0
  %v722 = vadd.f32 %v436, %v721
  %v723 = vpop.f32.mrf.mxu0
  %v724 = vadd.f32 %v438, %v723
  %725 = vdwg.mxu0
  %v726 = vld [vmem:[%s0 + $0x2] sm:$0xff]
  %v727 = vld [vmem:[%s0 + $0xa] sm:$0xff]
  %v728 = vld [vmem:[%s0 + $0x12] sm:$0xff]
  %v729 = vld [vmem:[%s0 + $0x1a] sm:$0xff]
  %v730 = vld [vmem:[%s0 + $0x22] sm:$0xff]
  %v731 = vld [vmem:[%s0 + $0x2a] sm:$0xff]
  %v732 = vld [vmem:[%s0 + $0x32] sm:$0xff]
  %v733 = vld [vmem:[%s0 + $0x3a] sm:$0xff]
  %v734 = vld [vmem:[%s0 + $0x42] sm:$0xff]
  %v735 = vld [vmem:[%s0 + $0x4a] sm:$0xff]
  %v736 = vld [vmem:[%s0 + $0x52] sm:$0xff]
  %v737 = vld [vmem:[%s0 + $0x5a] sm:$0xff]
  %v738 = vld [vmem:[%s0 + $0x62] sm:$0xff]
  %v739 = vld [vmem:[%s0 + $0x6a] sm:$0xff]
  %v740 = vld [vmem:[%s0 + $0x72] sm:$0xff]
  %v741 = vld [vmem:[%s0 + $0x7a] sm:$0xff]
  %v742 = vld [vmem:[%s0 + $0x82] sm:$0xff]
  %v743 = vld [vmem:[%s0 + $0x8a] sm:$0xff]
  %v744 = vld [vmem:[%s0 + $0x92] sm:$0xff]
  %v745 = vld [vmem:[%s0 + $0x9a] sm:$0xff]
  %v746 = vld [vmem:[%s0 + $0xa2] sm:$0xff]
  %v747 = vld [vmem:[%s0 + $0xaa] sm:$0xff]
  %v748 = vld [vmem:[%s0 + $0xb2] sm:$0xff]
  %v749 = vld [vmem:[%s0 + $0xba] sm:$0xff]
  %v750 = vld [vmem:[%s0 + $0xc2] sm:$0xff]
  %v751 = vld [vmem:[%s0 + $0xca] sm:$0xff]
  %v752 = vld [vmem:[%s0 + $0xd2] sm:$0xff]
  %v753 = vld [vmem:[%s0 + $0xda] sm:$0xff]
  %v754 = vld [vmem:[%s0 + $0xe2] sm:$0xff]
  %v755 = vld [vmem:[%s0 + $0xea] sm:$0xff]
  %v756 = vld [vmem:[%s0 + $0xf2] sm:$0xff]
  %v757 = vld [vmem:[%s0 + $0xfa] sm:$0xff]
  %v758 = vpack.c.bf16 %v727, %v726
  %v759 = vpack.c.bf16 %v729, %v728
  %v760 = vpack.c.bf16 %v731, %v730
  %v761 = vpack.c.bf16 %v733, %v732
  %v762 = vpack.c.bf16 %v735, %v734
  %v763 = vpack.c.bf16 %v737, %v736
  %v764 = vpack.c.bf16 %v739, %v738
  %v765 = vpack.c.bf16 %v741, %v740
  %v766 = vpack.c.bf16 %v743, %v742
  %v767 = vpack.c.bf16 %v745, %v744
  %v768 = vpack.c.bf16 %v747, %v746
  %v769 = vpack.c.bf16 %v749, %v748
  %v770 = vpack.c.bf16 %v751, %v750
  %v771 = vpack.c.bf16 %v753, %v752
  %v772 = vpack.c.bf16 %v755, %v754
  %v773 = vpack.c.bf16 %v757, %v756
  %v774 = vld [vmem:[%s1 + $0xc0] sm:$0xff]
  %v775 = vld [vmem:[%s1 + $0xc8] sm:$0xff]
  %v776 = vld [vmem:[%s1 + $0xd0] sm:$0xff]
  %v777 = vld [vmem:[%s1 + $0xd8] sm:$0xff]
  %v778 = vld [vmem:[%s1 + $0xe0] sm:$0xff]
  %v779 = vld [vmem:[%s1 + $0xe8] sm:$0xff]
  %v780 = vld [vmem:[%s1 + $0xf0] sm:$0xff]
  %v781 = vld [vmem:[%s1 + $0xf8] sm:$0xff]
  %v782 = vld [vmem:[%s1 + $0x100] sm:$0xff]
  %v783 = vld [vmem:[%s1 + $0x108] sm:$0xff]
  %v784 = vld [vmem:[%s1 + $0x110] sm:$0xff]
  %v785 = vld [vmem:[%s1 + $0x118] sm:$0xff]
  %v798 = vunpack.c.l.b16 %v774
  %v799 = vunpack.c.h.b16 %v774
  %v800 = vunpack.c.l.b16 %v775
  %v801 = vunpack.c.h.b16 %v775
  %v802 = vunpack.c.l.b16 %v776
  %v803 = vunpack.c.h.b16 %v776
  %v804 = vunpack.c.l.b16 %v777
  %v805 = vunpack.c.h.b16 %v777
  %v806 = vunpack.c.l.b16 %v778
  %v807 = vunpack.c.h.b16 %v778
  %v808 = vunpack.c.l.b16 %v779
  %v809 = vunpack.c.h.b16 %v779
  %v810 = vunpack.c.l.b16 %v780
  %v811 = vunpack.c.h.b16 %v780
  %v812 = vunpack.c.l.b16 %v781
  %v813 = vunpack.c.h.b16 %v781
  %v814 = vunpack.c.l.b16 %v782
  %v815 = vunpack.c.h.b16 %v782
  %v816 = vunpack.c.l.b16 %v783
  %v817 = vunpack.c.h.b16 %v783
  %v818 = vunpack.c.l.b16 %v784
  %v819 = vunpack.c.h.b16 %v784
  %v820 = vunpack.c.l.b16 %v785
  %v821 = vunpack.c.h.b16 %v785
  %v822 = vpack.c.b16 %v800, %v798
  %v823 = vpack.c.b16 %v801, %v799
  %v824 = vpack.c.b16 %v804, %v802
  %v825 = vpack.c.b16 %v805, %v803
  %v826 = vpack.c.b16 %v808, %v806
  %v827 = vpack.c.b16 %v809, %v807
  %v828 = vpack.c.b16 %v812, %v810
  %v829 = vpack.c.b16 %v813, %v811
  %v830 = vpack.c.b16 %v816, %v814
  %v831 = vpack.c.b16 %v817, %v815
  %v832 = vpack.c.b16 %v820, %v818
  %v833 = vpack.c.b16 %v821, %v819
  %v847 = vsel %vm213, %v758, 0
  %v850 = vsel %vm213, %v759, 0
  %v853 = vsel %vm213, %v760, 0
  %v856 = vsel %vm213, %v761, 0
  %v859 = vsel %vm213, %v762, 0
  %v862 = vsel %vm213, %v763, 0
  %v865 = vsel %vm213, %v764, 0
  %v868 = vsel %vm213, %v765, 0
  %v871 = vsel %vm213, %v766, 0
  %v874 = vsel %vm213, %v767, 0
  %v877 = vsel %vm213, %v768, 0
  %v880 = vsel %vm213, %v769, 0
  %v883 = vsel %vm213, %v770, 0
  %v886 = vsel %vm213, %v771, 0
  %v889 = vsel %vm213, %v772, 0
  %v892 = vsel %vm213, %v773, 0
  %894 = vmatpush.bf16.msra.mxu0 0
  %895 = vmatpush.bf16.msra.mxu0 0
  %896 = vmatpush.bf16.msra.mxu0 %v832
  %897 = vmatpush.bf16.msra.mxu0 %v830
  %898 = vmatpush.bf16.msra.mxu0 %v828
  %899 = vmatpush.bf16.msra.mxu0 %v826
  %900 = vmatpush.bf16.msra.mxu0 %v824
  %901 = vmatpush.bf16.msra.mxu0 %v822
  %902 = vmatmul.bf16.gmra.mxu0 %v847
  %v903 = vpop.f32.mrf.mxu0
  %v904 = vadd.f32 0.0, %v903
  %v905 = vpop.f32.mrf.mxu0
  %v906 = vadd.f32 0.0, %v905
  %907 = vmatmul.bf16.gmra.mxu0 %v850
  %v908 = vpop.f32.mrf.mxu0
  %v909 = vadd.f32 0.0, %v908
  %v910 = vpop.f32.mrf.mxu0
  %v911 = vadd.f32 0.0, %v910
  %912 = vmatmul.bf16.gmra.mxu0 %v853
  %v913 = vpop.f32.mrf.mxu0
  %v914 = vadd.f32 0.0, %v913
  %v915 = vpop.f32.mrf.mxu0
  %v916 = vadd.f32 0.0, %v915
  %917 = vmatmul.bf16.gmra.mxu0 %v856
  %v918 = vpop.f32.mrf.mxu0
  %v919 = vadd.f32 0.0, %v918
  %v920 = vpop.f32.mrf.mxu0
  %v921 = vadd.f32 0.0, %v920
  %922 = vmatmul.bf16.gmra.mxu0 %v859
  %v923 = vpop.f32.mrf.mxu0
  %v924 = vadd.f32 0.0, %v923
  %v925 = vpop.f32.mrf.mxu0
  %v926 = vadd.f32 0.0, %v925
  %927 = vmatmul.bf16.gmra.mxu0 %v862
  %v928 = vpop.f32.mrf.mxu0
  %v929 = vadd.f32 0.0, %v928
  %v930 = vpop.f32.mrf.mxu0
  %v931 = vadd.f32 0.0, %v930
  %932 = vmatmul.bf16.gmra.mxu0 %v865
  %v933 = vpop.f32.mrf.mxu0
  %v934 = vadd.f32 0.0, %v933
  %v935 = vpop.f32.mrf.mxu0
  %v936 = vadd.f32 0.0, %v935
  %937 = vmatmul.bf16.gmra.mxu0 %v868
  %v938 = vpop.f32.mrf.mxu0
  %v939 = vadd.f32 0.0, %v938
  %v940 = vpop.f32.mrf.mxu0
  %v941 = vadd.f32 0.0, %v940
  %942 = vmatmul.bf16.gmra.mxu0 %v871
  %v943 = vpop.f32.mrf.mxu0
  %v944 = vadd.f32 0.0, %v943
  %v945 = vpop.f32.mrf.mxu0
  %v946 = vadd.f32 0.0, %v945
  %947 = vmatmul.bf16.gmra.mxu0 %v874
  %v948 = vpop.f32.mrf.mxu0
  %v949 = vadd.f32 0.0, %v948
  %v950 = vpop.f32.mrf.mxu0
  %v951 = vadd.f32 0.0, %v950
  %952 = vmatmul.bf16.gmra.mxu0 %v877
  %v953 = vpop.f32.mrf.mxu0
  %v954 = vadd.f32 0.0, %v953
  %v955 = vpop.f32.mrf.mxu0
  %v956 = vadd.f32 0.0, %v955
  %957 = vmatmul.bf16.gmra.mxu0 %v880
  %v958 = vpop.f32.mrf.mxu0
  %v959 = vadd.f32 0.0, %v958
  %v960 = vpop.f32.mrf.mxu0
  %v961 = vadd.f32 0.0, %v960
  %962 = vmatmul.bf16.gmra.mxu0 %v883
  %v963 = vpop.f32.mrf.mxu0
  %v964 = vadd.f32 0.0, %v963
  %v965 = vpop.f32.mrf.mxu0
  %v966 = vadd.f32 0.0, %v965
  %967 = vmatmul.bf16.gmra.mxu0 %v886
  %v968 = vpop.f32.mrf.mxu0
  %v969 = vadd.f32 0.0, %v968
  %v970 = vpop.f32.mrf.mxu0
  %v971 = vadd.f32 0.0, %v970
  %972 = vmatmul.bf16.gmra.mxu0 %v889
  %v973 = vpop.f32.mrf.mxu0
  %v974 = vadd.f32 0.0, %v973
  %v975 = vpop.f32.mrf.mxu0
  %v976 = vadd.f32 0.0, %v975
  %977 = vmatmul.bf16.gmra.mxu0 %v892
  %v978 = vpop.f32.mrf.mxu0
  %v979 = vadd.f32 0.0, %v978
  %v980 = vpop.f32.mrf.mxu0
  %v981 = vadd.f32 0.0, %v980
  %982 = vdwg.mxu0
  %983 = vmatpush.bf16.msra.mxu0 0
  %984 = vmatpush.bf16.msra.mxu0 0
  %985 = vmatpush.bf16.msra.mxu0 %v833
  %986 = vmatpush.bf16.msra.mxu0 %v831
  %987 = vmatpush.bf16.msra.mxu0 %v829
  %988 = vmatpush.bf16.msra.mxu0 %v827
  %989 = vmatpush.bf16.msra.mxu0 %v825
  %990 = vmatpush.bf16.msra.mxu0 %v823
  %991 = vmatmul.bf16.gmra.mxu0 %v847
  %v992 = vpop.f32.mrf.mxu0
  %v993 = vadd.f32 0.0, %v992
  %v994 = vpop.f32.mrf.mxu0
  %v995 = vadd.f32 0.0, %v994
  %996 = vmatmul.bf16.gmra.mxu0 %v850
  %v997 = vpop.f32.mrf.mxu0
  %v998 = vadd.f32 0.0, %v997
  %v999 = vpop.f32.mrf.mxu0
  %v1000 = vadd.f32 0.0, %v999
  %1001 = vmatmul.bf16.gmra.mxu0 %v853
  %v1002 = vpop.f32.mrf.mxu0
  %v1003 = vadd.f32 0.0, %v1002
  %v1004 = vpop.f32.mrf.mxu0
  %v1005 = vadd.f32 0.0, %v1004
  %1006 = vmatmul.bf16.gmra.mxu0 %v856
  %v1007 = vpop.f32.mrf.mxu0
  %v1008 = vadd.f32 0.0, %v1007
  %v1009 = vpop.f32.mrf.mxu0
  %v1010 = vadd.f32 0.0, %v1009
  %1011 = vmatmul.bf16.gmra.mxu0 %v859
  %v1012 = vpop.f32.mrf.mxu0
  %v1013 = vadd.f32 0.0, %v1012
  %v1014 = vpop.f32.mrf.mxu0
  %v1015 = vadd.f32 0.0, %v1014
  %1016 = vmatmul.bf16.gmra.mxu0 %v862
  %v1017 = vpop.f32.mrf.mxu0
  %v1018 = vadd.f32 0.0, %v1017
  %v1019 = vpop.f32.mrf.mxu0
  %v1020 = vadd.f32 0.0, %v1019
  %1021 = vmatmul.bf16.gmra.mxu0 %v865
  %v1022 = vpop.f32.mrf.mxu0
  %v1023 = vadd.f32 0.0, %v1022
  %v1024 = vpop.f32.mrf.mxu0
  %v1025 = vadd.f32 0.0, %v1024
  %1026 = vmatmul.bf16.gmra.mxu0 %v868
  %v1027 = vpop.f32.mrf.mxu0
  %v1028 = vadd.f32 0.0, %v1027
  %v1029 = vpop.f32.mrf.mxu0
  %v1030 = vadd.f32 0.0, %v1029
  %1031 = vmatmul.bf16.gmra.mxu0 %v871
  %v1032 = vpop.f32.mrf.mxu0
  %v1033 = vadd.f32 0.0, %v1032
  %v1034 = vpop.f32.mrf.mxu0
  %v1035 = vadd.f32 0.0, %v1034
  %1036 = vmatmul.bf16.gmra.mxu0 %v874
  %v1037 = vpop.f32.mrf.mxu0
  %v1038 = vadd.f32 0.0, %v1037
  %v1039 = vpop.f32.mrf.mxu0
  %v1040 = vadd.f32 0.0, %v1039
  %1041 = vmatmul.bf16.gmra.mxu0 %v877
  %v1042 = vpop.f32.mrf.mxu0
  %v1043 = vadd.f32 0.0, %v1042
  %v1044 = vpop.f32.mrf.mxu0
  %v1045 = vadd.f32 0.0, %v1044
  %1046 = vmatmul.bf16.gmra.mxu0 %v880
  %v1047 = vpop.f32.mrf.mxu0
  %v1048 = vadd.f32 0.0, %v1047
  %v1049 = vpop.f32.mrf.mxu0
  %v1050 = vadd.f32 0.0, %v1049
  %1051 = vmatmul.bf16.gmra.mxu0 %v883
  %v1052 = vpop.f32.mrf.mxu0
  %v1053 = vadd.f32 0.0, %v1052
  %v1054 = vpop.f32.mrf.mxu0
  %v1055 = vadd.f32 0.0, %v1054
  %1056 = vmatmul.bf16.gmra.mxu0 %v886
  %v1057 = vpop.f32.mrf.mxu0
  %v1058 = vadd.f32 0.0, %v1057
  %v1059 = vpop.f32.mrf.mxu0
  %v1060 = vadd.f32 0.0, %v1059
  %1061 = vmatmul.bf16.gmra.mxu0 %v889
  %v1062 = vpop.f32.mrf.mxu0
  %v1063 = vadd.f32 0.0, %v1062
  %v1064 = vpop.f32.mrf.mxu0
  %v1065 = vadd.f32 0.0, %v1064
  %1066 = vmatmul.bf16.gmra.mxu0 %v892
  %v1067 = vpop.f32.mrf.mxu0
  %v1068 = vadd.f32 0.0, %v1067
  %v1069 = vpop.f32.mrf.mxu0
  %v1070 = vadd.f32 0.0, %v1069
  %1071 = vdwg.mxu0
  %v1072 = vadd.f32 %v558, %v904
  %v1073 = vadd.f32 %v647, %v993
  %v1074 = vadd.f32 %v560, %v906
  %v1075 = vadd.f32 %v649, %v995
  %v1076 = vadd.f32 %v563, %v909
  %v1077 = vadd.f32 %v652, %v998
  %v1078 = vadd.f32 %v565, %v911
  %v1079 = vadd.f32 %v654, %v1000
  %v1080 = vadd.f32 %v568, %v914
  %v1081 = vadd.f32 %v657, %v1003
  %v1082 = vadd.f32 %v570, %v916
  %v1083 = vadd.f32 %v659, %v1005
  %v1084 = vadd.f32 %v573, %v919
  %v1085 = vadd.f32 %v662, %v1008
  %v1086 = vadd.f32 %v575, %v921
  %v1087 = vadd.f32 %v664, %v1010
  %v1088 = vadd.f32 %v578, %v924
  %v1089 = vadd.f32 %v667, %v1013
  %v1090 = vadd.f32 %v580, %v926
  %v1091 = vadd.f32 %v669, %v1015
  %v1092 = vadd.f32 %v583, %v929
  %v1093 = vadd.f32 %v672, %v1018
  %v1094 = vadd.f32 %v585, %v931
  %v1095 = vadd.f32 %v674, %v1020
  %v1096 = vadd.f32 %v588, %v934
  %v1097 = vadd.f32 %v677, %v1023
  %v1098 = vadd.f32 %v590, %v936
  %v1099 = vadd.f32 %v679, %v1025
  %v1100 = vadd.f32 %v593, %v939
  %v1101 = vadd.f32 %v682, %v1028
  %v1102 = vadd.f32 %v595, %v941
  %v1103 = vadd.f32 %v684, %v1030
  %v1104 = vadd.f32 %v598, %v944
  %v1105 = vadd.f32 %v687, %v1033
  %v1106 = vadd.f32 %v600, %v946
  %v1107 = vadd.f32 %v689, %v1035
  %v1108 = vadd.f32 %v603, %v949
  %v1109 = vadd.f32 %v692, %v1038
  %v1110 = vadd.f32 %v605, %v951
  %v1111 = vadd.f32 %v694, %v1040
  %v1112 = vadd.f32 %v608, %v954
  %v1113 = vadd.f32 %v697, %v1043
  %v1114 = vadd.f32 %v610, %v956
  %v1115 = vadd.f32 %v699, %v1045
  %v1116 = vadd.f32 %v613, %v959
  %v1117 = vadd.f32 %v702, %v1048
  %v1118 = vadd.f32 %v615, %v961
  %v1119 = vadd.f32 %v704, %v1050
  %v1120 = vadd.f32 %v618, %v964
  %v1121 = vadd.f32 %v707, %v1053
  %v1122 = vadd.f32 %v620, %v966
  %v1123 = vadd.f32 %v709, %v1055
  %v1124 = vadd.f32 %v623, %v969
  %v1125 = vadd.f32 %v712, %v1058
  %v1126 = vadd.f32 %v625, %v971
  %v1127 = vadd.f32 %v714, %v1060
  %v1128 = vadd.f32 %v628, %v974
  %v1129 = vadd.f32 %v717, %v1063
  %v1130 = vadd.f32 %v630, %v976
  %v1131 = vadd.f32 %v719, %v1065
  %v1132 = vadd.f32 %v633, %v979
  %v1133 = vadd.f32 %v722, %v1068
  %v1134 = vadd.f32 %v635, %v981
  %v1135 = vadd.f32 %v724, %v1070
  %v1136 = vld [vmem:[%s0 + $0x3] sm:$0xff]
  %v1137 = vld [vmem:[%s0 + $0xb] sm:$0xff]
  %v1138 = vld [vmem:[%s0 + $0x13] sm:$0xff]
  %v1139 = vld [vmem:[%s0 + $0x1b] sm:$0xff]
  %v1140 = vld [vmem:[%s0 + $0x23] sm:$0xff]
  %v1141 = vld [vmem:[%s0 + $0x2b] sm:$0xff]
  %v1142 = vld [vmem:[%s0 + $0x33] sm:$0xff]
  %v1143 = vld [vmem:[%s0 + $0x3b] sm:$0xff]
  %v1144 = vld [vmem:[%s0 + $0x43] sm:$0xff]
  %v1145 = vld [vmem:[%s0 + $0x4b] sm:$0xff]
  %v1146 = vld [vmem:[%s0 + $0x53] sm:$0xff]
  %v1147 = vld [vmem:[%s0 + $0x5b] sm:$0xff]
  %v1148 = vld [vmem:[%s0 + $0x63] sm:$0xff]
  %v1149 = vld [vmem:[%s0 + $0x6b] sm:$0xff]
  %v1150 = vld [vmem:[%s0 + $0x73] sm:$0xff]
  %v1151 = vld [vmem:[%s0 + $0x7b] sm:$0xff]
  %v1152 = vld [vmem:[%s0 + $0x83] sm:$0xff]
  %v1153 = vld [vmem:[%s0 + $0x8b] sm:$0xff]
  %v1154 = vld [vmem:[%s0 + $0x93] sm:$0xff]
  %v1155 = vld [vmem:[%s0 + $0x9b] sm:$0xff]
  %v1156 = vld [vmem:[%s0 + $0xa3] sm:$0xff]
  %v1157 = vld [vmem:[%s0 + $0xab] sm:$0xff]
  %v1158 = vld [vmem:[%s0 + $0xb3] sm:$0xff]
  %v1159 = vld [vmem:[%s0 + $0xbb] sm:$0xff]
  %v1160 = vld [vmem:[%s0 + $0xc3] sm:$0xff]
  %v1161 = vld [vmem:[%s0 + $0xcb] sm:$0xff]
  %v1162 = vld [vmem:[%s0 + $0xd3] sm:$0xff]
  %v1163 = vld [vmem:[%s0 + $0xdb] sm:$0xff]
  %v1164 = vld [vmem:[%s0 + $0xe3] sm:$0xff]
  %v1165 = vld [vmem:[%s0 + $0xeb] sm:$0xff]
  %v1166 = vld [vmem:[%s0 + $0xf3] sm:$0xff]
  %v1167 = vld [vmem:[%s0 + $0xfb] sm:$0xff]
  %v1168 = vpack.c.bf16 %v1137, %v1136
  %v1169 = vpack.c.bf16 %v1139, %v1138
  %v1170 = vpack.c.bf16 %v1141, %v1140
  %v1171 = vpack.c.bf16 %v1143, %v1142
  %v1172 = vpack.c.bf16 %v1145, %v1144
  %v1173 = vpack.c.bf16 %v1147, %v1146
  %v1174 = vpack.c.bf16 %v1149, %v1148
  %v1175 = vpack.c.bf16 %v1151, %v1150
  %v1176 = vpack.c.bf16 %v1153, %v1152
  %v1177 = vpack.c.bf16 %v1155, %v1154
  %v1178 = vpack.c.bf16 %v1157, %v1156
  %v1179 = vpack.c.bf16 %v1159, %v1158
  %v1180 = vpack.c.bf16 %v1161, %v1160
  %v1181 = vpack.c.bf16 %v1163, %v1162
  %v1182 = vpack.c.bf16 %v1165, %v1164
  %v1183 = vpack.c.bf16 %v1167, %v1166
  %v1184 = vld [vmem:[%s1 + $0x120] sm:$0xff]
  %v1185 = vld [vmem:[%s1 + $0x128] sm:$0xff]
  %v1186 = vld [vmem:[%s1 + $0x130] sm:$0xff]
  %v1187 = vld [vmem:[%s1 + $0x138] sm:$0xff]
  %v1188 = vld [vmem:[%s1 + $0x140] sm:$0xff]
  %v1189 = vld [vmem:[%s1 + $0x148] sm:$0xff]
  %v1190 = vld [vmem:[%s1 + $0x150] sm:$0xff]
  %v1191 = vld [vmem:[%s1 + $0x158] sm:$0xff]
  %v1192 = vld [vmem:[%s1 + $0x160] sm:$0xff]
  %v1193 = vld [vmem:[%s1 + $0x168] sm:$0xff]
  %v1194 = vld [vmem:[%s1 + $0x170] sm:$0xff]
  %v1195 = vld [vmem:[%s1 + $0x178] sm:$0xff]
  %v1208 = vunpack.c.l.b16 %v1184
  %v1209 = vunpack.c.h.b16 %v1184
  %v1210 = vunpack.c.l.b16 %v1185
  %v1211 = vunpack.c.h.b16 %v1185
  %v1212 = vunpack.c.l.b16 %v1186
  %v1213 = vunpack.c.h.b16 %v1186
  %v1214 = vunpack.c.l.b16 %v1187
  %v1215 = vunpack.c.h.b16 %v1187
  %v1216 = vunpack.c.l.b16 %v1188
  %v1217 = vunpack.c.h.b16 %v1188
  %v1218 = vunpack.c.l.b16 %v1189
  %v1219 = vunpack.c.h.b16 %v1189
  %v1220 = vunpack.c.l.b16 %v1190
  %v1221 = vunpack.c.h.b16 %v1190
  %v1222 = vunpack.c.l.b16 %v1191
  %v1223 = vunpack.c.h.b16 %v1191
  %v1224 = vunpack.c.l.b16 %v1192
  %v1225 = vunpack.c.h.b16 %v1192
  %v1226 = vunpack.c.l.b16 %v1193
  %v1227 = vunpack.c.h.b16 %v1193
  %v1228 = vunpack.c.l.b16 %v1194
  %v1229 = vunpack.c.h.b16 %v1194
  %v1230 = vunpack.c.l.b16 %v1195
  %v1231 = vunpack.c.h.b16 %v1195
  %v1232 = vpack.c.b16 %v1210, %v1208
  %v1233 = vpack.c.b16 %v1211, %v1209
  %v1234 = vpack.c.b16 %v1214, %v1212
  %v1235 = vpack.c.b16 %v1215, %v1213
  %v1236 = vpack.c.b16 %v1218, %v1216
  %v1237 = vpack.c.b16 %v1219, %v1217
  %v1238 = vpack.c.b16 %v1222, %v1220
  %v1239 = vpack.c.b16 %v1223, %v1221
  %v1240 = vpack.c.b16 %v1226, %v1224
  %v1241 = vpack.c.b16 %v1227, %v1225
  %v1242 = vpack.c.b16 %v1230, %v1228
  %v1243 = vpack.c.b16 %v1231, %v1229
  %v1257 = vsel %vm213, %v1168, 0
  %v1260 = vsel %vm213, %v1169, 0
  %v1263 = vsel %vm213, %v1170, 0
  %v1266 = vsel %vm213, %v1171, 0
  %v1269 = vsel %vm213, %v1172, 0
  %v1272 = vsel %vm213, %v1173, 0
  %v1275 = vsel %vm213, %v1174, 0
  %v1278 = vsel %vm213, %v1175, 0
  %v1281 = vsel %vm213, %v1176, 0
  %v1284 = vsel %vm213, %v1177, 0
  %v1287 = vsel %vm213, %v1178, 0
  %v1290 = vsel %vm213, %v1179, 0
  %v1293 = vsel %vm213, %v1180, 0
  %v1296 = vsel %vm213, %v1181, 0
  %v1299 = vsel %vm213, %v1182, 0
  %v1302 = vsel %vm213, %v1183, 0
  %1304 = vmatpush.bf16.msra.mxu0 0
  %1305 = vmatpush.bf16.msra.mxu0 0
  %1306 = vmatpush.bf16.msra.mxu0 %v1242
  %1307 = vmatpush.bf16.msra.mxu0 %v1240
  %1308 = vmatpush.bf16.msra.mxu0 %v1238
  %1309 = vmatpush.bf16.msra.mxu0 %v1236
  %1310 = vmatpush.bf16.msra.mxu0 %v1234
  %1311 = vmatpush.bf16.msra.mxu0 %v1232
  %1312 = vmatmul.bf16.gmra.mxu0 %v1257
  %v1313 = vpop.f32.mrf.mxu0
  %v1314 = vadd.f32 0.0, %v1313
  %v1315 = vpop.f32.mrf.mxu0
  %v1316 = vadd.f32 0.0, %v1315
  %1317 = vmatmul.bf16.gmra.mxu0 %v1260
  %v1318 = vpop.f32.mrf.mxu0
  %v1319 = vadd.f32 0.0, %v1318
  %v1320 = vpop.f32.mrf.mxu0
  %v1321 = vadd.f32 0.0, %v1320
  %1322 = vmatmul.bf16.gmra.mxu0 %v1263
  %v1323 = vpop.f32.mrf.mxu0
  %v1324 = vadd.f32 0.0, %v1323
  %v1325 = vpop.f32.mrf.mxu0
  %v1326 = vadd.f32 0.0, %v1325
  %1327 = vmatmul.bf16.gmra.mxu0 %v1266
  %v1328 = vpop.f32.mrf.mxu0
  %v1329 = vadd.f32 0.0, %v1328
  %v1330 = vpop.f32.mrf.mxu0
  %v1331 = vadd.f32 0.0, %v1330
  %1332 = vmatmul.bf16.gmra.mxu0 %v1269
  %v1333 = vpop.f32.mrf.mxu0
  %v1334 = vadd.f32 0.0, %v1333
  %v1335 = vpop.f32.mrf.mxu0
  %v1336 = vadd.f32 0.0, %v1335
  %1337 = vmatmul.bf16.gmra.mxu0 %v1272
  %v1338 = vpop.f32.mrf.mxu0
  %v1339 = vadd.f32 0.0, %v1338
  %v1340 = vpop.f32.mrf.mxu0
  %v1341 = vadd.f32 0.0, %v1340
  %1342 = vmatmul.bf16.gmra.mxu0 %v1275
  %v1343 = vpop.f32.mrf.mxu0
  %v1344 = vadd.f32 0.0, %v1343
  %v1345 = vpop.f32.mrf.mxu0
  %v1346 = vadd.f32 0.0, %v1345
  %1347 = vmatmul.bf16.gmra.mxu0 %v1278
  %v1348 = vpop.f32.mrf.mxu0
  %v1349 = vadd.f32 0.0, %v1348
  %v1350 = vpop.f32.mrf.mxu0
  %v1351 = vadd.f32 0.0, %v1350
  %1352 = vmatmul.bf16.gmra.mxu0 %v1281
  %v1353 = vpop.f32.mrf.mxu0
  %v1354 = vadd.f32 0.0, %v1353
  %v1355 = vpop.f32.mrf.mxu0
  %v1356 = vadd.f32 0.0, %v1355
  %1357 = vmatmul.bf16.gmra.mxu0 %v1284
  %v1358 = vpop.f32.mrf.mxu0
  %v1359 = vadd.f32 0.0, %v1358
  %v1360 = vpop.f32.mrf.mxu0
  %v1361 = vadd.f32 0.0, %v1360
  %1362 = vmatmul.bf16.gmra.mxu0 %v1287
  %v1363 = vpop.f32.mrf.mxu0
  %v1364 = vadd.f32 0.0, %v1363
  %v1365 = vpop.f32.mrf.mxu0
  %v1366 = vadd.f32 0.0, %v1365
  %1367 = vmatmul.bf16.gmra.mxu0 %v1290
  %v1368 = vpop.f32.mrf.mxu0
  %v1369 = vadd.f32 0.0, %v1368
  %v1370 = vpop.f32.mrf.mxu0
  %v1371 = vadd.f32 0.0, %v1370
  %1372 = vmatmul.bf16.gmra.mxu0 %v1293
  %v1373 = vpop.f32.mrf.mxu0
  %v1374 = vadd.f32 0.0, %v1373
  %v1375 = vpop.f32.mrf.mxu0
  %v1376 = vadd.f32 0.0, %v1375
  %1377 = vmatmul.bf16.gmra.mxu0 %v1296
  %v1378 = vpop.f32.mrf.mxu0
  %v1379 = vadd.f32 0.0, %v1378
  %v1380 = vpop.f32.mrf.mxu0
  %v1381 = vadd.f32 0.0, %v1380
  %1382 = vmatmul.bf16.gmra.mxu0 %v1299
  %v1383 = vpop.f32.mrf.mxu0
  %v1384 = vadd.f32 0.0, %v1383
  %v1385 = vpop.f32.mrf.mxu0
  %v1386 = vadd.f32 0.0, %v1385
  %1387 = vmatmul.bf16.gmra.mxu0 %v1302
  %v1388 = vpop.f32.mrf.mxu0
  %v1389 = vadd.f32 0.0, %v1388
  %v1390 = vpop.f32.mrf.mxu0
  %v1391 = vadd.f32 0.0, %v1390
  %1392 = vdwg.mxu0
  %1393 = vmatpush.bf16.msra.mxu0 0
  %1394 = vmatpush.bf16.msra.mxu0 0
  %1395 = vmatpush.bf16.msra.mxu0 %v1243
  %1396 = vmatpush.bf16.msra.mxu0 %v1241
  %1397 = vmatpush.bf16.msra.mxu0 %v1239
  %1398 = vmatpush.bf16.msra.mxu0 %v1237
  %1399 = vmatpush.bf16.msra.mxu0 %v1235
  %1400 = vmatpush.bf16.msra.mxu0 %v1233
  %1401 = vmatmul.bf16.gmra.mxu0 %v1257
  %v1402 = vpop.f32.mrf.mxu0
  %v1403 = vadd.f32 0.0, %v1402
  %v1404 = vpop.f32.mrf.mxu0
  %v1405 = vadd.f32 0.0, %v1404
  %1406 = vmatmul.bf16.gmra.mxu0 %v1260
  %v1407 = vpop.f32.mrf.mxu0
  %v1408 = vadd.f32 0.0, %v1407
  %v1409 = vpop.f32.mrf.mxu0
  %v1410 = vadd.f32 0.0, %v1409
  %1411 = vmatmul.bf16.gmra.mxu0 %v1263
  %v1412 = vpop.f32.mrf.mxu0
  %v1413 = vadd.f32 0.0, %v1412
  %v1414 = vpop.f32.mrf.mxu0
  %v1415 = vadd.f32 0.0, %v1414
  %1416 = vmatmul.bf16.gmra.mxu0 %v1266
  %v1417 = vpop.f32.mrf.mxu0
  %v1418 = vadd.f32 0.0, %v1417
  %v1419 = vpop.f32.mrf.mxu0
  %v1420 = vadd.f32 0.0, %v1419
  %1421 = vmatmul.bf16.gmra.mxu0 %v1269
  %v1422 = vpop.f32.mrf.mxu0
  %v1423 = vadd.f32 0.0, %v1422
  %v1424 = vpop.f32.mrf.mxu0
  %v1425 = vadd.f32 0.0, %v1424
  %1426 = vmatmul.bf16.gmra.mxu0 %v1272
  %v1427 = vpop.f32.mrf.mxu0
  %v1428 = vadd.f32 0.0, %v1427
  %v1429 = vpop.f32.mrf.mxu0
  %v1430 = vadd.f32 0.0, %v1429
  %1431 = vmatmul.bf16.gmra.mxu0 %v1275
  %v1432 = vpop.f32.mrf.mxu0
  %v1433 = vadd.f32 0.0, %v1432
  %v1434 = vpop.f32.mrf.mxu0
  %v1435 = vadd.f32 0.0, %v1434
  %1436 = vmatmul.bf16.gmra.mxu0 %v1278
  %v1437 = vpop.f32.mrf.mxu0
  %v1438 = vadd.f32 0.0, %v1437
  %v1439 = vpop.f32.mrf.mxu0
  %v1440 = vadd.f32 0.0, %v1439
  %1441 = vmatmul.bf16.gmra.mxu0 %v1281
  %v1442 = vpop.f32.mrf.mxu0
  %v1443 = vadd.f32 0.0, %v1442
  %v1444 = vpop.f32.mrf.mxu0
  %v1445 = vadd.f32 0.0, %v1444
  %1446 = vmatmul.bf16.gmra.mxu0 %v1284
  %v1447 = vpop.f32.mrf.mxu0
  %v1448 = vadd.f32 0.0, %v1447
  %v1449 = vpop.f32.mrf.mxu0
  %v1450 = vadd.f32 0.0, %v1449
  %1451 = vmatmul.bf16.gmra.mxu0 %v1287
  %v1452 = vpop.f32.mrf.mxu0
  %v1453 = vadd.f32 0.0, %v1452
  %v1454 = vpop.f32.mrf.mxu0
  %v1455 = vadd.f32 0.0, %v1454
  %1456 = vmatmul.bf16.gmra.mxu0 %v1290
  %v1457 = vpop.f32.mrf.mxu0
  %v1458 = vadd.f32 0.0, %v1457
  %v1459 = vpop.f32.mrf.mxu0
  %v1460 = vadd.f32 0.0, %v1459
  %1461 = vmatmul.bf16.gmra.mxu0 %v1293
  %v1462 = vpop.f32.mrf.mxu0
  %v1463 = vadd.f32 0.0, %v1462
  %v1464 = vpop.f32.mrf.mxu0
  %v1465 = vadd.f32 0.0, %v1464
  %1466 = vmatmul.bf16.gmra.mxu0 %v1296
  %v1467 = vpop.f32.mrf.mxu0
  %v1468 = vadd.f32 0.0, %v1467
  %v1469 = vpop.f32.mrf.mxu0
  %v1470 = vadd.f32 0.0, %v1469
  %1471 = vmatmul.bf16.gmra.mxu0 %v1299
  %v1472 = vpop.f32.mrf.mxu0
  %v1473 = vadd.f32 0.0, %v1472
  %v1474 = vpop.f32.mrf.mxu0
  %v1475 = vadd.f32 0.0, %v1474
  %1476 = vmatmul.bf16.gmra.mxu0 %v1302
  %v1477 = vpop.f32.mrf.mxu0
  %v1478 = vadd.f32 0.0, %v1477
  %v1479 = vpop.f32.mrf.mxu0
  %v1480 = vadd.f32 0.0, %v1479
  %1481 = vdwg.mxu0
  %v1482 = vadd.f32 %v1072, %v1314
  %v1483 = vadd.f32 %v1073, %v1403
  %v1484 = vadd.f32 %v1074, %v1316
  %v1485 = vadd.f32 %v1075, %v1405
  %v1486 = vadd.f32 %v1076, %v1319
  %v1487 = vadd.f32 %v1077, %v1408
  %v1488 = vadd.f32 %v1078, %v1321
  %v1489 = vadd.f32 %v1079, %v1410
  %v1490 = vadd.f32 %v1080, %v1324
  %v1491 = vadd.f32 %v1081, %v1413
  %v1492 = vadd.f32 %v1082, %v1326
  %v1493 = vadd.f32 %v1083, %v1415
  %v1494 = vadd.f32 %v1084, %v1329
  %v1495 = vadd.f32 %v1085, %v1418
  %v1496 = vadd.f32 %v1086, %v1331
  %v1497 = vadd.f32 %v1087, %v1420
  %v1498 = vadd.f32 %v1088, %v1334
  %v1499 = vadd.f32 %v1089, %v1423
  %v1500 = vadd.f32 %v1090, %v1336
  %v1501 = vadd.f32 %v1091, %v1425
  %v1502 = vadd.f32 %v1092, %v1339
  %v1503 = vadd.f32 %v1093, %v1428
  %v1504 = vadd.f32 %v1094, %v1341
  %v1505 = vadd.f32 %v1095, %v1430
  %v1506 = vadd.f32 %v1096, %v1344
  %v1507 = vadd.f32 %v1097, %v1433
  %v1508 = vadd.f32 %v1098, %v1346
  %v1509 = vadd.f32 %v1099, %v1435
  %v1510 = vadd.f32 %v1100, %v1349
  %v1511 = vadd.f32 %v1101, %v1438
  %v1512 = vadd.f32 %v1102, %v1351
  %v1513 = vadd.f32 %v1103, %v1440
  %v1514 = vadd.f32 %v1104, %v1354
  %v1515 = vadd.f32 %v1105, %v1443
  %v1516 = vadd.f32 %v1106, %v1356
  %v1517 = vadd.f32 %v1107, %v1445
  %v1518 = vadd.f32 %v1108, %v1359
  %v1519 = vadd.f32 %v1109, %v1448
  %v1520 = vadd.f32 %v1110, %v1361
  %v1521 = vadd.f32 %v1111, %v1450
  %v1522 = vadd.f32 %v1112, %v1364
  %v1523 = vadd.f32 %v1113, %v1453
  %v1524 = vadd.f32 %v1114, %v1366
  %v1525 = vadd.f32 %v1115, %v1455
  %v1526 = vadd.f32 %v1116, %v1369
  %v1527 = vadd.f32 %v1117, %v1458
  %v1528 = vadd.f32 %v1118, %v1371
  %v1529 = vadd.f32 %v1119, %v1460
  %v1530 = vadd.f32 %v1120, %v1374
  %v1531 = vadd.f32 %v1121, %v1463
  %v1532 = vadd.f32 %v1122, %v1376
  %v1533 = vadd.f32 %v1123, %v1465
  %v1534 = vadd.f32 %v1124, %v1379
  %v1535 = vadd.f32 %v1125, %v1468
  %v1536 = vadd.f32 %v1126, %v1381
  %v1537 = vadd.f32 %v1127, %v1470
  %v1538 = vadd.f32 %v1128, %v1384
  %v1539 = vadd.f32 %v1129, %v1473
  %v1540 = vadd.f32 %v1130, %v1386
  %v1541 = vadd.f32 %v1131, %v1475
  %v1542 = vadd.f32 %v1132, %v1389
  %v1543 = vadd.f32 %v1133, %v1478
  %v1544 = vadd.f32 %v1134, %v1391
  %v1545 = vadd.f32 %v1135, %v1480
  %v1546 = vld [vmem:[%s0 + $0x4] sm:$0xff]
  %v1547 = vld [vmem:[%s0 + $0xc] sm:$0xff]
  %v1548 = vld [vmem:[%s0 + $0x14] sm:$0xff]
  %v1549 = vld [vmem:[%s0 + $0x1c] sm:$0xff]
  %v1550 = vld [vmem:[%s0 + $0x24] sm:$0xff]
  %v1551 = vld [vmem:[%s0 + $0x2c] sm:$0xff]
  %v1552 = vld [vmem:[%s0 + $0x34] sm:$0xff]
  %v1553 = vld [vmem:[%s0 + $0x3c] sm:$0xff]
  %v1554 = vld [vmem:[%s0 + $0x44] sm:$0xff]
  %v1555 = vld [vmem:[%s0 + $0x4c] sm:$0xff]
  %v1556 = vld [vmem:[%s0 + $0x54] sm:$0xff]
  %v1557 = vld [vmem:[%s0 + $0x5c] sm:$0xff]
  %v1558 = vld [vmem:[%s0 + $0x64] sm:$0xff]
  %v1559 = vld [vmem:[%s0 + $0x6c] sm:$0xff]
  %v1560 = vld [vmem:[%s0 + $0x74] sm:$0xff]
  %v1561 = vld [vmem:[%s0 + $0x7c] sm:$0xff]
  %v1562 = vld [vmem:[%s0 + $0x84] sm:$0xff]
  %v1563 = vld [vmem:[%s0 + $0x8c] sm:$0xff]
  %v1564 = vld [vmem:[%s0 + $0x94] sm:$0xff]
  %v1565 = vld [vmem:[%s0 + $0x9c] sm:$0xff]
  %v1566 = vld [vmem:[%s0 + $0xa4] sm:$0xff]
  %v1567 = vld [vmem:[%s0 + $0xac] sm:$0xff]
  %v1568 = vld [vmem:[%s0 + $0xb4] sm:$0xff]
  %v1569 = vld [vmem:[%s0 + $0xbc] sm:$0xff]
  %v1570 = vld [vmem:[%s0 + $0xc4] sm:$0xff]
  %v1571 = vld [vmem:[%s0 + $0xcc] sm:$0xff]
  %v1572 = vld [vmem:[%s0 + $0xd4] sm:$0xff]
  %v1573 = vld [vmem:[%s0 + $0xdc] sm:$0xff]
  %v1574 = vld [vmem:[%s0 + $0xe4] sm:$0xff]
  %v1575 = vld [vmem:[%s0 + $0xec] sm:$0xff]
  %v1576 = vld [vmem:[%s0 + $0xf4] sm:$0xff]
  %v1577 = vld [vmem:[%s0 + $0xfc] sm:$0xff]
  %v1578 = vpack.c.bf16 %v1547, %v1546
  %v1579 = vpack.c.bf16 %v1549, %v1548
  %v1580 = vpack.c.bf16 %v1551, %v1550
  %v1581 = vpack.c.bf16 %v1553, %v1552
  %v1582 = vpack.c.bf16 %v1555, %v1554
  %v1583 = vpack.c.bf16 %v1557, %v1556
  %v1584 = vpack.c.bf16 %v1559, %v1558
  %v1585 = vpack.c.bf16 %v1561, %v1560
  %v1586 = vpack.c.bf16 %v1563, %v1562
  %v1587 = vpack.c.bf16 %v1565, %v1564
  %v1588 = vpack.c.bf16 %v1567, %v1566
  %v1589 = vpack.c.bf16 %v1569, %v1568
  %v1590 = vpack.c.bf16 %v1571, %v1570
  %v1591 = vpack.c.bf16 %v1573, %v1572
  %v1592 = vpack.c.bf16 %v1575, %v1574
  %v1593 = vpack.c.bf16 %v1577, %v1576
  %v1594 = vld [vmem:[%s1 + $0x180] sm:$0xff]
  %v1595 = vld [vmem:[%s1 + $0x188] sm:$0xff]
  %v1596 = vld [vmem:[%s1 + $0x190] sm:$0xff]
  %v1597 = vld [vmem:[%s1 + $0x198] sm:$0xff]
  %v1598 = vld [vmem:[%s1 + $0x1a0] sm:$0xff]
  %v1599 = vld [vmem:[%s1 + $0x1a8] sm:$0xff]
  %v1600 = vld [vmem:[%s1 + $0x1b0] sm:$0xff]
  %v1601 = vld [vmem:[%s1 + $0x1b8] sm:$0xff]
  %v1602 = vld [vmem:[%s1 + $0x1c0] sm:$0xff]
  %v1603 = vld [vmem:[%s1 + $0x1c8] sm:$0xff]
  %v1604 = vld [vmem:[%s1 + $0x1d0] sm:$0xff]
  %v1605 = vld [vmem:[%s1 + $0x1d8] sm:$0xff]
  %v1618 = vunpack.c.l.b16 %v1594
  %v1619 = vunpack.c.h.b16 %v1594
  %v1620 = vunpack.c.l.b16 %v1595
  %v1621 = vunpack.c.h.b16 %v1595
  %v1622 = vunpack.c.l.b16 %v1596
  %v1623 = vunpack.c.h.b16 %v1596
  %v1624 = vunpack.c.l.b16 %v1597
  %v1625 = vunpack.c.h.b16 %v1597
  %v1626 = vunpack.c.l.b16 %v1598
  %v1627 = vunpack.c.h.b16 %v1598
  %v1628 = vunpack.c.l.b16 %v1599
  %v1629 = vunpack.c.h.b16 %v1599
  %v1630 = vunpack.c.l.b16 %v1600
  %v1631 = vunpack.c.h.b16 %v1600
  %v1632 = vunpack.c.l.b16 %v1601
  %v1633 = vunpack.c.h.b16 %v1601
  %v1634 = vunpack.c.l.b16 %v1602
  %v1635 = vunpack.c.h.b16 %v1602
  %v1636 = vunpack.c.l.b16 %v1603
  %v1637 = vunpack.c.h.b16 %v1603
  %v1638 = vunpack.c.l.b16 %v1604
  %v1639 = vunpack.c.h.b16 %v1604
  %v1640 = vunpack.c.l.b16 %v1605
  %v1641 = vunpack.c.h.b16 %v1605
  %v1642 = vpack.c.b16 %v1620, %v1618
  %v1643 = vpack.c.b16 %v1621, %v1619
  %v1644 = vpack.c.b16 %v1624, %v1622
  %v1645 = vpack.c.b16 %v1625, %v1623
  %v1646 = vpack.c.b16 %v1628, %v1626
  %v1647 = vpack.c.b16 %v1629, %v1627
  %v1648 = vpack.c.b16 %v1632, %v1630
  %v1649 = vpack.c.b16 %v1633, %v1631
  %v1650 = vpack.c.b16 %v1636, %v1634
  %v1651 = vpack.c.b16 %v1637, %v1635
  %v1652 = vpack.c.b16 %v1640, %v1638
  %v1653 = vpack.c.b16 %v1641, %v1639
  %v1667 = vsel %vm213, %v1578, 0
  %v1670 = vsel %vm213, %v1579, 0
  %v1673 = vsel %vm213, %v1580, 0
  %v1676 = vsel %vm213, %v1581, 0
  %v1679 = vsel %vm213, %v1582, 0
  %v1682 = vsel %vm213, %v1583, 0
  %v1685 = vsel %vm213, %v1584, 0
  %v1688 = vsel %vm213, %v1585, 0
  %v1691 = vsel %vm213, %v1586, 0
  %v1694 = vsel %vm213, %v1587, 0
  %v1697 = vsel %vm213, %v1588, 0
  %v1700 = vsel %vm213, %v1589, 0
  %v1703 = vsel %vm213, %v1590, 0
  %v1706 = vsel %vm213, %v1591, 0
  %v1709 = vsel %vm213, %v1592, 0
  %v1712 = vsel %vm213, %v1593, 0
  %1714 = vmatpush.bf16.msra.mxu0 0
  %1715 = vmatpush.bf16.msra.mxu0 0
  %1716 = vmatpush.bf16.msra.mxu0 %v1652
  %1717 = vmatpush.bf16.msra.mxu0 %v1650
  %1718 = vmatpush.bf16.msra.mxu0 %v1648
  %1719 = vmatpush.bf16.msra.mxu0 %v1646
  %1720 = vmatpush.bf16.msra.mxu0 %v1644
  %1721 = vmatpush.bf16.msra.mxu0 %v1642
  %1722 = vmatmul.bf16.gmra.mxu0 %v1667
  %v1723 = vpop.f32.mrf.mxu0
  %v1724 = vadd.f32 0.0, %v1723
  %v1725 = vpop.f32.mrf.mxu0
  %v1726 = vadd.f32 0.0, %v1725
  %1727 = vmatmul.bf16.gmra.mxu0 %v1670
  %v1728 = vpop.f32.mrf.mxu0
  %v1729 = vadd.f32 0.0, %v1728
  %v1730 = vpop.f32.mrf.mxu0
  %v1731 = vadd.f32 0.0, %v1730
  %1732 = vmatmul.bf16.gmra.mxu0 %v1673
  %v1733 = vpop.f32.mrf.mxu0
  %v1734 = vadd.f32 0.0, %v1733
  %v1735 = vpop.f32.mrf.mxu0
  %v1736 = vadd.f32 0.0, %v1735
  %1737 = vmatmul.bf16.gmra.mxu0 %v1676
  %v1738 = vpop.f32.mrf.mxu0
  %v1739 = vadd.f32 0.0, %v1738
  %v1740 = vpop.f32.mrf.mxu0
  %v1741 = vadd.f32 0.0, %v1740
  %1742 = vmatmul.bf16.gmra.mxu0 %v1679
  %v1743 = vpop.f32.mrf.mxu0
  %v1744 = vadd.f32 0.0, %v1743
  %v1745 = vpop.f32.mrf.mxu0
  %v1746 = vadd.f32 0.0, %v1745
  %1747 = vmatmul.bf16.gmra.mxu0 %v1682
  %v1748 = vpop.f32.mrf.mxu0
  %v1749 = vadd.f32 0.0, %v1748
  %v1750 = vpop.f32.mrf.mxu0
  %v1751 = vadd.f32 0.0, %v1750
  %1752 = vmatmul.bf16.gmra.mxu0 %v1685
  %v1753 = vpop.f32.mrf.mxu0
  %v1754 = vadd.f32 0.0, %v1753
  %v1755 = vpop.f32.mrf.mxu0
  %v1756 = vadd.f32 0.0, %v1755
  %1757 = vmatmul.bf16.gmra.mxu0 %v1688
  %v1758 = vpop.f32.mrf.mxu0
  %v1759 = vadd.f32 0.0, %v1758
  %v1760 = vpop.f32.mrf.mxu0
  %v1761 = vadd.f32 0.0, %v1760
  %1762 = vmatmul.bf16.gmra.mxu0 %v1691
  %v1763 = vpop.f32.mrf.mxu0
  %v1764 = vadd.f32 0.0, %v1763
  %v1765 = vpop.f32.mrf.mxu0
  %v1766 = vadd.f32 0.0, %v1765
  %1767 = vmatmul.bf16.gmra.mxu0 %v1694
  %v1768 = vpop.f32.mrf.mxu0
  %v1769 = vadd.f32 0.0, %v1768
  %v1770 = vpop.f32.mrf.mxu0
  %v1771 = vadd.f32 0.0, %v1770
  %1772 = vmatmul.bf16.gmra.mxu0 %v1697
  %v1773 = vpop.f32.mrf.mxu0
  %v1774 = vadd.f32 0.0, %v1773
  %v1775 = vpop.f32.mrf.mxu0
  %v1776 = vadd.f32 0.0, %v1775
  %1777 = vmatmul.bf16.gmra.mxu0 %v1700
  %v1778 = vpop.f32.mrf.mxu0
  %v1779 = vadd.f32 0.0, %v1778
  %v1780 = vpop.f32.mrf.mxu0
  %v1781 = vadd.f32 0.0, %v1780
  %1782 = vmatmul.bf16.gmra.mxu0 %v1703
  %v1783 = vpop.f32.mrf.mxu0
  %v1784 = vadd.f32 0.0, %v1783
  %v1785 = vpop.f32.mrf.mxu0
  %v1786 = vadd.f32 0.0, %v1785
  %1787 = vmatmul.bf16.gmra.mxu0 %v1706
  %v1788 = vpop.f32.mrf.mxu0
  %v1789 = vadd.f32 0.0, %v1788
  %v1790 = vpop.f32.mrf.mxu0
  %v1791 = vadd.f32 0.0, %v1790
  %1792 = vmatmul.bf16.gmra.mxu0 %v1709
  %v1793 = vpop.f32.mrf.mxu0
  %v1794 = vadd.f32 0.0, %v1793
  %v1795 = vpop.f32.mrf.mxu0
  %v1796 = vadd.f32 0.0, %v1795
  %1797 = vmatmul.bf16.gmra.mxu0 %v1712
  %v1798 = vpop.f32.mrf.mxu0
  %v1799 = vadd.f32 0.0, %v1798
  %v1800 = vpop.f32.mrf.mxu0
  %v1801 = vadd.f32 0.0, %v1800
  %1802 = vdwg.mxu0
  %1803 = vmatpush.bf16.msra.mxu0 0
  %1804 = vmatpush.bf16.msra.mxu0 0
  %1805 = vmatpush.bf16.msra.mxu0 %v1653
  %1806 = vmatpush.bf16.msra.mxu0 %v1651
  %1807 = vmatpush.bf16.msra.mxu0 %v1649
  %1808 = vmatpush.bf16.msra.mxu0 %v1647
  %1809 = vmatpush.bf16.msra.mxu0 %v1645
  %1810 = vmatpush.bf16.msra.mxu0 %v1643
  %1811 = vmatmul.bf16.gmra.mxu0 %v1667
  %v1812 = vpop.f32.mrf.mxu0
  %v1813 = vadd.f32 0.0, %v1812
  %v1814 = vpop.f32.mrf.mxu0
  %v1815 = vadd.f32 0.0, %v1814
  %1816 = vmatmul.bf16.gmra.mxu0 %v1670
  %v1817 = vpop.f32.mrf.mxu0
  %v1818 = vadd.f32 0.0, %v1817
  %v1819 = vpop.f32.mrf.mxu0
  %v1820 = vadd.f32 0.0, %v1819
  %1821 = vmatmul.bf16.gmra.mxu0 %v1673
  %v1822 = vpop.f32.mrf.mxu0
  %v1823 = vadd.f32 0.0, %v1822
  %v1824 = vpop.f32.mrf.mxu0
  %v1825 = vadd.f32 0.0, %v1824
  %1826 = vmatmul.bf16.gmra.mxu0 %v1676
  %v1827 = vpop.f32.mrf.mxu0
  %v1828 = vadd.f32 0.0, %v1827
  %v1829 = vpop.f32.mrf.mxu0
  %v1830 = vadd.f32 0.0, %v1829
  %1831 = vmatmul.bf16.gmra.mxu0 %v1679
  %v1832 = vpop.f32.mrf.mxu0
  %v1833 = vadd.f32 0.0, %v1832
  %v1834 = vpop.f32.mrf.mxu0
  %v1835 = vadd.f32 0.0, %v1834
  %1836 = vmatmul.bf16.gmra.mxu0 %v1682
  %v1837 = vpop.f32.mrf.mxu0
  %v1838 = vadd.f32 0.0, %v1837
  %v1839 = vpop.f32.mrf.mxu0
  %v1840 = vadd.f32 0.0, %v1839
  %1841 = vmatmul.bf16.gmra.mxu0 %v1685
  %v1842 = vpop.f32.mrf.mxu0
  %v1843 = vadd.f32 0.0, %v1842
  %v1844 = vpop.f32.mrf.mxu0
  %v1845 = vadd.f32 0.0, %v1844
  %1846 = vmatmul.bf16.gmra.mxu0 %v1688
  %v1847 = vpop.f32.mrf.mxu0
  %v1848 = vadd.f32 0.0, %v1847
  %v1849 = vpop.f32.mrf.mxu0
  %v1850 = vadd.f32 0.0, %v1849
  %1851 = vmatmul.bf16.gmra.mxu0 %v1691
  %v1852 = vpop.f32.mrf.mxu0
  %v1853 = vadd.f32 0.0, %v1852
  %v1854 = vpop.f32.mrf.mxu0
  %v1855 = vadd.f32 0.0, %v1854
  %1856 = vmatmul.bf16.gmra.mxu0 %v1694
  %v1857 = vpop.f32.mrf.mxu0
  %v1858 = vadd.f32 0.0, %v1857
  %v1859 = vpop.f32.mrf.mxu0
  %v1860 = vadd.f32 0.0, %v1859
  %1861 = vmatmul.bf16.gmra.mxu0 %v1697
  %v1862 = vpop.f32.mrf.mxu0
  %v1863 = vadd.f32 0.0, %v1862
  %v1864 = vpop.f32.mrf.mxu0
  %v1865 = vadd.f32 0.0, %v1864
  %1866 = vmatmul.bf16.gmra.mxu0 %v1700
  %v1867 = vpop.f32.mrf.mxu0
  %v1868 = vadd.f32 0.0, %v1867
  %v1869 = vpop.f32.mrf.mxu0
  %v1870 = vadd.f32 0.0, %v1869
  %1871 = vmatmul.bf16.gmra.mxu0 %v1703
  %v1872 = vpop.f32.mrf.mxu0
  %v1873 = vadd.f32 0.0, %v1872
  %v1874 = vpop.f32.mrf.mxu0
  %v1875 = vadd.f32 0.0, %v1874
  %1876 = vmatmul.bf16.gmra.mxu0 %v1706
  %v1877 = vpop.f32.mrf.mxu0
  %v1878 = vadd.f32 0.0, %v1877
  %v1879 = vpop.f32.mrf.mxu0
  %v1880 = vadd.f32 0.0, %v1879
  %1881 = vmatmul.bf16.gmra.mxu0 %v1709
  %v1882 = vpop.f32.mrf.mxu0
  %v1883 = vadd.f32 0.0, %v1882
  %v1884 = vpop.f32.mrf.mxu0
  %v1885 = vadd.f32 0.0, %v1884
  %1886 = vmatmul.bf16.gmra.mxu0 %v1712
  %v1887 = vpop.f32.mrf.mxu0
  %v1888 = vadd.f32 0.0, %v1887
  %v1889 = vpop.f32.mrf.mxu0
  %v1890 = vadd.f32 0.0, %v1889
  %1891 = vdwg.mxu0
  %v1892 = vadd.f32 %v1482, %v1724
  %v1893 = vadd.f32 %v1483, %v1813
  %v1894 = vadd.f32 %v1484, %v1726
  %v1895 = vadd.f32 %v1485, %v1815
  %v1896 = vadd.f32 %v1486, %v1729
  %v1897 = vadd.f32 %v1487, %v1818
  %v1898 = vadd.f32 %v1488, %v1731
  %v1899 = vadd.f32 %v1489, %v1820
  %v1900 = vadd.f32 %v1490, %v1734
  %v1901 = vadd.f32 %v1491, %v1823
  %v1902 = vadd.f32 %v1492, %v1736
  %v1903 = vadd.f32 %v1493, %v1825
  %v1904 = vadd.f32 %v1494, %v1739
  %v1905 = vadd.f32 %v1495, %v1828
  %v1906 = vadd.f32 %v1496, %v1741
  %v1907 = vadd.f32 %v1497, %v1830
  %v1908 = vadd.f32 %v1498, %v1744
  %v1909 = vadd.f32 %v1499, %v1833
  %v1910 = vadd.f32 %v1500, %v1746
  %v1911 = vadd.f32 %v1501, %v1835
  %v1912 = vadd.f32 %v1502, %v1749
  %v1913 = vadd.f32 %v1503, %v1838
  %v1914 = vadd.f32 %v1504, %v1751
  %v1915 = vadd.f32 %v1505, %v1840
  %v1916 = vadd.f32 %v1506, %v1754
  %v1917 = vadd.f32 %v1507, %v1843
  %v1918 = vadd.f32 %v1508, %v1756
  %v1919 = vadd.f32 %v1509, %v1845
  %v1920 = vadd.f32 %v1510, %v1759
  %v1921 = vadd.f32 %v1511, %v1848
  %v1922 = vadd.f32 %v1512, %v1761
  %v1923 = vadd.f32 %v1513, %v1850
  %v1924 = vadd.f32 %v1514, %v1764
  %v1925 = vadd.f32 %v1515, %v1853
  %v1926 = vadd.f32 %v1516, %v1766
  %v1927 = vadd.f32 %v1517, %v1855
  %v1928 = vadd.f32 %v1518, %v1769
  %v1929 = vadd.f32 %v1519, %v1858
  %v1930 = vadd.f32 %v1520, %v1771
  %v1931 = vadd.f32 %v1521, %v1860
  %v1932 = vadd.f32 %v1522, %v1774
  %v1933 = vadd.f32 %v1523, %v1863
  %v1934 = vadd.f32 %v1524, %v1776
  %v1935 = vadd.f32 %v1525, %v1865
  %v1936 = vadd.f32 %v1526, %v1779
  %v1937 = vadd.f32 %v1527, %v1868
  %v1938 = vadd.f32 %v1528, %v1781
  %v1939 = vadd.f32 %v1529, %v1870
  %v1940 = vadd.f32 %v1530, %v1784
  %v1941 = vadd.f32 %v1531, %v1873
  %v1942 = vadd.f32 %v1532, %v1786
  %v1943 = vadd.f32 %v1533, %v1875
  %v1944 = vadd.f32 %v1534, %v1789
  %v1945 = vadd.f32 %v1535, %v1878
  %v1946 = vadd.f32 %v1536, %v1791
  %v1947 = vadd.f32 %v1537, %v1880
  %v1948 = vadd.f32 %v1538, %v1794
  %v1949 = vadd.f32 %v1539, %v1883
  %v1950 = vadd.f32 %v1540, %v1796
  %v1951 = vadd.f32 %v1541, %v1885
  %v1952 = vadd.f32 %v1542, %v1799
  %v1953 = vadd.f32 %v1543, %v1888
  %v1954 = vadd.f32 %v1544, %v1801
  %v1955 = vadd.f32 %v1545, %v1890
  %v1956 = vld [vmem:[%s2] sm:$0x3]
  %v1958 = vperm.slane %v1956, 0
  %v1959 = vperm.slane %v1956, 1
  %v1962 = vadd.f32 %v1892, %v1958
  %v1963 = vadd.f32 %v1893, %v1959
  %v1964 = vadd.f32 %v1894, %v1958
  %v1965 = vadd.f32 %v1895, %v1959
  %v1966 = vadd.f32 %v1896, %v1958
  %v1967 = vadd.f32 %v1897, %v1959
  %v1968 = vadd.f32 %v1898, %v1958
  %v1969 = vadd.f32 %v1899, %v1959
  %v1970 = vadd.f32 %v1900, %v1958
  %v1971 = vadd.f32 %v1901, %v1959
  %v1972 = vadd.f32 %v1902, %v1958
  %v1973 = vadd.f32 %v1903, %v1959
  %v1974 = vadd.f32 %v1904, %v1958
  %v1975 = vadd.f32 %v1905, %v1959
  %v1976 = vadd.f32 %v1906, %v1958
  %v1977 = vadd.f32 %v1907, %v1959
  %v1978 = vadd.f32 %v1908, %v1958
  %v1979 = vadd.f32 %v1909, %v1959
  %v1980 = vadd.f32 %v1910, %v1958
  %v1981 = vadd.f32 %v1911, %v1959
  %v1982 = vadd.f32 %v1912, %v1958
  %v1983 = vadd.f32 %v1913, %v1959
  %v1984 = vadd.f32 %v1914, %v1958
  %v1985 = vadd.f32 %v1915, %v1959
  %v1986 = vadd.f32 %v1916, %v1958
  %v1987 = vadd.f32 %v1917, %v1959
  %v1988 = vadd.f32 %v1918, %v1958
  %v1989 = vadd.f32 %v1919, %v1959
  %v1990 = vadd.f32 %v1920, %v1958
  %v1991 = vadd.f32 %v1921, %v1959
  %v1992 = vadd.f32 %v1922, %v1958
  %v1993 = vadd.f32 %v1923, %v1959
  %v1994 = vadd.f32 %v1924, %v1958
  %v1995 = vadd.f32 %v1925, %v1959
  %v1996 = vadd.f32 %v1926, %v1958
  %v1997 = vadd.f32 %v1927, %v1959
  %v1998 = vadd.f32 %v1928, %v1958
  %v1999 = vadd.f32 %v1929, %v1959
  %v2000 = vadd.f32 %v1930, %v1958
  %v2001 = vadd.f32 %v1931, %v1959
  %v2002 = vadd.f32 %v1932, %v1958
  %v2003 = vadd.f32 %v1933, %v1959
  %v2004 = vadd.f32 %v1934, %v1958
  %v2005 = vadd.f32 %v1935, %v1959
  %v2006 = vadd.f32 %v1936, %v1958
  %v2007 = vadd.f32 %v1937, %v1959
  %v2008 = vadd.f32 %v1938, %v1958
  %v2009 = vadd.f32 %v1939, %v1959
  %v2010 = vadd.f32 %v1940, %v1958
  %v2011 = vadd.f32 %v1941, %v1959
  %v2012 = vadd.f32 %v1942, %v1958
  %v2013 = vadd.f32 %v1943, %v1959
  %v2014 = vadd.f32 %v1944, %v1958
  %v2015 = vadd.f32 %v1945, %v1959
  %v2016 = vadd.f32 %v1946, %v1958
  %v2017 = vadd.f32 %v1947, %v1959
  %v2018 = vadd.f32 %v1948, %v1958
  %v2019 = vadd.f32 %v1949, %v1959
  %v2020 = vadd.f32 %v1950, %v1958
  %v2021 = vadd.f32 %v1951, %v1959
  %v2022 = vadd.f32 %v1952, %v1958
  %v2023 = vadd.f32 %v1953, %v1959
  %v2024 = vadd.f32 %v1954, %v1958
  %v2025 = vadd.f32 %v1955, %v1959
  %v2026 = vmax.f32 %v1962, 0.0
  %v2027 = vmax.f32 %v1963, 0.0
  %v2028 = vmax.f32 %v1964, 0.0
  %v2029 = vmax.f32 %v1965, 0.0
  %v2030 = vmax.f32 %v1966, 0.0
  %v2031 = vmax.f32 %v1967, 0.0
  %v2032 = vmax.f32 %v1968, 0.0
  %v2033 = vmax.f32 %v1969, 0.0
  %v2034 = vmax.f32 %v1970, 0.0
  %v2035 = vmax.f32 %v1971, 0.0
  %v2036 = vmax.f32 %v1972, 0.0
  %v2037 = vmax.f32 %v1973, 0.0
  %v2038 = vmax.f32 %v1974, 0.0
  %v2039 = vmax.f32 %v1975, 0.0
  %v2040 = vmax.f32 %v1976, 0.0
  %v2041 = vmax.f32 %v1977, 0.0
  %v2042 = vmax.f32 %v1978, 0.0
  %v2043 = vmax.f32 %v1979, 0.0
  %v2044 = vmax.f32 %v1980, 0.0
  %v2045 = vmax.f32 %v1981, 0.0
  %v2046 = vmax.f32 %v1982, 0.0
  %v2047 = vmax.f32 %v1983, 0.0
  %v2048 = vmax.f32 %v1984, 0.0
  %v2049 = vmax.f32 %v1985, 0.0
  %v2050 = vmax.f32 %v1986, 0.0
  %v2051 = vmax.f32 %v1987, 0.0
  %v2052 = vmax.f32 %v1988, 0.0
  %v2053 = vmax.f32 %v1989, 0.0
  %v2054 = vmax.f32 %v1990, 0.0
  %v2055 = vmax.f32 %v1991, 0.0
  %v2056 = vmax.f32 %v1992, 0.0
  %v2057 = vmax.f32 %v1993, 0.0
  %v2058 = vmax.f32 %v1994, 0.0
  %v2059 = vmax.f32 %v1995, 0.0
  %v2060 = vmax.f32 %v1996, 0.0
  %v2061 = vmax.f32 %v1997, 0.0
  %v2062 = vmax.f32 %v1998, 0.0
  %v2063 = vmax.f32 %v1999, 0.0
  %v2064 = vmax.f32 %v2000, 0.0
  %v2065 = vmax.f32 %v2001, 0.0
  %v2066 = vmax.f32 %v2002, 0.0
  %v2067 = vmax.f32 %v2003, 0.0
  %v2068 = vmax.f32 %v2004, 0.0
  %v2069 = vmax.f32 %v2005, 0.0
  %v2070 = vmax.f32 %v2006, 0.0
  %v2071 = vmax.f32 %v2007, 0.0
  %v2072 = vmax.f32 %v2008, 0.0
  %v2073 = vmax.f32 %v2009, 0.0
  %v2074 = vmax.f32 %v2010, 0.0
  %v2075 = vmax.f32 %v2011, 0.0
  %v2076 = vmax.f32 %v2012, 0.0
  %v2077 = vmax.f32 %v2013, 0.0
  %v2078 = vmax.f32 %v2014, 0.0
  %v2079 = vmax.f32 %v2015, 0.0
  %v2080 = vmax.f32 %v2016, 0.0
  %v2081 = vmax.f32 %v2017, 0.0
  %v2082 = vmax.f32 %v2018, 0.0
  %v2083 = vmax.f32 %v2019, 0.0
  %v2084 = vmax.f32 %v2020, 0.0
  %v2085 = vmax.f32 %v2021, 0.0
  %v2086 = vmax.f32 %v2022, 0.0
  %v2087 = vmax.f32 %v2023, 0.0
  %v2088 = vmax.f32 %v2024, 0.0
  %v2089 = vmax.f32 %v2025, 0.0
  %2154 = vrot.lane.b32.xlu0 %v2026, 44
  %v2155 = vpop.permute.xlu0 %2154
  %2156 = vrot.lane.b32.xlu0 %v2027, 44
  %v2157 = vpop.permute.xlu0 %2156
  %2158 = vrot.lane.b32.xlu0 %v2028, 44
  %v2159 = vpop.permute.xlu0 %2158
  %2160 = vrot.lane.b32.xlu0 %v2029, 44
  %v2161 = vpop.permute.xlu0 %2160
  %2162 = vrot.lane.b32.xlu0 %v2030, 44
  %v2163 = vpop.permute.xlu0 %2162
  %2164 = vrot.lane.b32.xlu0 %v2031, 44
  %v2165 = vpop.permute.xlu0 %2164
  %2166 = vrot.lane.b32.xlu0 %v2032, 44
  %v2167 = vpop.permute.xlu0 %2166
  %2168 = vrot.lane.b32.xlu0 %v2033, 44
  %v2169 = vpop.permute.xlu0 %2168
  %2170 = vrot.lane.b32.xlu0 %v2034, 44
  %v2171 = vpop.permute.xlu0 %2170
  %2172 = vrot.lane.b32.xlu0 %v2035, 44
  %v2173 = vpop.permute.xlu0 %2172
  %2174 = vrot.lane.b32.xlu0 %v2036, 44
  %v2175 = vpop.permute.xlu0 %2174
  %2176 = vrot.lane.b32.xlu0 %v2037, 44
  %v2177 = vpop.permute.xlu0 %2176
  %2178 = vrot.lane.b32.xlu0 %v2038, 44
  %v2179 = vpop.permute.xlu0 %2178
  %2180 = vrot.lane.b32.xlu0 %v2039, 44
  %v2181 = vpop.permute.xlu0 %2180
  %2182 = vrot.lane.b32.xlu0 %v2040, 44
  %v2183 = vpop.permute.xlu0 %2182
  %2184 = vrot.lane.b32.xlu0 %v2041, 44
  %v2185 = vpop.permute.xlu0 %2184
  %2186 = vrot.lane.b32.xlu0 %v2042, 44
  %v2187 = vpop.permute.xlu0 %2186
  %2188 = vrot.lane.b32.xlu0 %v2043, 44
  %v2189 = vpop.permute.xlu0 %2188
  %2190 = vrot.lane.b32.xlu0 %v2044, 44
  %v2191 = vpop.permute.xlu0 %2190
  %2192 = vrot.lane.b32.xlu0 %v2045, 44
  %v2193 = vpop.permute.xlu0 %2192
  %2194 = vrot.lane.b32.xlu0 %v2046, 44
  %v2195 = vpop.permute.xlu0 %2194
  %2196 = vrot.lane.b32.xlu0 %v2047, 44
  %v2197 = vpop.permute.xlu0 %2196
  %2198 = vrot.lane.b32.xlu0 %v2048, 44
  %v2199 = vpop.permute.xlu0 %2198
  %2200 = vrot.lane.b32.xlu0 %v2049, 44
  %v2201 = vpop.permute.xlu0 %2200
  %2202 = vrot.lane.b32.xlu0 %v2050, 44
  %v2203 = vpop.permute.xlu0 %2202
  %2204 = vrot.lane.b32.xlu0 %v2051, 44
  %v2205 = vpop.permute.xlu0 %2204
  %2206 = vrot.lane.b32.xlu0 %v2052, 44
  %v2207 = vpop.permute.xlu0 %2206
  %2208 = vrot.lane.b32.xlu0 %v2053, 44
  %v2209 = vpop.permute.xlu0 %2208
  %2210 = vrot.lane.b32.xlu0 %v2054, 44
  %v2211 = vpop.permute.xlu0 %2210
  %2212 = vrot.lane.b32.xlu0 %v2055, 44
  %v2213 = vpop.permute.xlu0 %2212
  %2214 = vrot.lane.b32.xlu0 %v2056, 44
  %v2215 = vpop.permute.xlu0 %2214
  %2216 = vrot.lane.b32.xlu0 %v2057, 44
  %v2217 = vpop.permute.xlu0 %2216
  %2218 = vrot.lane.b32.xlu0 %v2058, 44
  %v2219 = vpop.permute.xlu0 %2218
  %2220 = vrot.lane.b32.xlu0 %v2059, 44
  %v2221 = vpop.permute.xlu0 %2220
  %2222 = vrot.lane.b32.xlu0 %v2060, 44
  %v2223 = vpop.permute.xlu0 %2222
  %2224 = vrot.lane.b32.xlu0 %v2061, 44
  %v2225 = vpop.permute.xlu0 %2224
  %2226 = vrot.lane.b32.xlu0 %v2062, 44
  %v2227 = vpop.permute.xlu0 %2226
  %2228 = vrot.lane.b32.xlu0 %v2063, 44
  %v2229 = vpop.permute.xlu0 %2228
  %2230 = vrot.lane.b32.xlu0 %v2064, 44
  %v2231 = vpop.permute.xlu0 %2230
  %2232 = vrot.lane.b32.xlu0 %v2065, 44
  %v2233 = vpop.permute.xlu0 %2232
  %2234 = vrot.lane.b32.xlu0 %v2066, 44
  %v2235 = vpop.permute.xlu0 %2234
  %2236 = vrot.lane.b32.xlu0 %v2067, 44
  %v2237 = vpop.permute.xlu0 %2236
  %2238 = vrot.lane.b32.xlu0 %v2068, 44
  %v2239 = vpop.permute.xlu0 %2238
  %2240 = vrot.lane.b32.xlu0 %v2069, 44
  %v2241 = vpop.permute.xlu0 %2240
  %2242 = vrot.lane.b32.xlu0 %v2070, 44
  %v2243 = vpop.permute.xlu0 %2242
  %2244 = vrot.lane.b32.xlu0 %v2071, 44
  %v2245 = vpop.permute.xlu0 %2244
  %2246 = vrot.lane.b32.xlu0 %v2072, 44
  %v2247 = vpop.permute.xlu0 %2246
  %2248 = vrot.lane.b32.xlu0 %v2073, 44
  %v2249 = vpop.permute.xlu0 %2248
  %2250 = vrot.lane.b32.xlu0 %v2074, 44
  %v2251 = vpop.permute.xlu0 %2250
  %2252 = vrot.lane.b32.xlu0 %v2075, 44
  %v2253 = vpop.permute.xlu0 %2252
  %2254 = vrot.lane.b32.xlu0 %v2076, 44
  %v2255 = vpop.permute.xlu0 %2254
  %2256 = vrot.lane.b32.xlu0 %v2077, 44
  %v2257 = vpop.permute.xlu0 %2256
  %2258 = vrot.lane.b32.xlu0 %v2078, 44
  %v2259 = vpop.permute.xlu0 %2258
  %2260 = vrot.lane.b32.xlu0 %v2079, 44
  %v2261 = vpop.permute.xlu0 %2260
  %2262 = vrot.lane.b32.xlu0 %v2080, 44
  %v2263 = vpop.permute.xlu0 %2262
  %2264 = vrot.lane.b32.xlu0 %v2081, 44
  %v2265 = vpop.permute.xlu0 %2264
  %2266 = vrot.lane.b32.xlu0 %v2082, 44
  %v2267 = vpop.permute.xlu0 %2266
  %2268 = vrot.lane.b32.xlu0 %v2083, 44
  %v2269 = vpop.permute.xlu0 %2268
  %2270 = vrot.lane.b32.xlu0 %v2084, 44
  %v2271 = vpop.permute.xlu0 %2270
  %2272 = vrot.lane.b32.xlu0 %v2085, 44
  %v2273 = vpop.permute.xlu0 %2272
  %2274 = vrot.lane.b32.xlu0 %v2086, 44
  %v2275 = vpop.permute.xlu0 %2274
  %2276 = vrot.lane.b32.xlu0 %v2087, 44
  %v2277 = vpop.permute.xlu0 %2276
  %2278 = vrot.lane.b32.xlu0 %v2088, 44
  %v2279 = vpop.permute.xlu0 %2278
  %2280 = vrot.lane.b32.xlu0 %v2089, 44
  %v2281 = vpop.permute.xlu0 %2280
  %vm2282 = vcmask 359424
  %v2283 = vsel %vm2282, %v2155, %v2157
  %v2284 = vsel %vm2282, %v2159, %v2161
  %v2285 = vsel %vm2282, %v2163, %v2165
  %v2286 = vsel %vm2282, %v2167, %v2169
  %v2287 = vsel %vm2282, %v2171, %v2173
  %v2288 = vsel %vm2282, %v2175, %v2177
  %v2289 = vsel %vm2282, %v2179, %v2181
  %v2290 = vsel %vm2282, %v2183, %v2185
  %v2291 = vsel %vm2282, %v2187, %v2189
  %v2292 = vsel %vm2282, %v2191, %v2193
  %v2293 = vsel %vm2282, %v2195, %v2197
  %v2294 = vsel %vm2282, %v2199, %v2201
  %v2295 = vsel %vm2282, %v2203, %v2205
  %v2296 = vsel %vm2282, %v2207, %v2209
  %v2297 = vsel %vm2282, %v2211, %v2213
  %v2298 = vsel %vm2282, %v2215, %v2217
  %v2299 = vsel %vm2282, %v2219, %v2221
  %v2300 = vsel %vm2282, %v2223, %v2225
  %v2301 = vsel %vm2282, %v2227, %v2229
  %v2302 = vsel %vm2282, %v2231, %v2233
  %v2303 = vsel %vm2282, %v2235, %v2237
  %v2304 = vsel %vm2282, %v2239, %v2241
  %v2305 = vsel %vm2282, %v2243, %v2245
  %v2306 = vsel %vm2282, %v2247, %v2249
  %v2307 = vsel %vm2282, %v2251, %v2253
  %v2308 = vsel %vm2282, %v2255, %v2257
  %v2309 = vsel %vm2282, %v2259, %v2261
  %v2310 = vsel %vm2282, %v2263, %v2265
  %v2311 = vsel %vm2282, %v2267, %v2269
  %v2312 = vsel %vm2282, %v2271, %v2273
  %v2313 = vsel %vm2282, %v2275, %v2277
  %v2314 = vsel %vm2282, %v2279, %v2281
  %v2347 = vmax.f32 %v2026, %v2283
  %v2348 = vmax.f32 %v2028, %v2284
  %v2349 = vmax.f32 %v2030, %v2285
  %v2350 = vmax.f32 %v2032, %v2286
  %v2351 = vmax.f32 %v2034, %v2287
  %v2352 = vmax.f32 %v2036, %v2288
  %v2353 = vmax.f32 %v2038, %v2289
  %v2354 = vmax.f32 %v2040, %v2290
  %v2355 = vmax.f32 %v2042, %v2291
  %v2356 = vmax.f32 %v2044, %v2292
  %v2357 = vmax.f32 %v2046, %v2293
  %v2358 = vmax.f32 %v2048, %v2294
  %v2359 = vmax.f32 %v2050, %v2295
  %v2360 = vmax.f32 %v2052, %v2296
  %v2361 = vmax.f32 %v2054, %v2297
  %v2362 = vmax.f32 %v2056, %v2298
  %v2363 = vmax.f32 %v2058, %v2299
  %v2364 = vmax.f32 %v2060, %v2300
  %v2365 = vmax.f32 %v2062, %v2301
  %v2366 = vmax.f32 %v2064, %v2302
  %v2367 = vmax.f32 %v2066, %v2303
  %v2368 = vmax.f32 %v2068, %v2304
  %v2369 = vmax.f32 %v2070, %v2305
  %v2370 = vmax.f32 %v2072, %v2306
  %v2371 = vmax.f32 %v2074, %v2307
  %v2372 = vmax.f32 %v2076, %v2308
  %v2373 = vmax.f32 %v2078, %v2309
  %v2374 = vmax.f32 %v2080, %v2310
  %v2375 = vmax.f32 %v2082, %v2311
  %v2376 = vmax.f32 %v2084, %v2312
  %v2377 = vmax.f32 %v2086, %v2313
  %v2378 = vmax.f32 %v2088, %v2314
  %vm2379 = vcmask 687104
  %2380 = vst.msk [vmem:[#allocation2] sm:$0xff] %vm2379, %v2347
  %2381 = vst.msk [vmem:[#allocation2 + $0x8] sm:$0xff] %vm2379, %v2348
  %2382 = vst.msk [vmem:[#allocation2 + $0x10] sm:$0xff] %vm2379, %v2349
  %2383 = vst.msk [vmem:[#allocation2 + $0x18] sm:$0xff] %vm2379, %v2350
  %2384 = vst.msk [vmem:[#allocation2 + $0x20] sm:$0xff] %vm2379, %v2351
  %2385 = vst.msk [vmem:[#allocation2 + $0x28] sm:$0xff] %vm2379, %v2352
  %2386 = vst.msk [vmem:[#allocation2 + $0x30] sm:$0xff] %vm2379, %v2353
  %2387 = vst.msk [vmem:[#allocation2 + $0x38] sm:$0xff] %vm2379, %v2354
  %2388 = vst.msk [vmem:[#allocation2 + $0x40] sm:$0xff] %vm2379, %v2355
  %2389 = vst.msk [vmem:[#allocation2 + $0x48] sm:$0xff] %vm2379, %v2356
  %2390 = vst.msk [vmem:[#allocation2 + $0x50] sm:$0xff] %vm2379, %v2357
  %2391 = vst.msk [vmem:[#allocation2 + $0x58] sm:$0xff] %vm2379, %v2358
  %2392 = vst.msk [vmem:[#allocation2 + $0x60] sm:$0xff] %vm2379, %v2359
  %2393 = vst.msk [vmem:[#allocation2 + $0x68] sm:$0xff] %vm2379, %v2360
  %2394 = vst.msk [vmem:[#allocation2 + $0x70] sm:$0xff] %vm2379, %v2361
  %2395 = vst.msk [vmem:[#allocation2 + $0x78] sm:$0xff] %vm2379, %v2362
  %2396 = vst.msk [vmem:[#allocation2 + $0x80] sm:$0xff] %vm2379, %v2363
  %2397 = vst.msk [vmem:[#allocation2 + $0x88] sm:$0xff] %vm2379, %v2364
  %2398 = vst.msk [vmem:[#allocation2 + $0x90] sm:$0xff] %vm2379, %v2365
  %2399 = vst.msk [vmem:[#allocation2 + $0x98] sm:$0xff] %vm2379, %v2366
  %2400 = vst.msk [vmem:[#allocation2 + $0xa0] sm:$0xff] %vm2379, %v2367
  %2401 = vst.msk [vmem:[#allocation2 + $0xa8] sm:$0xff] %vm2379, %v2368
  %2402 = vst.msk [vmem:[#allocation2 + $0xb0] sm:$0xff] %vm2379, %v2369
  %2403 = vst.msk [vmem:[#allocation2 + $0xb8] sm:$0xff] %vm2379, %v2370
  %2404 = vst.msk [vmem:[#allocation2 + $0xc0] sm:$0xff] %vm2379, %v2371
  %2405 = vst.msk [vmem:[#allocation2 + $0xc8] sm:$0xff] %vm2379, %v2372
  %2406 = vst.msk [vmem:[#allocation2 + $0xd0] sm:$0xff] %vm2379, %v2373
  %2407 = vst.msk [vmem:[#allocation2 + $0xd8] sm:$0xff] %vm2379, %v2374
  %2408 = vst.msk [vmem:[#allocation2 + $0xe0] sm:$0xff] %vm2379, %v2375
  %2409 = vst.msk [vmem:[#allocation2 + $0xe8] sm:$0xff] %vm2379, %v2376
  %2410 = vst.msk [vmem:[#allocation2 + $0xf0] sm:$0xff] %vm2379, %v2377
  %2411 = vst.msk [vmem:[#allocation2 + $0xf8] sm:$0xff] %vm2379, %v2378
  %v2412 = vld [vmem:[#allocation2] ss:$2 sm:$0xff]
  %s2413 = scalar_lea.vmem [#allocation2], 16
  %v2414 = vld [vmem:[%s2413] ss:$2 sm:$0xff]
  %s2415 = scalar_lea.vmem [#allocation2], 32
  %v2416 = vld [vmem:[%s2415] ss:$2 sm:$0xff]
  %s2417 = scalar_lea.vmem [#allocation2], 48
  %v2418 = vld [vmem:[%s2417] ss:$2 sm:$0xff]
  %s2419 = scalar_lea.vmem [#allocation2], 64
  %v2420 = vld [vmem:[%s2419] ss:$2 sm:$0xff]
  %s2421 = scalar_lea.vmem [#allocation2], 80
  %v2422 = vld [vmem:[%s2421] ss:$2 sm:$0xff]
  %s2423 = scalar_lea.vmem [#allocation2], 96
  %v2424 = vld [vmem:[%s2423] ss:$2 sm:$0xff]
  %s2425 = scalar_lea.vmem [#allocation2], 112
  %v2426 = vld [vmem:[%s2425] ss:$2 sm:$0xff]
  %s2427 = scalar_lea.vmem [#allocation2], 128
  %v2428 = vld [vmem:[%s2427] ss:$2 sm:$0xff]
  %s2429 = scalar_lea.vmem [#allocation2], 144
  %v2430 = vld [vmem:[%s2429] ss:$2 sm:$0xff]
  %s2431 = scalar_lea.vmem [#allocation2], 160
  %v2432 = vld [vmem:[%s2431] ss:$2 sm:$0xff]
  %s2433 = scalar_lea.vmem [#allocation2], 176
  %v2434 = vld [vmem:[%s2433] ss:$2 sm:$0xff]
  %s2435 = scalar_lea.vmem [#allocation2], 192
  %v2436 = vld [vmem:[%s2435] ss:$2 sm:$0xff]
  %s2437 = scalar_lea.vmem [#allocation2], 208
  %v2438 = vld [vmem:[%s2437] ss:$2 sm:$0xff]
  %s2439 = scalar_lea.vmem [#allocation2], 224
  %v2440 = vld [vmem:[%s2439] ss:$2 sm:$0xff]
  %s2441 = scalar_lea.vmem [#allocation2], 240
  %v2442 = vld [vmem:[%s2441] ss:$2 sm:$0xff]
  %s2443 = scalar_lea.vmem [#allocation2], 1
  %v2444 = vld [vmem:[%s2443] ss:$2 sm:$0xff]
  %s2445 = scalar_lea.vmem [#allocation2], 17
  %v2446 = vld [vmem:[%s2445] ss:$2 sm:$0xff]
  %s2447 = scalar_lea.vmem [#allocation2], 33
  %v2448 = vld [vmem:[%s2447] ss:$2 sm:$0xff]
  %s2449 = scalar_lea.vmem [#allocation2], 49
  %v2450 = vld [vmem:[%s2449] ss:$2 sm:$0xff]
  %s2451 = scalar_lea.vmem [#allocation2], 65
  %v2452 = vld [vmem:[%s2451] ss:$2 sm:$0xff]
  %s2453 = scalar_lea.vmem [#allocation2], 81
  %v2454 = vld [vmem:[%s2453] ss:$2 sm:$0xff]
  %s2455 = scalar_lea.vmem [#allocation2], 97
  %v2456 = vld [vmem:[%s2455] ss:$2 sm:$0xff]
  %s2457 = scalar_lea.vmem [#allocation2], 113
  %v2458 = vld [vmem:[%s2457] ss:$2 sm:$0xff]
  %s2459 = scalar_lea.vmem [#allocation2], 129
  %v2460 = vld [vmem:[%s2459] ss:$2 sm:$0xff]
  %s2461 = scalar_lea.vmem [#allocation2], 145
  %v2462 = vld [vmem:[%s2461] ss:$2 sm:$0xff]
  %s2463 = scalar_lea.vmem [#allocation2], 161
  %v2464 = vld [vmem:[%s2463] ss:$2 sm:$0xff]
  %s2465 = scalar_lea.vmem [#allocation2], 177
  %v2466 = vld [vmem:[%s2465] ss:$2 sm:$0xff]
  %s2467 = scalar_lea.vmem [#allocation2], 193
  %v2468 = vld [vmem:[%s2467] ss:$2 sm:$0xff]
  %s2469 = scalar_lea.vmem [#allocation2], 209
  %v2470 = vld [vmem:[%s2469] ss:$2 sm:$0xff]
  %s2471 = scalar_lea.vmem [#allocation2], 225
  %v2472 = vld [vmem:[%s2471] ss:$2 sm:$0xff]
  %s2473 = scalar_lea.vmem [#allocation2], 241
  %v2474 = vld [vmem:[%s2473] ss:$2 sm:$0xff]
  %v2475 = vmax.f32 %v2412, %v2444
  %v2476 = vmax.f32 %v2414, %v2446
  %v2477 = vmax.f32 %v2416, %v2448
  %v2478 = vmax.f32 %v2418, %v2450
  %v2479 = vmax.f32 %v2420, %v2452
  %v2480 = vmax.f32 %v2422, %v2454
  %v2481 = vmax.f32 %v2424, %v2456
  %v2482 = vmax.f32 %v2426, %v2458
  %v2483 = vmax.f32 %v2428, %v2460
  %v2484 = vmax.f32 %v2430, %v2462
  %v2485 = vmax.f32 %v2432, %v2464
  %v2486 = vmax.f32 %v2434, %v2466
  %v2487 = vmax.f32 %v2436, %v2468
  %v2488 = vmax.f32 %v2438, %v2470
  %v2489 = vmax.f32 %v2440, %v2472
  %v2490 = vmax.f32 %v2442, %v2474
  %2491 = vst.msk [vmem:[#allocation3] sm:$0xff] %vm2379, %v2475
  %2492 = vst.msk [vmem:[#allocation3 + $0x8] sm:$0xff] %vm2379, %v2476
  %2493 = vst.msk [vmem:[#allocation3 + $0x10] sm:$0xff] %vm2379, %v2477
  %2494 = vst.msk [vmem:[#allocation3 + $0x18] sm:$0xff] %vm2379, %v2478
  %2495 = vst.msk [vmem:[#allocation3 + $0x20] sm:$0xff] %vm2379, %v2479
  %2496 = vst.msk [vmem:[#allocation3 + $0x28] sm:$0xff] %vm2379, %v2480
  %2497 = vst.msk [vmem:[#allocation3 + $0x30] sm:$0xff] %vm2379, %v2481
  %2498 = vst.msk [vmem:[#allocation3 + $0x38] sm:$0xff] %vm2379, %v2482
  %2499 = vst.msk [vmem:[#allocation3 + $0x40] sm:$0xff] %vm2379, %v2483
  %2500 = vst.msk [vmem:[#allocation3 + $0x48] sm:$0xff] %vm2379, %v2484
  %2501 = vst.msk [vmem:[#allocation3 + $0x50] sm:$0xff] %vm2379, %v2485
  %2502 = vst.msk [vmem:[#allocation3 + $0x58] sm:$0xff] %vm2379, %v2486
  %2503 = vst.msk [vmem:[#allocation3 + $0x60] sm:$0xff] %vm2379, %v2487
  %2504 = vst.msk [vmem:[#allocation3 + $0x68] sm:$0xff] %vm2379, %v2488
  %2505 = vst.msk [vmem:[#allocation3 + $0x70] sm:$0xff] %vm2379, %v2489
  %2506 = vst.msk [vmem:[#allocation3 + $0x78] sm:$0xff] %vm2379, %v2490
  %2507 = vst.msk [vmem:[#allocation3 + $0x80] sm:$0xff] %vm2379, 0.0
  %v2508 = vld [vmem:[#allocation3] sm:$0xff]
  %v2509 = vld [vmem:[#allocation3 + $0x8] sm:$0xff]
  %v2510 = vld [vmem:[#allocation3 + $0x10] sm:$0xff]
  %v2511 = vld [vmem:[#allocation3 + $0x18] sm:$0xff]
  %v2512 = vld [vmem:[#allocation3 + $0x20] sm:$0xff]
  %v2513 = vld [vmem:[#allocation3 + $0x28] sm:$0xff]
  %v2514 = vld [vmem:[#allocation3 + $0x30] sm:$0xff]
  %v2515 = vld [vmem:[#allocation3 + $0x38] sm:$0xff]
  %v2516 = vld [vmem:[#allocation3 + $0x40] sm:$0xff]
  %v2517 = vld [vmem:[#allocation3 + $0x48] sm:$0xff]
  %v2518 = vld [vmem:[#allocation3 + $0x50] sm:$0xff]
  %v2519 = vld [vmem:[#allocation3 + $0x58] sm:$0xff]
  %v2520 = vld [vmem:[#allocation3 + $0x60] sm:$0xff]
  %v2521 = vld [vmem:[#allocation3 + $0x68] sm:$0xff]
  %v2522 = vld [vmem:[#allocation3 + $0x70] sm:$0xff]
  %v2523 = vld [vmem:[#allocation3 + $0x78] sm:$0xff]
  %v2524 = vpack.c.bf16 %v2509, %v2508
  %v2525 = vpack.c.bf16 %v2511, %v2510
  %v2526 = vpack.c.bf16 %v2513, %v2512
  %v2527 = vpack.c.bf16 %v2515, %v2514
  %v2528 = vpack.c.bf16 %v2517, %v2516
  %v2529 = vpack.c.bf16 %v2519, %v2518
  %v2530 = vpack.c.bf16 %v2521, %v2520
  %v2531 = vpack.c.bf16 %v2523, %v2522
  %v2532 = vld [vmem:[%s3] sm:$0xff]
  %v2533 = vld [vmem:[%s3 + $0x8] sm:$0xff]
  %v2534 = vld [vmem:[%s3 + $0x10] sm:$0xff]
  %v2535 = vld [vmem:[%s3 + $0x18] sm:$0xff]
  %v2536 = vld [vmem:[%s3 + $0x20] sm:$0xff]
  %v2537 = vld [vmem:[%s3 + $0x28] sm:$0xff]
  %v2538 = vld [vmem:[%s3 + $0x30] sm:$0xff]
  %v2539 = vld [vmem:[%s3 + $0x38] sm:$0xff]
  %v2540 = vld [vmem:[%s3 + $0x40] sm:$0xff]
  %v2541 = vld [vmem:[%s3 + $0x48] sm:$0xff]
  %v2542 = vld [vmem:[%s3 + $0x50] sm:$0x33]
  %v2543 = vld [vmem:[#allocation3 + $0x1] sm:$0xff]
  %v2544 = vld [vmem:[#allocation3 + $0x9] sm:$0xff]
  %v2545 = vld [vmem:[#allocation3 + $0x11] sm:$0xff]
  %v2546 = vld [vmem:[#allocation3 + $0x19] sm:$0xff]
  %v2547 = vld [vmem:[#allocation3 + $0x21] sm:$0xff]
  %v2548 = vld [vmem:[#allocation3 + $0x29] sm:$0xff]
  %v2549 = vld [vmem:[#allocation3 + $0x31] sm:$0xff]
  %v2550 = vld [vmem:[#allocation3 + $0x39] sm:$0xff]
  %v2551 = vld [vmem:[#allocation3 + $0x41] sm:$0xff]
  %v2552 = vld [vmem:[#allocation3 + $0x49] sm:$0xff]
  %v2553 = vld [vmem:[#allocation3 + $0x51] sm:$0xff]
  %v2554 = vld [vmem:[#allocation3 + $0x59] sm:$0xff]
  %v2555 = vld [vmem:[#allocation3 + $0x61] sm:$0xff]
  %v2556 = vld [vmem:[#allocation3 + $0x69] sm:$0xff]
  %v2557 = vld [vmem:[#allocation3 + $0x71] sm:$0xff]
  %v2558 = vld [vmem:[#allocation3 + $0x79] sm:$0xff]
  %v2559 = vpack.c.bf16 %v2544, %v2543
  %v2560 = vpack.c.bf16 %v2546, %v2545
  %v2561 = vpack.c.bf16 %v2548, %v2547
  %v2562 = vpack.c.bf16 %v2550, %v2549
  %v2563 = vpack.c.bf16 %v2552, %v2551
  %v2564 = vpack.c.bf16 %v2554, %v2553
  %v2565 = vpack.c.bf16 %v2556, %v2555
  %v2566 = vpack.c.bf16 %v2558, %v2557
  %v2567 = vld [vmem:[%s3 + $0x50] sm:$0xcc]
  %v2568 = vld [vmem:[%s3 + $0x58] sm:$0xff]
  %v2569 = vld [vmem:[%s3 + $0x60] sm:$0xff]
  %v2570 = vld [vmem:[%s3 + $0x68] sm:$0xff]
  %v2571 = vld [vmem:[%s3 + $0x70] sm:$0xff]
  %v2572 = vld [vmem:[%s3 + $0x78] sm:$0xff]
  %v2573 = vld [vmem:[%s3 + $0x80] sm:$0xff]
  %v2574 = vld [vmem:[%s3 + $0x88] sm:$0xff]
  %v2575 = vld [vmem:[%s3 + $0x90] sm:$0xff]
  %v2576 = vld [vmem:[%s3 + $0x98] sm:$0xff]
  %v2577 = vld [vmem:[%s3 + $0xa0] sm:$0xff]
  %v2589 = vunpack.c.l.b16 %v2567
  %v2590 = vunpack.c.h.b16 %v2567
  %v2591 = vunpack.c.l.b16 %v2568
  %v2592 = vunpack.c.h.b16 %v2568
  %v2593 = vunpack.c.l.b16 %v2569
  %v2594 = vunpack.c.h.b16 %v2569
  %v2595 = vunpack.c.l.b16 %v2570
  %v2596 = vunpack.c.h.b16 %v2570
  %v2597 = vunpack.c.l.b16 %v2571
  %v2598 = vunpack.c.h.b16 %v2571
  %v2599 = vunpack.c.l.b16 %v2572
  %v2600 = vunpack.c.h.b16 %v2572
  %v2601 = vunpack.c.l.b16 %v2573
  %v2602 = vunpack.c.h.b16 %v2573
  %v2603 = vunpack.c.l.b16 %v2574
  %v2604 = vunpack.c.h.b16 %v2574
  %v2605 = vunpack.c.l.b16 %v2575
  %v2606 = vunpack.c.h.b16 %v2575
  %v2607 = vunpack.c.l.b16 %v2576
  %v2608 = vunpack.c.h.b16 %v2576
  %v2609 = vunpack.c.l.b16 %v2577
  %v2610 = vunpack.c.h.b16 %v2577
  %v2611 = vpack.c.b16 %v2591, %v2589
  %v2612 = vpack.c.b16 %v2592, %v2590
  %v2613 = vpack.c.b16 %v2595, %v2593
  %v2614 = vpack.c.b16 %v2596, %v2594
  %v2615 = vpack.c.b16 %v2599, %v2597
  %v2616 = vpack.c.b16 %v2600, %v2598
  %v2617 = vpack.c.b16 %v2603, %v2601
  %v2618 = vpack.c.b16 %v2604, %v2602
  %v2619 = vpack.c.b16 %v2607, %v2605
  %v2620 = vpack.c.b16 %v2608, %v2606
  %v2621 = vpack.c.b16 %v2609, %v2609
  %v2622 = vpack.c.b16 %v2610, %v2610
  %vm2623 = vcmask 1045504
  %v2624 = vrot.slane %v2611, 2
  %v2625 = vrot.slane %v2613, 2
  %v2626 = vsel %vm2623, %v2624, %v2625
  %v2627 = vrot.slane %v2612, 2
  %v2628 = vrot.slane %v2614, 2
  %v2629 = vsel %vm2623, %v2627, %v2628
  %v2630 = vrot.slane %v2615, 2
  %v2631 = vsel %vm2623, %v2625, %v2630
  %v2632 = vrot.slane %v2616, 2
  %v2633 = vsel %vm2623, %v2628, %v2632
  %v2634 = vrot.slane %v2617, 2
  %v2635 = vsel %vm2623, %v2630, %v2634
  %v2636 = vrot.slane %v2618, 2
  %v2637 = vsel %vm2623, %v2632, %v2636
  %v2638 = vrot.slane %v2619, 2
  %v2639 = vsel %vm2623, %v2634, %v2638
  %v2640 = vrot.slane %v2620, 2
  %v2641 = vsel %vm2623, %v2636, %v2640
  %v2642 = vrot.slane %v2621, 2
  %v2643 = vsel %vm2623, %v2638, %v2642
  %v2644 = vrot.slane %v2622, 2
  %v2645 = vsel %vm2623, %v2640, %v2644
  %v2657 = vsel %vm2379, %v2559, 0
  %v2660 = vsel %vm2379, %v2560, 0
  %v2663 = vsel %vm2379, %v2561, 0
  %v2666 = vsel %vm2379, %v2562, 0
  %v2669 = vsel %vm2379, %v2563, 0
  %v2672 = vsel %vm2379, %v2564, 0
  %v2675 = vsel %vm2379, %v2565, 0
  %v2678 = vsel %vm2379, %v2566, 0
  %vm2680 = vcmask 1041408
  %v2682 = vsel %vm2680, %v2642, 0
  %v2685 = vsel %vm2680, %v2644, 0
  %2687 = vmatpush.bf16.msra.mxu0 0
  %2688 = vmatpush.bf16.msra.mxu0 0
  %2689 = vmatpush.bf16.msra.mxu0 %v2682
  %2690 = vmatpush.bf16.msra.mxu0 %v2643
  %2691 = vmatpush.bf16.msra.mxu0 %v2639
  %2692 = vmatpush.bf16.msra.mxu0 %v2635
  %2693 = vmatpush.bf16.msra.mxu0 %v2631
  %2694 = vmatpush.bf16.msra.mxu0 %v2626
  %2695 = vmatmul.bf16.gmra.mxu0 %v2657
  %v2696 = vpop.f32.mrf.mxu0
  %v2697 = vadd.f32 0.0, %v2696
  %v2698 = vpop.f32.mrf.mxu0
  %v2699 = vadd.f32 0.0, %v2698
  %2700 = vmatmul.bf16.gmra.mxu0 %v2660
  %v2701 = vpop.f32.mrf.mxu0
  %v2702 = vadd.f32 0.0, %v2701
  %v2703 = vpop.f32.mrf.mxu0
  %v2704 = vadd.f32 0.0, %v2703
  %2705 = vmatmul.bf16.gmra.mxu0 %v2663
  %v2706 = vpop.f32.mrf.mxu0
  %v2707 = vadd.f32 0.0, %v2706
  %v2708 = vpop.f32.mrf.mxu0
  %v2709 = vadd.f32 0.0, %v2708
  %2710 = vmatmul.bf16.gmra.mxu0 %v2666
  %v2711 = vpop.f32.mrf.mxu0
  %v2712 = vadd.f32 0.0, %v2711
  %v2713 = vpop.f32.mrf.mxu0
  %v2714 = vadd.f32 0.0, %v2713
  %2715 = vmatmul.bf16.gmra.mxu0 %v2669
  %v2716 = vpop.f32.mrf.mxu0
  %v2717 = vadd.f32 0.0, %v2716
  %v2718 = vpop.f32.mrf.mxu0
  %v2719 = vadd.f32 0.0, %v2718
  %2720 = vmatmul.bf16.gmra.mxu0 %v2672
  %v2721 = vpop.f32.mrf.mxu0
  %v2722 = vadd.f32 0.0, %v2721
  %v2723 = vpop.f32.mrf.mxu0
  %v2724 = vadd.f32 0.0, %v2723
  %2725 = vmatmul.bf16.gmra.mxu0 %v2675
  %v2726 = vpop.f32.mrf.mxu0
  %v2727 = vadd.f32 0.0, %v2726
  %v2728 = vpop.f32.mrf.mxu0
  %v2729 = vadd.f32 0.0, %v2728
  %2730 = vmatmul.bf16.gmra.mxu0 %v2678
  %v2731 = vpop.f32.mrf.mxu0
  %v2732 = vadd.f32 0.0, %v2731
  %v2733 = vpop.f32.mrf.mxu0
  %v2734 = vadd.f32 0.0, %v2733
  %2735 = vdwg.mxu0
  %2736 = vmatpush.bf16.msra.mxu0 0
  %2737 = vmatpush.bf16.msra.mxu0 0
  %2738 = vmatpush.bf16.msra.mxu0 %v2685
  %2739 = vmatpush.bf16.msra.mxu0 %v2645
  %2740 = vmatpush.bf16.msra.mxu0 %v2641
  %2741 = vmatpush.bf16.msra.mxu0 %v2637
  %2742 = vmatpush.bf16.msra.mxu0 %v2633
  %2743 = vmatpush.bf16.msra.mxu0 %v2629
  %2744 = vmatmul.bf16.gmra.mxu0 %v2657
  %v2745 = vpop.f32.mrf.mxu0
  %v2746 = vadd.f32 0.0, %v2745
  %v2747 = vpop.f32.mrf.mxu0
  %v2748 = vadd.f32 0.0, %v2747
  %2749 = vmatmul.bf16.gmra.mxu0 %v2660
  %v2750 = vpop.f32.mrf.mxu0
  %v2751 = vadd.f32 0.0, %v2750
  %v2752 = vpop.f32.mrf.mxu0
  %v2753 = vadd.f32 0.0, %v2752
  %2754 = vmatmul.bf16.gmra.mxu0 %v2663
  %v2755 = vpop.f32.mrf.mxu0
  %v2756 = vadd.f32 0.0, %v2755
  %v2757 = vpop.f32.mrf.mxu0
  %v2758 = vadd.f32 0.0, %v2757
  %2759 = vmatmul.bf16.gmra.mxu0 %v2666
  %v2760 = vpop.f32.mrf.mxu0
  %v2761 = vadd.f32 0.0, %v2760
  %v2762 = vpop.f32.mrf.mxu0
  %v2763 = vadd.f32 0.0, %v2762
  %2764 = vmatmul.bf16.gmra.mxu0 %v2669
  %v2765 = vpop.f32.mrf.mxu0
  %v2766 = vadd.f32 0.0, %v2765
  %v2767 = vpop.f32.mrf.mxu0
  %v2768 = vadd.f32 0.0, %v2767
  %2769 = vmatmul.bf16.gmra.mxu0 %v2672
  %v2770 = vpop.f32.mrf.mxu0
  %v2771 = vadd.f32 0.0, %v2770
  %v2772 = vpop.f32.mrf.mxu0
  %v2773 = vadd.f32 0.0, %v2772
  %2774 = vmatmul.bf16.gmra.mxu0 %v2675
  %v2775 = vpop.f32.mrf.mxu0
  %v2776 = vadd.f32 0.0, %v2775
  %v2777 = vpop.f32.mrf.mxu0
  %v2778 = vadd.f32 0.0, %v2777
  %2779 = vmatmul.bf16.gmra.mxu0 %v2678
  %v2780 = vpop.f32.mrf.mxu0
  %v2781 = vadd.f32 0.0, %v2780
  %v2782 = vpop.f32.mrf.mxu0
  %v2783 = vadd.f32 0.0, %v2782
  %2784 = vdwg.mxu0
  %v2796 = vunpack.c.l.b16 %v2532
  %v2797 = vunpack.c.h.b16 %v2532
  %v2798 = vunpack.c.l.b16 %v2533
  %v2799 = vunpack.c.h.b16 %v2533
  %v2800 = vunpack.c.l.b16 %v2534
  %v2801 = vunpack.c.h.b16 %v2534
  %v2802 = vunpack.c.l.b16 %v2535
  %v2803 = vunpack.c.h.b16 %v2535
  %v2804 = vunpack.c.l.b16 %v2536
  %v2805 = vunpack.c.h.b16 %v2536
  %v2806 = vunpack.c.l.b16 %v2537
  %v2807 = vunpack.c.h.b16 %v2537
  %v2808 = vunpack.c.l.b16 %v2538
  %v2809 = vunpack.c.h.b16 %v2538
  %v2810 = vunpack.c.l.b16 %v2539
  %v2811 = vunpack.c.h.b16 %v2539
  %v2812 = vunpack.c.l.b16 %v2540
  %v2813 = vunpack.c.h.b16 %v2540
  %v2814 = vunpack.c.l.b16 %v2541
  %v2815 = vunpack.c.h.b16 %v2541
  %v2816 = vunpack.c.l.b16 %v2542
  %v2817 = vunpack.c.h.b16 %v2542
  %v2818 = vpack.c.b16 %v2798, %v2796
  %v2819 = vpack.c.b16 %v2799, %v2797
  %v2820 = vpack.c.b16 %v2802, %v2800
  %v2821 = vpack.c.b16 %v2803, %v2801
  %v2822 = vpack.c.b16 %v2806, %v2804
  %v2823 = vpack.c.b16 %v2807, %v2805
  %v2824 = vpack.c.b16 %v2810, %v2808
  %v2825 = vpack.c.b16 %v2811, %v2809
  %v2826 = vpack.c.b16 %v2814, %v2812
  %v2827 = vpack.c.b16 %v2815, %v2813
  %v2828 = vpack.c.b16 %v2816, %v2816
  %v2829 = vpack.c.b16 %v2817, %v2817
  %v2841 = vsel %vm2379, %v2524, 0
  %v2844 = vsel %vm2379, %v2525, 0
  %v2847 = vsel %vm2379, %v2526, 0
  %v2850 = vsel %vm2379, %v2527, 0
  %v2853 = vsel %vm2379, %v2528, 0
  %v2856 = vsel %vm2379, %v2529, 0
  %v2859 = vsel %vm2379, %v2530, 0
  %v2862 = vsel %vm2379, %v2531, 0
  %v2865 = vsel %vm2680, %v2828, 0
  %v2868 = vsel %vm2680, %v2829, 0
  %2870 = vmatpush.bf16.msra.mxu0 0
  %2871 = vmatpush.bf16.msra.mxu0 0
  %2872 = vmatpush.bf16.msra.mxu0 %v2865
  %2873 = vmatpush.bf16.msra.mxu0 %v2826
  %2874 = vmatpush.bf16.msra.mxu0 %v2824
  %2875 = vmatpush.bf16.msra.mxu0 %v2822
  %2876 = vmatpush.bf16.msra.mxu0 %v2820
  %2877 = vmatpush.bf16.msra.mxu0 %v2818
  %2878 = vmatmul.bf16.gmra.mxu0 %v2841
  %v2879 = vpop.f32.mrf.mxu0
  %v2880 = vadd.f32 %v2697, %v2879
  %v2881 = vpop.f32.mrf.mxu0
  %v2882 = vadd.f32 %v2699, %v2881
  %2883 = vmatmul.bf16.gmra.mxu0 %v2844
  %v2884 = vpop.f32.mrf.mxu0
  %v2885 = vadd.f32 %v2702, %v2884
  %v2886 = vpop.f32.mrf.mxu0
  %v2887 = vadd.f32 %v2704, %v2886
  %2888 = vmatmul.bf16.gmra.mxu0 %v2847
  %v2889 = vpop.f32.mrf.mxu0
  %v2890 = vadd.f32 %v2707, %v2889
  %v2891 = vpop.f32.mrf.mxu0
  %v2892 = vadd.f32 %v2709, %v2891
  %2893 = vmatmul.bf16.gmra.mxu0 %v2850
  %v2894 = vpop.f32.mrf.mxu0
  %v2895 = vadd.f32 %v2712, %v2894
  %v2896 = vpop.f32.mrf.mxu0
  %v2897 = vadd.f32 %v2714, %v2896
  %2898 = vmatmul.bf16.gmra.mxu0 %v2853
  %v2899 = vpop.f32.mrf.mxu0
  %v2900 = vadd.f32 %v2717, %v2899
  %v2901 = vpop.f32.mrf.mxu0
  %v2902 = vadd.f32 %v2719, %v2901
  %2903 = vmatmul.bf16.gmra.mxu0 %v2856
  %v2904 = vpop.f32.mrf.mxu0
  %v2905 = vadd.f32 %v2722, %v2904
  %v2906 = vpop.f32.mrf.mxu0
  %v2907 = vadd.f32 %v2724, %v2906
  %2908 = vmatmul.bf16.gmra.mxu0 %v2859
  %v2909 = vpop.f32.mrf.mxu0
  %v2910 = vadd.f32 %v2727, %v2909
  %v2911 = vpop.f32.mrf.mxu0
  %v2912 = vadd.f32 %v2729, %v2911
  %2913 = vmatmul.bf16.gmra.mxu0 %v2862
  %v2914 = vpop.f32.mrf.mxu0
  %v2915 = vadd.f32 %v2732, %v2914
  %v2916 = vpop.f32.mrf.mxu0
  %v2917 = vadd.f32 %v2734, %v2916
  %2918 = vdwg.mxu0
  %2919 = vmatpush.bf16.msra.mxu0 0
  %2920 = vmatpush.bf16.msra.mxu0 0
  %2921 = vmatpush.bf16.msra.mxu0 %v2868
  %2922 = vmatpush.bf16.msra.mxu0 %v2827
  %2923 = vmatpush.bf16.msra.mxu0 %v2825
  %2924 = vmatpush.bf16.msra.mxu0 %v2823
  %2925 = vmatpush.bf16.msra.mxu0 %v2821
  %2926 = vmatpush.bf16.msra.mxu0 %v2819
  %2927 = vmatmul.bf16.gmra.mxu0 %v2841
  %v2928 = vpop.f32.mrf.mxu0
  %v2929 = vadd.f32 %v2746, %v2928
  %v2930 = vpop.f32.mrf.mxu0
  %v2931 = vadd.f32 %v2748, %v2930
  %2932 = vmatmul.bf16.gmra.mxu0 %v2844
  %v2933 = vpop.f32.mrf.mxu0
  %v2934 = vadd.f32 %v2751, %v2933
  %v2935 = vpop.f32.mrf.mxu0
  %v2936 = vadd.f32 %v2753, %v2935
  %2937 = vmatmul.bf16.gmra.mxu0 %v2847
  %v2938 = vpop.f32.mrf.mxu0
  %v2939 = vadd.f32 %v2756, %v2938
  %v2940 = vpop.f32.mrf.mxu0
  %v2941 = vadd.f32 %v2758, %v2940
  %2942 = vmatmul.bf16.gmra.mxu0 %v2850
  %v2943 = vpop.f32.mrf.mxu0
  %v2944 = vadd.f32 %v2761, %v2943
  %v2945 = vpop.f32.mrf.mxu0
  %v2946 = vadd.f32 %v2763, %v2945
  %2947 = vmatmul.bf16.gmra.mxu0 %v2853
  %v2948 = vpop.f32.mrf.mxu0
  %v2949 = vadd.f32 %v2766, %v2948
  %v2950 = vpop.f32.mrf.mxu0
  %v2951 = vadd.f32 %v2768, %v2950
  %2952 = vmatmul.bf16.gmra.mxu0 %v2856
  %v2953 = vpop.f32.mrf.mxu0
  %v2954 = vadd.f32 %v2771, %v2953
  %v2955 = vpop.f32.mrf.mxu0
  %v2956 = vadd.f32 %v2773, %v2955
  %2957 = vmatmul.bf16.gmra.mxu0 %v2859
  %v2958 = vpop.f32.mrf.mxu0
  %v2959 = vadd.f32 %v2776, %v2958
  %v2960 = vpop.f32.mrf.mxu0
  %v2961 = vadd.f32 %v2778, %v2960
  %2962 = vmatmul.bf16.gmra.mxu0 %v2862
  %v2963 = vpop.f32.mrf.mxu0
  %v2964 = vadd.f32 %v2781, %v2963
  %v2965 = vpop.f32.mrf.mxu0
  %v2966 = vadd.f32 %v2783, %v2965
  %2967 = vdwg.mxu0
  %v2968 = vld [vmem:[#allocation3 + $0x2] sm:$0xff]
  %v2969 = vld [vmem:[#allocation3 + $0xa] sm:$0xff]
  %v2970 = vld [vmem:[#allocation3 + $0x12] sm:$0xff]
  %v2971 = vld [vmem:[#allocation3 + $0x1a] sm:$0xff]
  %v2972 = vld [vmem:[#allocation3 + $0x22] sm:$0xff]
  %v2973 = vld [vmem:[#allocation3 + $0x2a] sm:$0xff]
  %v2974 = vld [vmem:[#allocation3 + $0x32] sm:$0xff]
  %v2975 = vld [vmem:[#allocation3 + $0x3a] sm:$0xff]
  %v2976 = vld [vmem:[#allocation3 + $0x42] sm:$0xff]
  %v2977 = vld [vmem:[#allocation3 + $0x4a] sm:$0xff]
  %v2978 = vld [vmem:[#allocation3 + $0x52] sm:$0xff]
  %v2979 = vld [vmem:[#allocation3 + $0x5a] sm:$0xff]
  %v2980 = vld [vmem:[#allocation3 + $0x62] sm:$0xff]
  %v2981 = vld [vmem:[#allocation3 + $0x6a] sm:$0xff]
  %v2982 = vld [vmem:[#allocation3 + $0x72] sm:$0xff]
  %v2983 = vld [vmem:[#allocation3 + $0x7a] sm:$0xff]
  %v2984 = vpack.c.bf16 %v2969, %v2968
  %v2985 = vpack.c.bf16 %v2971, %v2970
  %v2986 = vpack.c.bf16 %v2973, %v2972
  %v2987 = vpack.c.bf16 %v2975, %v2974
  %v2988 = vpack.c.bf16 %v2977, %v2976
  %v2989 = vpack.c.bf16 %v2979, %v2978
  %v2990 = vpack.c.bf16 %v2981, %v2980
  %v2991 = vpack.c.bf16 %v2983, %v2982
  %v2992 = vld [vmem:[%s3 + $0xa8] sm:$0xff]
  %v2993 = vld [vmem:[%s3 + $0xb0] sm:$0xff]
  %v2994 = vld [vmem:[%s3 + $0xb8] sm:$0xff]
  %v2995 = vld [vmem:[%s3 + $0xc0] sm:$0xff]
  %v2996 = vld [vmem:[%s3 + $0xc8] sm:$0xff]
  %v2997 = vld [vmem:[%s3 + $0xd0] sm:$0xff]
  %v2998 = vld [vmem:[%s3 + $0xd8] sm:$0xff]
  %v2999 = vld [vmem:[%s3 + $0xe0] sm:$0xff]
  %v3000 = vld [vmem:[%s3 + $0xe8] sm:$0xff]
  %v3001 = vld [vmem:[%s3 + $0xf0] sm:$0xff]
  %v3002 = vld [vmem:[%s3 + $0xf8] sm:$0x33]
  %v3014 = vunpack.c.l.b16 %v2992
  %v3015 = vunpack.c.h.b16 %v2992
  %v3016 = vunpack.c.l.b16 %v2993
  %v3017 = vunpack.c.h.b16 %v2993
  %v3018 = vunpack.c.l.b16 %v2994
  %v3019 = vunpack.c.h.b16 %v2994
  %v3020 = vunpack.c.l.b16 %v2995
  %v3021 = vunpack.c.h.b16 %v2995
  %v3022 = vunpack.c.l.b16 %v2996
  %v3023 = vunpack.c.h.b16 %v2996
  %v3024 = vunpack.c.l.b16 %v2997
  %v3025 = vunpack.c.h.b16 %v2997
  %v3026 = vunpack.c.l.b16 %v2998
  %v3027 = vunpack.c.h.b16 %v2998
  %v3028 = vunpack.c.l.b16 %v2999
  %v3029 = vunpack.c.h.b16 %v2999
  %v3030 = vunpack.c.l.b16 %v3000
  %v3031 = vunpack.c.h.b16 %v3000
  %v3032 = vunpack.c.l.b16 %v3001
  %v3033 = vunpack.c.h.b16 %v3001
  %v3034 = vunpack.c.l.b16 %v3002
  %v3035 = vunpack.c.h.b16 %v3002
  %v3036 = vpack.c.b16 %v3016, %v3014
  %v3037 = vpack.c.b16 %v3017, %v3015
  %v3038 = vpack.c.b16 %v3020, %v3018
  %v3039 = vpack.c.b16 %v3021, %v3019
  %v3040 = vpack.c.b16 %v3024, %v3022
  %v3041 = vpack.c.b16 %v3025, %v3023
  %v3042 = vpack.c.b16 %v3028, %v3026
  %v3043 = vpack.c.b16 %v3029, %v3027
  %v3044 = vpack.c.b16 %v3032, %v3030
  %v3045 = vpack.c.b16 %v3033, %v3031
  %v3046 = vpack.c.b16 %v3034, %v3034
  %v3047 = vpack.c.b16 %v3035, %v3035
  %v3059 = vsel %vm2379, %v2984, 0
  %v3062 = vsel %vm2379, %v2985, 0
  %v3065 = vsel %vm2379, %v2986, 0
  %v3068 = vsel %vm2379, %v2987, 0
  %v3071 = vsel %vm2379, %v2988, 0
  %v3074 = vsel %vm2379, %v2989, 0
  %v3077 = vsel %vm2379, %v2990, 0
  %v3080 = vsel %vm2379, %v2991, 0
  %v3083 = vsel %vm2680, %v3046, 0
  %v3086 = vsel %vm2680, %v3047, 0
  %3088 = vmatpush.bf16.msra.mxu0 0
  %3089 = vmatpush.bf16.msra.mxu0 0
  %3090 = vmatpush.bf16.msra.mxu0 %v3083
  %3091 = vmatpush.bf16.msra.mxu0 %v3044
  %3092 = vmatpush.bf16.msra.mxu0 %v3042
  %3093 = vmatpush.bf16.msra.mxu0 %v3040
  %3094 = vmatpush.bf16.msra.mxu0 %v3038
  %3095 = vmatpush.bf16.msra.mxu0 %v3036
  %3096 = vmatmul.bf16.gmra.mxu0 %v3059
  %v3097 = vpop.f32.mrf.mxu0
  %v3098 = vadd.f32 0.0, %v3097
  %v3099 = vpop.f32.mrf.mxu0
  %v3100 = vadd.f32 0.0, %v3099
  %3101 = vmatmul.bf16.gmra.mxu0 %v3062
  %v3102 = vpop.f32.mrf.mxu0
  %v3103 = vadd.f32 0.0, %v3102
  %v3104 = vpop.f32.mrf.mxu0
  %v3105 = vadd.f32 0.0, %v3104
  %3106 = vmatmul.bf16.gmra.mxu0 %v3065
  %v3107 = vpop.f32.mrf.mxu0
  %v3108 = vadd.f32 0.0, %v3107
  %v3109 = vpop.f32.mrf.mxu0
  %v3110 = vadd.f32 0.0, %v3109
  %3111 = vmatmul.bf16.gmra.mxu0 %v3068
  %v3112 = vpop.f32.mrf.mxu0
  %v3113 = vadd.f32 0.0, %v3112
  %v3114 = vpop.f32.mrf.mxu0
  %v3115 = vadd.f32 0.0, %v3114
  %3116 = vmatmul.bf16.gmra.mxu0 %v3071
  %v3117 = vpop.f32.mrf.mxu0
  %v3118 = vadd.f32 0.0, %v3117
  %v3119 = vpop.f32.mrf.mxu0
  %v3120 = vadd.f32 0.0, %v3119
  %3121 = vmatmul.bf16.gmra.mxu0 %v3074
  %v3122 = vpop.f32.mrf.mxu0
  %v3123 = vadd.f32 0.0, %v3122
  %v3124 = vpop.f32.mrf.mxu0
  %v3125 = vadd.f32 0.0, %v3124
  %3126 = vmatmul.bf16.gmra.mxu0 %v3077
  %v3127 = vpop.f32.mrf.mxu0
  %v3128 = vadd.f32 0.0, %v3127
  %v3129 = vpop.f32.mrf.mxu0
  %v3130 = vadd.f32 0.0, %v3129
  %3131 = vmatmul.bf16.gmra.mxu0 %v3080
  %v3132 = vpop.f32.mrf.mxu0
  %v3133 = vadd.f32 0.0, %v3132
  %v3134 = vpop.f32.mrf.mxu0
  %v3135 = vadd.f32 0.0, %v3134
  %3136 = vdwg.mxu0
  %3137 = vmatpush.bf16.msra.mxu0 0
  %3138 = vmatpush.bf16.msra.mxu0 0
  %3139 = vmatpush.bf16.msra.mxu0 %v3086
  %3140 = vmatpush.bf16.msra.mxu0 %v3045
  %3141 = vmatpush.bf16.msra.mxu0 %v3043
  %3142 = vmatpush.bf16.msra.mxu0 %v3041
  %3143 = vmatpush.bf16.msra.mxu0 %v3039
  %3144 = vmatpush.bf16.msra.mxu0 %v3037
  %3145 = vmatmul.bf16.gmra.mxu0 %v3059
  %v3146 = vpop.f32.mrf.mxu0
  %v3147 = vadd.f32 0.0, %v3146
  %v3148 = vpop.f32.mrf.mxu0
  %v3149 = vadd.f32 0.0, %v3148
  %3150 = vmatmul.bf16.gmra.mxu0 %v3062
  %v3151 = vpop.f32.mrf.mxu0
  %v3152 = vadd.f32 0.0, %v3151
  %v3153 = vpop.f32.mrf.mxu0
  %v3154 = vadd.f32 0.0, %v3153
  %3155 = vmatmul.bf16.gmra.mxu0 %v3065
  %v3156 = vpop.f32.mrf.mxu0
  %v3157 = vadd.f32 0.0, %v3156
  %v3158 = vpop.f32.mrf.mxu0
  %v3159 = vadd.f32 0.0, %v3158
  %3160 = vmatmul.bf16.gmra.mxu0 %v3068
  %v3161 = vpop.f32.mrf.mxu0
  %v3162 = vadd.f32 0.0, %v3161
  %v3163 = vpop.f32.mrf.mxu0
  %v3164 = vadd.f32 0.0, %v3163
  %3165 = vmatmul.bf16.gmra.mxu0 %v3071
  %v3166 = vpop.f32.mrf.mxu0
  %v3167 = vadd.f32 0.0, %v3166
  %v3168 = vpop.f32.mrf.mxu0
  %v3169 = vadd.f32 0.0, %v3168
  %3170 = vmatmul.bf16.gmra.mxu0 %v3074
  %v3171 = vpop.f32.mrf.mxu0
  %v3172 = vadd.f32 0.0, %v3171
  %v3173 = vpop.f32.mrf.mxu0
  %v3174 = vadd.f32 0.0, %v3173
  %3175 = vmatmul.bf16.gmra.mxu0 %v3077
  %v3176 = vpop.f32.mrf.mxu0
  %v3177 = vadd.f32 0.0, %v3176
  %v3178 = vpop.f32.mrf.mxu0
  %v3179 = vadd.f32 0.0, %v3178
  %3180 = vmatmul.bf16.gmra.mxu0 %v3080
  %v3181 = vpop.f32.mrf.mxu0
  %v3182 = vadd.f32 0.0, %v3181
  %v3183 = vpop.f32.mrf.mxu0
  %v3184 = vadd.f32 0.0, %v3183
  %3185 = vdwg.mxu0
  %v3186 = vadd.f32 %v2880, %v3098
  %v3187 = vadd.f32 %v2929, %v3147
  %v3188 = vadd.f32 %v2882, %v3100
  %v3189 = vadd.f32 %v2931, %v3149
  %v3190 = vadd.f32 %v2885, %v3103
  %v3191 = vadd.f32 %v2934, %v3152
  %v3192 = vadd.f32 %v2887, %v3105
  %v3193 = vadd.f32 %v2936, %v3154
  %v3194 = vadd.f32 %v2890, %v3108
  %v3195 = vadd.f32 %v2939, %v3157
  %v3196 = vadd.f32 %v2892, %v3110
  %v3197 = vadd.f32 %v2941, %v3159
  %v3198 = vadd.f32 %v2895, %v3113
  %v3199 = vadd.f32 %v2944, %v3162
  %v3200 = vadd.f32 %v2897, %v3115
  %v3201 = vadd.f32 %v2946, %v3164
  %v3202 = vadd.f32 %v2900, %v3118
  %v3203 = vadd.f32 %v2949, %v3167
  %v3204 = vadd.f32 %v2902, %v3120
  %v3205 = vadd.f32 %v2951, %v3169
  %v3206 = vadd.f32 %v2905, %v3123
  %v3207 = vadd.f32 %v2954, %v3172
  %v3208 = vadd.f32 %v2907, %v3125
  %v3209 = vadd.f32 %v2956, %v3174
  %v3210 = vadd.f32 %v2910, %v3128
  %v3211 = vadd.f32 %v2959, %v3177
  %v3212 = vadd.f32 %v2912, %v3130
  %v3213 = vadd.f32 %v2961, %v3179
  %v3214 = vadd.f32 %v2915, %v3133
  %v3215 = vadd.f32 %v2964, %v3182
  %v3216 = vadd.f32 %v2917, %v3135
  %v3217 = vadd.f32 %v2966, %v3184
  %v3218 = vld [vmem:[#allocation3 + $0x3] sm:$0xff]
  %v3219 = vld [vmem:[#allocation3 + $0xb] sm:$0xff]
  %v3220 = vld [vmem:[#allocation3 + $0x13] sm:$0xff]
  %v3221 = vld [vmem:[#allocation3 + $0x1b] sm:$0xff]
  %v3222 = vld [vmem:[#allocation3 + $0x23] sm:$0xff]
  %v3223 = vld [vmem:[#allocation3 + $0x2b] sm:$0xff]
  %v3224 = vld [vmem:[#allocation3 + $0x33] sm:$0xff]
  %v3225 = vld [vmem:[#allocation3 + $0x3b] sm:$0xff]
  %v3226 = vld [vmem:[#allocation3 + $0x43] sm:$0xff]
  %v3227 = vld [vmem:[#allocation3 + $0x4b] sm:$0xff]
  %v3228 = vld [vmem:[#allocation3 + $0x53] sm:$0xff]
  %v3229 = vld [vmem:[#allocation3 + $0x5b] sm:$0xff]
  %v3230 = vld [vmem:[#allocation3 + $0x63] sm:$0xff]
  %v3231 = vld [vmem:[#allocation3 + $0x6b] sm:$0xff]
  %v3232 = vld [vmem:[#allocation3 + $0x73] sm:$0xff]
  %v3233 = vld [vmem:[#allocation3 + $0x7b] sm:$0xff]
  %v3234 = vpack.c.bf16 %v3219, %v3218
  %v3235 = vpack.c.bf16 %v3221, %v3220
  %v3236 = vpack.c.bf16 %v3223, %v3222
  %v3237 = vpack.c.bf16 %v3225, %v3224
  %v3238 = vpack.c.bf16 %v3227, %v3226
  %v3239 = vpack.c.bf16 %v3229, %v3228
  %v3240 = vpack.c.bf16 %v3231, %v3230
  %v3241 = vpack.c.bf16 %v3233, %v3232
  %v3242 = vld [vmem:[%s3 + $0xf8] sm:$0xcc]
  %v3243 = vld [vmem:[%s3 + $0x100] sm:$0xff]
  %v3244 = vld [vmem:[%s3 + $0x108] sm:$0xff]
  %v3245 = vld [vmem:[%s3 + $0x110] sm:$0xff]
  %v3246 = vld [vmem:[%s3 + $0x118] sm:$0xff]
  %v3247 = vld [vmem:[%s3 + $0x120] sm:$0xff]
  %v3248 = vld [vmem:[%s3 + $0x128] sm:$0xff]
  %v3249 = vld [vmem:[%s3 + $0x130] sm:$0xff]
  %v3250 = vld [vmem:[%s3 + $0x138] sm:$0xff]
  %v3251 = vld [vmem:[%s3 + $0x140] sm:$0xff]
  %v3252 = vld [vmem:[%s3 + $0x148] sm:$0xff]
  %v3264 = vunpack.c.l.b16 %v3242
  %v3265 = vunpack.c.h.b16 %v3242
  %v3266 = vunpack.c.l.b16 %v3243
  %v3267 = vunpack.c.h.b16 %v3243
  %v3268 = vunpack.c.l.b16 %v3244
  %v3269 = vunpack.c.h.b16 %v3244
  %v3270 = vunpack.c.l.b16 %v3245
  %v3271 = vunpack.c.h.b16 %v3245
  %v3272 = vunpack.c.l.b16 %v3246
  %v3273 = vunpack.c.h.b16 %v3246
  %v3274 = vunpack.c.l.b16 %v3247
  %v3275 = vunpack.c.h.b16 %v3247
  %v3276 = vunpack.c.l.b16 %v3248
  %v3277 = vunpack.c.h.b16 %v3248
  %v3278 = vunpack.c.l.b16 %v3249
  %v3279 = vunpack.c.h.b16 %v3249
  %v3280 = vunpack.c.l.b16 %v3250
  %v3281 = vunpack.c.h.b16 %v3250
  %v3282 = vunpack.c.l.b16 %v3251
  %v3283 = vunpack.c.h.b16 %v3251
  %v3284 = vunpack.c.l.b16 %v3252
  %v3285 = vunpack.c.h.b16 %v3252
  %v3286 = vpack.c.b16 %v3266, %v3264
  %v3287 = vpack.c.b16 %v3267, %v3265
  %v3288 = vpack.c.b16 %v3270, %v3268
  %v3289 = vpack.c.b16 %v3271, %v3269
  %v3290 = vpack.c.b16 %v3274, %v3272
  %v3291 = vpack.c.b16 %v3275, %v3273
  %v3292 = vpack.c.b16 %v3278, %v3276
  %v3293 = vpack.c.b16 %v3279, %v3277
  %v3294 = vpack.c.b16 %v3282, %v3280
  %v3295 = vpack.c.b16 %v3283, %v3281
  %v3296 = vpack.c.b16 %v3284, %v3284
  %v3297 = vpack.c.b16 %v3285, %v3285
  %v3298 = vrot.slane %v3286, 2
  %v3299 = vrot.slane %v3288, 2
  %v3300 = vsel %vm2623, %v3298, %v3299
  %v3301 = vrot.slane %v3287, 2
  %v3302 = vrot.slane %v3289, 2
  %v3303 = vsel %vm2623, %v3301, %v3302
  %v3304 = vrot.slane %v3290, 2
  %v3305 = vsel %vm2623, %v3299, %v3304
  %v3306 = vrot.slane %v3291, 2
  %v3307 = vsel %vm2623, %v3302, %v3306
  %v3308 = vrot.slane %v3292, 2
  %v3309 = vsel %vm2623, %v3304, %v3308
  %v3310 = vrot.slane %v3293, 2
  %v3311 = vsel %vm2623, %v3306, %v3310
  %v3312 = vrot.slane %v3294, 2
  %v3313 = vsel %vm2623, %v3308, %v3312
  %v3314 = vrot.slane %v3295, 2
  %v3315 = vsel %vm2623, %v3310, %v3314
  %v3316 = vrot.slane %v3296, 2
  %v3317 = vsel %vm2623, %v3312, %v3316
  %v3318 = vrot.slane %v3297, 2
  %v3319 = vsel %vm2623, %v3314, %v3318
  %v3331 = vsel %vm2379, %v3234, 0
  %v3334 = vsel %vm2379, %v3235, 0
  %v3337 = vsel %vm2379, %v3236, 0
  %v3340 = vsel %vm2379, %v3237, 0
  %v3343 = vsel %vm2379, %v3238, 0
  %v3346 = vsel %vm2379, %v3239, 0
  %v3349 = vsel %vm2379, %v3240, 0
  %v3352 = vsel %vm2379, %v3241, 0
  %v3355 = vsel %vm2680, %v3316, 0
  %v3358 = vsel %vm2680, %v3318, 0
  %3360 = vmatpush.bf16.msra.mxu0 0
  %3361 = vmatpush.bf16.msra.mxu0 0
  %3362 = vmatpush.bf16.msra.mxu0 %v3355
  %3363 = vmatpush.bf16.msra.mxu0 %v3317
  %3364 = vmatpush.bf16.msra.mxu0 %v3313
  %3365 = vmatpush.bf16.msra.mxu0 %v3309
  %3366 = vmatpush.bf16.msra.mxu0 %v3305
  %3367 = vmatpush.bf16.msra.mxu0 %v3300
  %3368 = vmatmul.bf16.gmra.mxu0 %v3331
  %v3369 = vpop.f32.mrf.mxu0
  %v3370 = vadd.f32 0.0, %v3369
  %v3371 = vpop.f32.mrf.mxu0
  %v3372 = vadd.f32 0.0, %v3371
  %3373 = vmatmul.bf16.gmra.mxu0 %v3334
  %v3374 = vpop.f32.mrf.mxu0
  %v3375 = vadd.f32 0.0, %v3374
  %v3376 = vpop.f32.mrf.mxu0
  %v3377 = vadd.f32 0.0, %v3376
  %3378 = vmatmul.bf16.gmra.mxu0 %v3337
  %v3379 = vpop.f32.mrf.mxu0
  %v3380 = vadd.f32 0.0, %v3379
  %v3381 = vpop.f32.mrf.mxu0
  %v3382 = vadd.f32 0.0, %v3381
  %3383 = vmatmul.bf16.gmra.mxu0 %v3340
  %v3384 = vpop.f32.mrf.mxu0
  %v3385 = vadd.f32 0.0, %v3384
  %v3386 = vpop.f32.mrf.mxu0
  %v3387 = vadd.f32 0.0, %v3386
  %3388 = vmatmul.bf16.gmra.mxu0 %v3343
  %v3389 = vpop.f32.mrf.mxu0
  %v3390 = vadd.f32 0.0, %v3389
  %v3391 = vpop.f32.mrf.mxu0
  %v3392 = vadd.f32 0.0, %v3391
  %3393 = vmatmul.bf16.gmra.mxu0 %v3346
  %v3394 = vpop.f32.mrf.mxu0
  %v3395 = vadd.f32 0.0, %v3394
  %v3396 = vpop.f32.mrf.mxu0
  %v3397 = vadd.f32 0.0, %v3396
  %3398 = vmatmul.bf16.gmra.mxu0 %v3349
  %v3399 = vpop.f32.mrf.mxu0
  %v3400 = vadd.f32 0.0, %v3399
  %v3401 = vpop.f32.mrf.mxu0
  %v3402 = vadd.f32 0.0, %v3401
  %3403 = vmatmul.bf16.gmra.mxu0 %v3352
  %v3404 = vpop.f32.mrf.mxu0
  %v3405 = vadd.f32 0.0, %v3404
  %v3406 = vpop.f32.mrf.mxu0
  %v3407 = vadd.f32 0.0, %v3406
  %3408 = vdwg.mxu0
  %3409 = vmatpush.bf16.msra.mxu0 0
  %3410 = vmatpush.bf16.msra.mxu0 0
  %3411 = vmatpush.bf16.msra.mxu0 %v3358
  %3412 = vmatpush.bf16.msra.mxu0 %v3319
  %3413 = vmatpush.bf16.msra.mxu0 %v3315
  %3414 = vmatpush.bf16.msra.mxu0 %v3311
  %3415 = vmatpush.bf16.msra.mxu0 %v3307
  %3416 = vmatpush.bf16.msra.mxu0 %v3303
  %3417 = vmatmul.bf16.gmra.mxu0 %v3331
  %v3418 = vpop.f32.mrf.mxu0
  %v3419 = vadd.f32 0.0, %v3418
  %v3420 = vpop.f32.mrf.mxu0
  %v3421 = vadd.f32 0.0, %v3420
  %3422 = vmatmul.bf16.gmra.mxu0 %v3334
  %v3423 = vpop.f32.mrf.mxu0
  %v3424 = vadd.f32 0.0, %v3423
  %v3425 = vpop.f32.mrf.mxu0
  %v3426 = vadd.f32 0.0, %v3425
  %3427 = vmatmul.bf16.gmra.mxu0 %v3337
  %v3428 = vpop.f32.mrf.mxu0
  %v3429 = vadd.f32 0.0, %v3428
  %v3430 = vpop.f32.mrf.mxu0
  %v3431 = vadd.f32 0.0, %v3430
  %3432 = vmatmul.bf16.gmra.mxu0 %v3340
  %v3433 = vpop.f32.mrf.mxu0
  %v3434 = vadd.f32 0.0, %v3433
  %v3435 = vpop.f32.mrf.mxu0
  %v3436 = vadd.f32 0.0, %v3435
  %3437 = vmatmul.bf16.gmra.mxu0 %v3343
  %v3438 = vpop.f32.mrf.mxu0
  %v3439 = vadd.f32 0.0, %v3438
  %v3440 = vpop.f32.mrf.mxu0
  %v3441 = vadd.f32 0.0, %v3440
  %3442 = vmatmul.bf16.gmra.mxu0 %v3346
  %v3443 = vpop.f32.mrf.mxu0
  %v3444 = vadd.f32 0.0, %v3443
  %v3445 = vpop.f32.mrf.mxu0
  %v3446 = vadd.f32 0.0, %v3445
  %3447 = vmatmul.bf16.gmra.mxu0 %v3349
  %v3448 = vpop.f32.mrf.mxu0
  %v3449 = vadd.f32 0.0, %v3448
  %v3450 = vpop.f32.mrf.mxu0
  %v3451 = vadd.f32 0.0, %v3450
  %3452 = vmatmul.bf16.gmra.mxu0 %v3352
  %v3453 = vpop.f32.mrf.mxu0
  %v3454 = vadd.f32 0.0, %v3453
  %v3455 = vpop.f32.mrf.mxu0
  %v3456 = vadd.f32 0.0, %v3455
  %3457 = vdwg.mxu0
  %v3458 = vadd.f32 %v3186, %v3370
  %v3459 = vadd.f32 %v3187, %v3419
  %v3460 = vadd.f32 %v3188, %v3372
  %v3461 = vadd.f32 %v3189, %v3421
  %v3462 = vadd.f32 %v3190, %v3375
  %v3463 = vadd.f32 %v3191, %v3424
  %v3464 = vadd.f32 %v3192, %v3377
  %v3465 = vadd.f32 %v3193, %v3426
  %v3466 = vadd.f32 %v3194, %v3380
  %v3467 = vadd.f32 %v3195, %v3429
  %v3468 = vadd.f32 %v3196, %v3382
  %v3469 = vadd.f32 %v3197, %v3431
  %v3470 = vadd.f32 %v3198, %v3385
  %v3471 = vadd.f32 %v3199, %v3434
  %v3472 = vadd.f32 %v3200, %v3387
  %v3473 = vadd.f32 %v3201, %v3436
  %v3474 = vadd.f32 %v3202, %v3390
  %v3475 = vadd.f32 %v3203, %v3439
  %v3476 = vadd.f32 %v3204, %v3392
  %v3477 = vadd.f32 %v3205, %v3441
  %v3478 = vadd.f32 %v3206, %v3395
  %v3479 = vadd.f32 %v3207, %v3444
  %v3480 = vadd.f32 %v3208, %v3397
  %v3481 = vadd.f32 %v3209, %v3446
  %v3482 = vadd.f32 %v3210, %v3400
  %v3483 = vadd.f32 %v3211, %v3449
  %v3484 = vadd.f32 %v3212, %v3402
  %v3485 = vadd.f32 %v3213, %v3451
  %v3486 = vadd.f32 %v3214, %v3405
  %v3487 = vadd.f32 %v3215, %v3454
  %v3488 = vadd.f32 %v3216, %v3407
  %v3489 = vadd.f32 %v3217, %v3456
  %v3490 = vld [vmem:[#allocation3 + $0x4] sm:$0xff]
  %v3491 = vld [vmem:[#allocation3 + $0xc] sm:$0xff]
  %v3492 = vld [vmem:[#allocation3 + $0x14] sm:$0xff]
  %v3493 = vld [vmem:[#allocation3 + $0x1c] sm:$0xff]
  %v3494 = vld [vmem:[#allocation3 + $0x24] sm:$0xff]
  %v3495 = vld [vmem:[#allocation3 + $0x2c] sm:$0xff]
  %v3496 = vld [vmem:[#allocation3 + $0x34] sm:$0xff]
  %v3497 = vld [vmem:[#allocation3 + $0x3c] sm:$0xff]
  %v3498 = vld [vmem:[#allocation3 + $0x44] sm:$0xff]
  %v3499 = vld [vmem:[#allocation3 + $0x4c] sm:$0xff]
  %v3500 = vld [vmem:[#allocation3 + $0x54] sm:$0xff]
  %v3501 = vld [vmem:[#allocation3 + $0x5c] sm:$0xff]
  %v3502 = vld [vmem:[#allocation3 + $0x64] sm:$0xff]
  %v3503 = vld [vmem:[#allocation3 + $0x6c] sm:$0xff]
  %v3504 = vld [vmem:[#allocation3 + $0x74] sm:$0xff]
  %v3505 = vld [vmem:[#allocation3 + $0x7c] sm:$0xff]
  %v3506 = vpack.c.bf16 %v3491, %v3490
  %v3507 = vpack.c.bf16 %v3493, %v3492
  %v3508 = vpack.c.bf16 %v3495, %v3494
  %v3509 = vpack.c.bf16 %v3497, %v3496
  %v3510 = vpack.c.bf16 %v3499, %v3498
  %v3511 = vpack.c.bf16 %v3501, %v3500
  %v3512 = vpack.c.bf16 %v3503, %v3502
  %v3513 = vpack.c.bf16 %v3505, %v3504
  %v3514 = vld [vmem:[%s3 + $0x150] sm:$0xff]
  %v3515 = vld [vmem:[%s3 + $0x158] sm:$0xff]
  %v3516 = vld [vmem:[%s3 + $0x160] sm:$0xff]
  %v3517 = vld [vmem:[%s3 + $0x168] sm:$0xff]
  %v3518 = vld [vmem:[%s3 + $0x170] sm:$0xff]
  %v3519 = vld [vmem:[%s3 + $0x178] sm:$0xff]
  %v3520 = vld [vmem:[%s3 + $0x180] sm:$0xff]
  %v3521 = vld [vmem:[%s3 + $0x188] sm:$0xff]
  %v3522 = vld [vmem:[%s3 + $0x190] sm:$0xff]
  %v3523 = vld [vmem:[%s3 + $0x198] sm:$0xff]
  %v3524 = vld [vmem:[%s3 + $0x1a0] sm:$0x33]
  %v3536 = vunpack.c.l.b16 %v3514
  %v3537 = vunpack.c.h.b16 %v3514
  %v3538 = vunpack.c.l.b16 %v3515
  %v3539 = vunpack.c.h.b16 %v3515
  %v3540 = vunpack.c.l.b16 %v3516
  %v3541 = vunpack.c.h.b16 %v3516
  %v3542 = vunpack.c.l.b16 %v3517
  %v3543 = vunpack.c.h.b16 %v3517
  %v3544 = vunpack.c.l.b16 %v3518
  %v3545 = vunpack.c.h.b16 %v3518
  %v3546 = vunpack.c.l.b16 %v3519
  %v3547 = vunpack.c.h.b16 %v3519
  %v3548 = vunpack.c.l.b16 %v3520
  %v3549 = vunpack.c.h.b16 %v3520
  %v3550 = vunpack.c.l.b16 %v3521
  %v3551 = vunpack.c.h.b16 %v3521
  %v3552 = vunpack.c.l.b16 %v3522
  %v3553 = vunpack.c.h.b16 %v3522
  %v3554 = vunpack.c.l.b16 %v3523
  %v3555 = vunpack.c.h.b16 %v3523
  %v3556 = vunpack.c.l.b16 %v3524
  %v3557 = vunpack.c.h.b16 %v3524
  %v3558 = vpack.c.b16 %v3538, %v3536
  %v3559 = vpack.c.b16 %v3539, %v3537
  %v3560 = vpack.c.b16 %v3542, %v3540
  %v3561 = vpack.c.b16 %v3543, %v3541
  %v3562 = vpack.c.b16 %v3546, %v3544
  %v3563 = vpack.c.b16 %v3547, %v3545
  %v3564 = vpack.c.b16 %v3550, %v3548
  %v3565 = vpack.c.b16 %v3551, %v3549
  %v3566 = vpack.c.b16 %v3554, %v3552
  %v3567 = vpack.c.b16 %v3555, %v3553
  %v3568 = vpack.c.b16 %v3556, %v3556
  %v3569 = vpack.c.b16 %v3557, %v3557
  %v3581 = vsel %vm2379, %v3506, 0
  %v3584 = vsel %vm2379, %v3507, 0
  %v3587 = vsel %vm2379, %v3508, 0
  %v3590 = vsel %vm2379, %v3509, 0
  %v3593 = vsel %vm2379, %v3510, 0
  %v3596 = vsel %vm2379, %v3511, 0
  %v3599 = vsel %vm2379, %v3512, 0
  %v3602 = vsel %vm2379, %v3513, 0
  %v3605 = vsel %vm2680, %v3568, 0
  %v3608 = vsel %vm2680, %v3569, 0
  %3610 = vmatpush.bf16.msra.mxu0 0
  %3611 = vmatpush.bf16.msra.mxu0 0
  %3612 = vmatpush.bf16.msra.mxu0 %v3605
  %3613 = vmatpush.bf16.msra.mxu0 %v3566
  %3614 = vmatpush.bf16.msra.mxu0 %v3564
  %3615 = vmatpush.bf16.msra.mxu0 %v3562
  %3616 = vmatpush.bf16.msra.mxu0 %v3560
  %3617 = vmatpush.bf16.msra.mxu0 %v3558
  %3618 = vmatmul.bf16.gmra.mxu0 %v3581
  %v3619 = vpop.f32.mrf.mxu0
  %v3620 = vadd.f32 0.0, %v3619
  %v3621 = vpop.f32.mrf.mxu0
  %v3622 = vadd.f32 0.0, %v3621
  %3623 = vmatmul.bf16.gmra.mxu0 %v3584
  %v3624 = vpop.f32.mrf.mxu0
  %v3625 = vadd.f32 0.0, %v3624
  %v3626 = vpop.f32.mrf.mxu0
  %v3627 = vadd.f32 0.0, %v3626
  %3628 = vmatmul.bf16.gmra.mxu0 %v3587
  %v3629 = vpop.f32.mrf.mxu0
  %v3630 = vadd.f32 0.0, %v3629
  %v3631 = vpop.f32.mrf.mxu0
  %v3632 = vadd.f32 0.0, %v3631
  %3633 = vmatmul.bf16.gmra.mxu0 %v3590
  %v3634 = vpop.f32.mrf.mxu0
  %v3635 = vadd.f32 0.0, %v3634
  %v3636 = vpop.f32.mrf.mxu0
  %v3637 = vadd.f32 0.0, %v3636
  %3638 = vmatmul.bf16.gmra.mxu0 %v3593
  %v3639 = vpop.f32.mrf.mxu0
  %v3640 = vadd.f32 0.0, %v3639
  %v3641 = vpop.f32.mrf.mxu0
  %v3642 = vadd.f32 0.0, %v3641
  %3643 = vmatmul.bf16.gmra.mxu0 %v3596
  %v3644 = vpop.f32.mrf.mxu0
  %v3645 = vadd.f32 0.0, %v3644
  %v3646 = vpop.f32.mrf.mxu0
  %v3647 = vadd.f32 0.0, %v3646
  %3648 = vmatmul.bf16.gmra.mxu0 %v3599
  %v3649 = vpop.f32.mrf.mxu0
  %v3650 = vadd.f32 0.0, %v3649
  %v3651 = vpop.f32.mrf.mxu0
  %v3652 = vadd.f32 0.0, %v3651
  %3653 = vmatmul.bf16.gmra.mxu0 %v3602
  %v3654 = vpop.f32.mrf.mxu0
  %v3655 = vadd.f32 0.0, %v3654
  %v3656 = vpop.f32.mrf.mxu0
  %v3657 = vadd.f32 0.0, %v3656
  %3658 = vdwg.mxu0
  %3659 = vmatpush.bf16.msra.mxu0 0
  %3660 = vmatpush.bf16.msra.mxu0 0
  %3661 = vmatpush.bf16.msra.mxu0 %v3608
  %3662 = vmatpush.bf16.msra.mxu0 %v3567
  %3663 = vmatpush.bf16.msra.mxu0 %v3565
  %3664 = vmatpush.bf16.msra.mxu0 %v3563
  %3665 = vmatpush.bf16.msra.mxu0 %v3561
  %3666 = vmatpush.bf16.msra.mxu0 %v3559
  %3667 = vmatmul.bf16.gmra.mxu0 %v3581
  %v3668 = vpop.f32.mrf.mxu0
  %v3669 = vadd.f32 0.0, %v3668
  %v3670 = vpop.f32.mrf.mxu0
  %v3671 = vadd.f32 0.0, %v3670
  %3672 = vmatmul.bf16.gmra.mxu0 %v3584
  %v3673 = vpop.f32.mrf.mxu0
  %v3674 = vadd.f32 0.0, %v3673
  %v3675 = vpop.f32.mrf.mxu0
  %v3676 = vadd.f32 0.0, %v3675
  %3677 = vmatmul.bf16.gmra.mxu0 %v3587
  %v3678 = vpop.f32.mrf.mxu0
  %v3679 = vadd.f32 0.0, %v3678
  %v3680 = vpop.f32.mrf.mxu0
  %v3681 = vadd.f32 0.0, %v3680
  %3682 = vmatmul.bf16.gmra.mxu0 %v3590
  %v3683 = vpop.f32.mrf.mxu0
  %v3684 = vadd.f32 0.0, %v3683
  %v3685 = vpop.f32.mrf.mxu0
  %v3686 = vadd.f32 0.0, %v3685
  %3687 = vmatmul.bf16.gmra.mxu0 %v3593
  %v3688 = vpop.f32.mrf.mxu0
  %v3689 = vadd.f32 0.0, %v3688
  %v3690 = vpop.f32.mrf.mxu0
  %v3691 = vadd.f32 0.0, %v3690
  %3692 = vmatmul.bf16.gmra.mxu0 %v3596
  %v3693 = vpop.f32.mrf.mxu0
  %v3694 = vadd.f32 0.0, %v3693
  %v3695 = vpop.f32.mrf.mxu0
  %v3696 = vadd.f32 0.0, %v3695
  %3697 = vmatmul.bf16.gmra.mxu0 %v3599
  %v3698 = vpop.f32.mrf.mxu0
  %v3699 = vadd.f32 0.0, %v3698
  %v3700 = vpop.f32.mrf.mxu0
  %v3701 = vadd.f32 0.0, %v3700
  %3702 = vmatmul.bf16.gmra.mxu0 %v3602
  %v3703 = vpop.f32.mrf.mxu0
  %v3704 = vadd.f32 0.0, %v3703
  %v3705 = vpop.f32.mrf.mxu0
  %v3706 = vadd.f32 0.0, %v3705
  %3707 = vdwg.mxu0
  %v3708 = vadd.f32 %v3458, %v3620
  %v3709 = vadd.f32 %v3459, %v3669
  %v3710 = vadd.f32 %v3460, %v3622
  %v3711 = vadd.f32 %v3461, %v3671
  %v3712 = vadd.f32 %v3462, %v3625
  %v3713 = vadd.f32 %v3463, %v3674
  %v3714 = vadd.f32 %v3464, %v3627
  %v3715 = vadd.f32 %v3465, %v3676
  %v3716 = vadd.f32 %v3466, %v3630
  %v3717 = vadd.f32 %v3467, %v3679
  %v3718 = vadd.f32 %v3468, %v3632
  %v3719 = vadd.f32 %v3469, %v3681
  %v3720 = vadd.f32 %v3470, %v3635
  %v3721 = vadd.f32 %v3471, %v3684
  %v3722 = vadd.f32 %v3472, %v3637
  %v3723 = vadd.f32 %v3473, %v3686
  %v3724 = vadd.f32 %v3474, %v3640
  %v3725 = vadd.f32 %v3475, %v3689
  %v3726 = vadd.f32 %v3476, %v3642
  %v3727 = vadd.f32 %v3477, %v3691
  %v3728 = vadd.f32 %v3478, %v3645
  %v3729 = vadd.f32 %v3479, %v3694
  %v3730 = vadd.f32 %v3480, %v3647
  %v3731 = vadd.f32 %v3481, %v3696
  %v3732 = vadd.f32 %v3482, %v3650
  %v3733 = vadd.f32 %v3483, %v3699
  %v3734 = vadd.f32 %v3484, %v3652
  %v3735 = vadd.f32 %v3485, %v3701
  %v3736 = vadd.f32 %v3486, %v3655
  %v3737 = vadd.f32 %v3487, %v3704
  %v3738 = vadd.f32 %v3488, %v3657
  %v3739 = vadd.f32 %v3489, %v3706
  %v3740 = vld [vmem:[%s4] sm:$0x3]
  %v3742 = vperm.slane %v3740, 0
  %v3743 = vperm.slane %v3740, 1
  %v3746 = vadd.f32 %v3708, %v3742
  %v3747 = vadd.f32 %v3709, %v3743
  %v3748 = vadd.f32 %v3710, %v3742
  %v3749 = vadd.f32 %v3711, %v3743
  %v3750 = vadd.f32 %v3712, %v3742
  %v3751 = vadd.f32 %v3713, %v3743
  %v3752 = vadd.f32 %v3714, %v3742
  %v3753 = vadd.f32 %v3715, %v3743
  %v3754 = vadd.f32 %v3716, %v3742
  %v3755 = vadd.f32 %v3717, %v3743
  %v3756 = vadd.f32 %v3718, %v3742
  %v3757 = vadd.f32 %v3719, %v3743
  %v3758 = vadd.f32 %v3720, %v3742
  %v3759 = vadd.f32 %v3721, %v3743
  %v3760 = vadd.f32 %v3722, %v3742
  %v3761 = vadd.f32 %v3723, %v3743
  %v3762 = vadd.f32 %v3724, %v3742
  %v3763 = vadd.f32 %v3725, %v3743
  %v3764 = vadd.f32 %v3726, %v3742
  %v3765 = vadd.f32 %v3727, %v3743
  %v3766 = vadd.f32 %v3728, %v3742
  %v3767 = vadd.f32 %v3729, %v3743
  %v3768 = vadd.f32 %v3730, %v3742
  %v3769 = vadd.f32 %v3731, %v3743
  %v3770 = vadd.f32 %v3732, %v3742
  %v3771 = vadd.f32 %v3733, %v3743
  %v3772 = vadd.f32 %v3734, %v3742
  %v3773 = vadd.f32 %v3735, %v3743
  %v3774 = vadd.f32 %v3736, %v3742
  %v3775 = vadd.f32 %v3737, %v3743
  %v3776 = vadd.f32 %v3738, %v3742
  %v3777 = vadd.f32 %v3739, %v3743
  %v3778 = vmax.f32 %v3746, 0.0
  %v3779 = vmax.f32 %v3747, 0.0
  %v3780 = vmax.f32 %v3748, 0.0
  %v3781 = vmax.f32 %v3749, 0.0
  %v3782 = vmax.f32 %v3750, 0.0
  %v3783 = vmax.f32 %v3751, 0.0
  %v3784 = vmax.f32 %v3752, 0.0
  %v3785 = vmax.f32 %v3753, 0.0
  %v3786 = vmax.f32 %v3754, 0.0
  %v3787 = vmax.f32 %v3755, 0.0
  %v3788 = vmax.f32 %v3756, 0.0
  %v3789 = vmax.f32 %v3757, 0.0
  %v3790 = vmax.f32 %v3758, 0.0
  %v3791 = vmax.f32 %v3759, 0.0
  %v3792 = vmax.f32 %v3760, 0.0
  %v3793 = vmax.f32 %v3761, 0.0
  %v3794 = vmax.f32 %v3762, 0.0
  %v3795 = vmax.f32 %v3763, 0.0
  %v3796 = vmax.f32 %v3764, 0.0
  %v3797 = vmax.f32 %v3765, 0.0
  %v3798 = vmax.f32 %v3766, 0.0
  %v3799 = vmax.f32 %v3767, 0.0
  %v3800 = vmax.f32 %v3768, 0.0
  %v3801 = vmax.f32 %v3769, 0.0
  %v3802 = vmax.f32 %v3770, 0.0
  %v3803 = vmax.f32 %v3771, 0.0
  %v3804 = vmax.f32 %v3772, 0.0
  %v3805 = vmax.f32 %v3773, 0.0
  %v3806 = vmax.f32 %v3774, 0.0
  %v3807 = vmax.f32 %v3775, 0.0
  %v3808 = vmax.f32 %v3776, 0.0
  %v3809 = vmax.f32 %v3777, 0.0
  %3842 = vrot.lane.b32.xlu0 %v3778, 48
  %v3843 = vpop.permute.xlu0 %3842
  %3844 = vrot.lane.b32.xlu0 %v3779, 48
  %v3845 = vpop.permute.xlu0 %3844
  %3846 = vrot.lane.b32.xlu0 %v3780, 48
  %v3847 = vpop.permute.xlu0 %3846
  %3848 = vrot.lane.b32.xlu0 %v3781, 48
  %v3849 = vpop.permute.xlu0 %3848
  %3850 = vrot.lane.b32.xlu0 %v3782, 48
  %v3851 = vpop.permute.xlu0 %3850
  %3852 = vrot.lane.b32.xlu0 %v3783, 48
  %v3853 = vpop.permute.xlu0 %3852
  %3854 = vrot.lane.b32.xlu0 %v3784, 48
  %v3855 = vpop.permute.xlu0 %3854
  %3856 = vrot.lane.b32.xlu0 %v3785, 48
  %v3857 = vpop.permute.xlu0 %3856
  %3858 = vrot.lane.b32.xlu0 %v3786, 48
  %v3859 = vpop.permute.xlu0 %3858
  %3860 = vrot.lane.b32.xlu0 %v3787, 48
  %v3861 = vpop.permute.xlu0 %3860
  %3862 = vrot.lane.b32.xlu0 %v3788, 48
  %v3863 = vpop.permute.xlu0 %3862
  %3864 = vrot.lane.b32.xlu0 %v3789, 48
  %v3865 = vpop.permute.xlu0 %3864
  %3866 = vrot.lane.b32.xlu0 %v3790, 48
  %v3867 = vpop.permute.xlu0 %3866
  %3868 = vrot.lane.b32.xlu0 %v3791, 48
  %v3869 = vpop.permute.xlu0 %3868
  %3870 = vrot.lane.b32.xlu0 %v3792, 48
  %v3871 = vpop.permute.xlu0 %3870
  %3872 = vrot.lane.b32.xlu0 %v3793, 48
  %v3873 = vpop.permute.xlu0 %3872
  %3874 = vrot.lane.b32.xlu0 %v3794, 48
  %v3875 = vpop.permute.xlu0 %3874
  %3876 = vrot.lane.b32.xlu0 %v3795, 48
  %v3877 = vpop.permute.xlu0 %3876
  %3878 = vrot.lane.b32.xlu0 %v3796, 48
  %v3879 = vpop.permute.xlu0 %3878
  %3880 = vrot.lane.b32.xlu0 %v3797, 48
  %v3881 = vpop.permute.xlu0 %3880
  %3882 = vrot.lane.b32.xlu0 %v3798, 48
  %v3883 = vpop.permute.xlu0 %3882
  %3884 = vrot.lane.b32.xlu0 %v3799, 48
  %v3885 = vpop.permute.xlu0 %3884
  %3886 = vrot.lane.b32.xlu0 %v3800, 48
  %v3887 = vpop.permute.xlu0 %3886
  %3888 = vrot.lane.b32.xlu0 %v3801, 48
  %v3889 = vpop.permute.xlu0 %3888
  %3890 = vrot.lane.b32.xlu0 %v3802, 48
  %v3891 = vpop.permute.xlu0 %3890
  %3892 = vrot.lane.b32.xlu0 %v3803, 48
  %v3893 = vpop.permute.xlu0 %3892
  %3894 = vrot.lane.b32.xlu0 %v3804, 48
  %v3895 = vpop.permute.xlu0 %3894
  %3896 = vrot.lane.b32.xlu0 %v3805, 48
  %v3897 = vpop.permute.xlu0 %3896
  %3898 = vrot.lane.b32.xlu0 %v3806, 48
  %v3899 = vpop.permute.xlu0 %3898
  %3900 = vrot.lane.b32.xlu0 %v3807, 48
  %v3901 = vpop.permute.xlu0 %3900
  %3902 = vrot.lane.b32.xlu0 %v3808, 48
  %v3903 = vpop.permute.xlu0 %3902
  %3904 = vrot.lane.b32.xlu0 %v3809, 48
  %v3905 = vpop.permute.xlu0 %3904
  %vm3906 = vcmask 392192
  %v3907 = vsel %vm3906, %v3843, %v3845
  %v3908 = vsel %vm3906, %v3847, %v3849
  %v3909 = vsel %vm3906, %v3851, %v3853
  %v3910 = vsel %vm3906, %v3855, %v3857
  %v3911 = vsel %vm3906, %v3859, %v3861
  %v3912 = vsel %vm3906, %v3863, %v3865
  %v3913 = vsel %vm3906, %v3867, %v3869
  %v3914 = vsel %vm3906, %v3871, %v3873
  %v3915 = vsel %vm3906, %v3875, %v3877
  %v3916 = vsel %vm3906, %v3879, %v3881
  %v3917 = vsel %vm3906, %v3883, %v3885
  %v3918 = vsel %vm3906, %v3887, %v3889
  %v3919 = vsel %vm3906, %v3891, %v3893
  %v3920 = vsel %vm3906, %v3895, %v3897
  %v3921 = vsel %vm3906, %v3899, %v3901
  %v3922 = vsel %vm3906, %v3903, %v3905
  %v3939 = vmax.f32 %v3778, %v3907
  %v3940 = vmax.f32 %v3780, %v3908
  %v3941 = vmax.f32 %v3782, %v3909
  %v3942 = vmax.f32 %v3784, %v3910
  %v3943 = vmax.f32 %v3786, %v3911
  %v3944 = vmax.f32 %v3788, %v3912
  %v3945 = vmax.f32 %v3790, %v3913
  %v3946 = vmax.f32 %v3792, %v3914
  %v3947 = vmax.f32 %v3794, %v3915
  %v3948 = vmax.f32 %v3796, %v3916
  %v3949 = vmax.f32 %v3798, %v3917
  %v3950 = vmax.f32 %v3800, %v3918
  %v3951 = vmax.f32 %v3802, %v3919
  %v3952 = vmax.f32 %v3804, %v3920
  %v3953 = vmax.f32 %v3806, %v3921
  %v3954 = vmax.f32 %v3808, %v3922
  %vm3955 = vcmask 654336
  %3956 = vst.msk [vmem:[#allocation4] sm:$0xff] %vm3955, %v3939
  %3957 = vst.msk [vmem:[#allocation4 + $0x8] sm:$0xff] %vm3955, %v3940
  %3958 = vst.msk [vmem:[#allocation4 + $0x10] sm:$0xff] %vm3955, %v3941
  %3959 = vst.msk [vmem:[#allocation4 + $0x18] sm:$0xff] %vm3955, %v3942
  %3960 = vst.msk [vmem:[#allocation4 + $0x20] sm:$0xff] %vm3955, %v3943
  %3961 = vst.msk [vmem:[#allocation4 + $0x28] sm:$0xff] %vm3955, %v3944
  %3962 = vst.msk [vmem:[#allocation4 + $0x30] sm:$0xff] %vm3955, %v3945
  %3963 = vst.msk [vmem:[#allocation4 + $0x38] sm:$0xff] %vm3955, %v3946
  %3964 = vst.msk [vmem:[#allocation4 + $0x40] sm:$0xff] %vm3955, %v3947
  %3965 = vst.msk [vmem:[#allocation4 + $0x48] sm:$0xff] %vm3955, %v3948
  %3966 = vst.msk [vmem:[#allocation4 + $0x50] sm:$0xff] %vm3955, %v3949
  %3967 = vst.msk [vmem:[#allocation4 + $0x58] sm:$0xff] %vm3955, %v3950
  %3968 = vst.msk [vmem:[#allocation4 + $0x60] sm:$0xff] %vm3955, %v3951
  %3969 = vst.msk [vmem:[#allocation4 + $0x68] sm:$0xff] %vm3955, %v3952
  %3970 = vst.msk [vmem:[#allocation4 + $0x70] sm:$0xff] %vm3955, %v3953
  %3971 = vst.msk [vmem:[#allocation4 + $0x78] sm:$0xff] %vm3955, %v3954
  %v3972 = vld [vmem:[#allocation4] ss:$2 sm:$0xff]
  %s3973 = scalar_lea.vmem [#allocation4], 16
  %v3974 = vld [vmem:[%s3973] ss:$2 sm:$0xff]
  %s3975 = scalar_lea.vmem [#allocation4], 32
  %v3976 = vld [vmem:[%s3975] ss:$2 sm:$0xff]
  %s3977 = scalar_lea.vmem [#allocation4], 48
  %v3978 = vld [vmem:[%s3977] ss:$2 sm:$0xff]
  %s3979 = scalar_lea.vmem [#allocation4], 64
  %v3980 = vld [vmem:[%s3979] ss:$2 sm:$0xff]
  %s3981 = scalar_lea.vmem [#allocation4], 80
  %v3982 = vld [vmem:[%s3981] ss:$2 sm:$0xff]
  %s3983 = scalar_lea.vmem [#allocation4], 96
  %v3984 = vld [vmem:[%s3983] ss:$2 sm:$0xff]
  %s3985 = scalar_lea.vmem [#allocation4], 112
  %v3986 = vld [vmem:[%s3985] ss:$2 sm:$0xff]
  %s3987 = scalar_lea.vmem [#allocation4], 1
  %v3988 = vld [vmem:[%s3987] ss:$2 sm:$0xff]
  %s3989 = scalar_lea.vmem [#allocation4], 17
  %v3990 = vld [vmem:[%s3989] ss:$2 sm:$0xff]
  %s3991 = scalar_lea.vmem [#allocation4], 33
  %v3992 = vld [vmem:[%s3991] ss:$2 sm:$0xff]
  %s3993 = scalar_lea.vmem [#allocation4], 49
  %v3994 = vld [vmem:[%s3993] ss:$2 sm:$0xff]
  %s3995 = scalar_lea.vmem [#allocation4], 65
  %v3996 = vld [vmem:[%s3995] ss:$2 sm:$0xff]
  %s3997 = scalar_lea.vmem [#allocation4], 81
  %v3998 = vld [vmem:[%s3997] ss:$2 sm:$0xff]
  %s3999 = scalar_lea.vmem [#allocation4], 97
  %v4000 = vld [vmem:[%s3999] ss:$2 sm:$0xff]
  %s4001 = scalar_lea.vmem [#allocation4], 113
  %v4002 = vld [vmem:[%s4001] ss:$2 sm:$0xff]
  %v4003 = vmax.f32 %v3972, %v3988
  %v4004 = vmax.f32 %v3974, %v3990
  %v4005 = vmax.f32 %v3976, %v3992
  %v4006 = vmax.f32 %v3978, %v3994
  %v4007 = vmax.f32 %v3980, %v3996
  %v4008 = vmax.f32 %v3982, %v3998
  %v4009 = vmax.f32 %v3984, %v4000
  %v4010 = vmax.f32 %v3986, %v4002
  %4011 = vst.msk [vmem:[#allocation5] sm:$0xff] %vm3955, %v4003
  %4012 = vst.msk [vmem:[#allocation5 + $0x8] sm:$0xff] %vm3955, %v4004
  %4013 = vst.msk [vmem:[#allocation5 + $0x10] sm:$0xff] %vm3955, %v4005
  %4014 = vst.msk [vmem:[#allocation5 + $0x18] sm:$0xff] %vm3955, %v4006
  %4015 = vst.msk [vmem:[#allocation5 + $0x20] sm:$0xff] %vm3955, %v4007
  %4016 = vst.msk [vmem:[#allocation5 + $0x28] sm:$0xff] %vm3955, %v4008
  %4017 = vst.msk [vmem:[#allocation5 + $0x30] sm:$0xff] %vm3955, %v4009
  %4018 = vst.msk [vmem:[#allocation5 + $0x38] sm:$0xff] %vm3955, %v4010
  %4019 = vst.msk [vmem:[#allocation5 + $0x40] sm:$0xff] %vm3955, 0.0
  %v4020 = vld [vmem:[#allocation5] ss:$8 sm:$0xf]
  %v4021 = vld [vmem:[#allocation5] ss:$8 sm:$0xf0]
  %v4022 = vor.u32 %v4020, %v4021
  %v4023 = vld [vmem:[%s5] sm:$0xf]
  %v4024 = vld [vmem:[%s5 + $0x4] sm:$0xf]
  %v4025 = vld [vmem:[%s5 + $0x8] sm:$0xf]
  %v4026 = vld [vmem:[%s5 + $0xc] sm:$0xf]
  %v4027 = vld [vmem:[%s5 + $0x10] sm:$0xf]
  %v4028 = vld [vmem:[%s5 + $0x14] sm:$0xf]
  %v4029 = vld [vmem:[%s5 + $0x18] sm:$0xf]
  %v4030 = vld [vmem:[%s5 + $0x1c] sm:$0xf]
  %v4031 = vld [vmem:[%s5 + $0x20] sm:$0xf]
  %v4032 = vld [vmem:[%s5 + $0x24] sm:$0xf]
  %v4033 = vpack.c.bf16 %v4022, %v4022
  %s4034 = scalar_lea.vmem [#allocation5], 1
  %v4035 = vld [vmem:[%s4034] ss:$8 sm:$0xf]
  %v4036 = vld [vmem:[%s4034] ss:$8 sm:$0xf0]
  %v4037 = vor.u32 %v4035, %v4036
  %v4038 = vld [vmem:[%s5 + $0x28] sm:$0xf]
  %v4039 = vld [vmem:[%s5 + $0x2c] sm:$0xf]
  %v4040 = vld [vmem:[%s5 + $0x30] sm:$0xf]
  %v4041 = vld [vmem:[%s5 + $0x34] sm:$0xf]
  %v4042 = vld [vmem:[%s5 + $0x38] sm:$0xf]
  %v4043 = vld [vmem:[%s5 + $0x3c] sm:$0xf]
  %v4044 = vld [vmem:[%s5 + $0x40] sm:$0xf]
  %v4045 = vld [vmem:[%s5 + $0x44] sm:$0xf]
  %v4046 = vld [vmem:[%s5 + $0x48] sm:$0xf]
  %v4047 = vld [vmem:[%s5 + $0x4c] sm:$0xf]
  %v4048 = vpack.c.bf16 %v4037, %v4037
  %v4059 = vunpack.c.l.b16 %v4038
  %v4060 = vunpack.c.l.b16 %v4039
  %v4061 = vunpack.c.l.b16 %v4040
  %v4062 = vunpack.c.l.b16 %v4041
  %v4063 = vunpack.c.l.b16 %v4042
  %v4064 = vunpack.c.l.b16 %v4043
  %v4065 = vunpack.c.l.b16 %v4044
  %v4066 = vunpack.c.l.b16 %v4045
  %v4067 = vunpack.c.l.b16 %v4046
  %v4068 = vunpack.c.l.b16 %v4047
  %v4069 = vpack.c.b16 %v4060, %v4059
  %v4070 = vpack.c.b16 %v4062, %v4061
  %v4071 = vpack.c.b16 %v4064, %v4063
  %v4072 = vpack.c.b16 %v4066, %v4065
  %v4073 = vpack.c.b16 %v4068, %v4067
  %v4080 = vsel %vm3955, %v4048, 0
  %4082 = vmatpush.bf16.msra.mxu0 0
  %4083 = vmatpush.bf16.msra.mxu0 0
  %4084 = vmatpush.bf16.msra.mxu0 0
  %4085 = vmatpush.bf16.msra.mxu0 %v4073
  %4086 = vmatpush.bf16.msra.mxu0 %v4072
  %4087 = vmatpush.bf16.msra.mxu0 %v4071
  %4088 = vmatpush.bf16.msra.mxu0 %v4070
  %4089 = vmatpush.bf16.msra.mxu0 %v4069
  %4090 = vmatmul.bf16.gmra.mxu0 %v4080
  %v4091 = vpop.f32.mrf.mxu0
  %v4092 = vadd.f32 0.0, %v4091
  %v4093 = vpop.f32.mrf.mxu0
  %4094 = vdwg.mxu0
  %v4105 = vunpack.c.l.b16 %v4023
  %v4106 = vunpack.c.l.b16 %v4024
  %v4107 = vunpack.c.l.b16 %v4025
  %v4108 = vunpack.c.l.b16 %v4026
  %v4109 = vunpack.c.l.b16 %v4027
  %v4110 = vunpack.c.l.b16 %v4028
  %v4111 = vunpack.c.l.b16 %v4029
  %v4112 = vunpack.c.l.b16 %v4030
  %v4113 = vunpack.c.l.b16 %v4031
  %v4114 = vunpack.c.l.b16 %v4032
  %v4115 = vpack.c.b16 %v4106, %v4105
  %v4116 = vpack.c.b16 %v4108, %v4107
  %v4117 = vpack.c.b16 %v4110, %v4109
  %v4118 = vpack.c.b16 %v4112, %v4111
  %v4119 = vpack.c.b16 %v4114, %v4113
  %v4126 = vsel %vm3955, %v4033, 0
  %4128 = vmatpush.bf16.msra.mxu0 0
  %4129 = vmatpush.bf16.msra.mxu0 0
  %4130 = vmatpush.bf16.msra.mxu0 0
  %4131 = vmatpush.bf16.msra.mxu0 %v4119
  %4132 = vmatpush.bf16.msra.mxu0 %v4118
  %4133 = vmatpush.bf16.msra.mxu0 %v4117
  %4134 = vmatpush.bf16.msra.mxu0 %v4116
  %4135 = vmatpush.bf16.msra.mxu0 %v4115
  %4136 = vmatmul.bf16.gmra.mxu0 %v4126
  %v4137 = vpop.f32.mrf.mxu0
  %v4138 = vadd.f32 %v4092, %v4137
  %v4139 = vpop.f32.mrf.mxu0
  %4140 = vdwg.mxu0
  %s4141 = scalar_lea.vmem [#allocation5], 2
  %v4142 = vld [vmem:[%s4141] ss:$8 sm:$0xf]
  %v4143 = vld [vmem:[%s4141] ss:$8 sm:$0xf0]
  %v4144 = vor.u32 %v4142, %v4143
  %v4145 = vld [vmem:[%s5 + $0x50] sm:$0xf]
  %v4146 = vld [vmem:[%s5 + $0x54] sm:$0xf]
  %v4147 = vld [vmem:[%s5 + $0x58] sm:$0xf]
  %v4148 = vld [vmem:[%s5 + $0x5c] sm:$0xf]
  %v4149 = vld [vmem:[%s5 + $0x60] sm:$0xf]
  %v4150 = vld [vmem:[%s5 + $0x64] sm:$0xf]
  %v4151 = vld [vmem:[%s5 + $0x68] sm:$0xf]
  %v4152 = vld [vmem:[%s5 + $0x6c] sm:$0xf]
  %v4153 = vld [vmem:[%s5 + $0x70] sm:$0xf]
  %v4154 = vld [vmem:[%s5 + $0x74] sm:$0xf]
  %v4155 = vpack.c.bf16 %v4144, %v4144
  %v4166 = vunpack.c.l.b16 %v4145
  %v4167 = vunpack.c.l.b16 %v4146
  %v4168 = vunpack.c.l.b16 %v4147
  %v4169 = vunpack.c.l.b16 %v4148
  %v4170 = vunpack.c.l.b16 %v4149
  %v4171 = vunpack.c.l.b16 %v4150
  %v4172 = vunpack.c.l.b16 %v4151
  %v4173 = vunpack.c.l.b16 %v4152
  %v4174 = vunpack.c.l.b16 %v4153
  %v4175 = vunpack.c.l.b16 %v4154
  %v4176 = vpack.c.b16 %v4167, %v4166
  %v4177 = vpack.c.b16 %v4169, %v4168
  %v4178 = vpack.c.b16 %v4171, %v4170
  %v4179 = vpack.c.b16 %v4173, %v4172
  %v4180 = vpack.c.b16 %v4175, %v4174
  %v4187 = vsel %vm3955, %v4155, 0
  %4189 = vmatpush.bf16.msra.mxu0 0
  %4190 = vmatpush.bf16.msra.mxu0 0
  %4191 = vmatpush.bf16.msra.mxu0 0
  %4192 = vmatpush.bf16.msra.mxu0 %v4180
  %4193 = vmatpush.bf16.msra.mxu0 %v4179
  %4194 = vmatpush.bf16.msra.mxu0 %v4178
  %4195 = vmatpush.bf16.msra.mxu0 %v4177
  %4196 = vmatpush.bf16.msra.mxu0 %v4176
  %4197 = vmatmul.bf16.gmra.mxu0 %v4187
  %v4198 = vpop.f32.mrf.mxu0
  %v4199 = vadd.f32 0.0, %v4198
  %v4200 = vpop.f32.mrf.mxu0
  %4201 = vdwg.mxu0
  %v4202 = vadd.f32 %v4138, %v4199
  %s4203 = scalar_lea.vmem [#allocation5], 3
  %v4204 = vld [vmem:[%s4203] ss:$8 sm:$0xf]
  %v4205 = vld [vmem:[%s4203] ss:$8 sm:$0xf0]
  %v4206 = vor.u32 %v4204, %v4205
  %v4207 = vld [vmem:[%s5 + $0x78] sm:$0xf]
  %v4208 = vld [vmem:[%s5 + $0x7c] sm:$0xf]
  %v4209 = vld [vmem:[%s5 + $0x80] sm:$0xf]
  %v4210 = vld [vmem:[%s5 + $0x84] sm:$0xf]
  %v4211 = vld [vmem:[%s5 + $0x88] sm:$0xf]
  %v4212 = vld [vmem:[%s5 + $0x8c] sm:$0xf]
  %v4213 = vld [vmem:[%s5 + $0x90] sm:$0xf]
  %v4214 = vld [vmem:[%s5 + $0x94] sm:$0xf]
  %v4215 = vld [vmem:[%s5 + $0x98] sm:$0xf]
  %v4216 = vld [vmem:[%s5 + $0x9c] sm:$0xf]
  %v4217 = vpack.c.bf16 %v4206, %v4206
  %v4228 = vunpack.c.l.b16 %v4207
  %v4229 = vunpack.c.l.b16 %v4208
  %v4230 = vunpack.c.l.b16 %v4209
  %v4231 = vunpack.c.l.b16 %v4210
  %v4232 = vunpack.c.l.b16 %v4211
  %v4233 = vunpack.c.l.b16 %v4212
  %v4234 = vunpack.c.l.b16 %v4213
  %v4235 = vunpack.c.l.b16 %v4214
  %v4236 = vunpack.c.l.b16 %v4215
  %v4237 = vunpack.c.l.b16 %v4216
  %v4238 = vpack.c.b16 %v4229, %v4228
  %v4239 = vpack.c.b16 %v4231, %v4230
  %v4240 = vpack.c.b16 %v4233, %v4232
  %v4241 = vpack.c.b16 %v4235, %v4234
  %v4242 = vpack.c.b16 %v4237, %v4236
  %v4249 = vsel %vm3955, %v4217, 0
  %4251 = vmatpush.bf16.msra.mxu0 0
  %4252 = vmatpush.bf16.msra.mxu0 0
  %4253 = vmatpush.bf16.msra.mxu0 0
  %4254 = vmatpush.bf16.msra.mxu0 %v4242
  %4255 = vmatpush.bf16.msra.mxu0 %v4241
  %4256 = vmatpush.bf16.msra.mxu0 %v4240
  %4257 = vmatpush.bf16.msra.mxu0 %v4239
  %4258 = vmatpush.bf16.msra.mxu0 %v4238
  %4259 = vmatmul.bf16.gmra.mxu0 %v4249
  %v4260 = vpop.f32.mrf.mxu0
  %v4261 = vadd.f32 0.0, %v4260
  %v4262 = vpop.f32.mrf.mxu0
  %4263 = vdwg.mxu0
  %v4264 = vadd.f32 %v4202, %v4261
  %s4265 = scalar_lea.vmem [#allocation5], 4
  %v4266 = vld [vmem:[%s4265] ss:$8 sm:$0xf]
  %v4267 = vld [vmem:[%s4265] ss:$8 sm:$0xf0]
  %v4268 = vor.u32 %v4266, %v4267
  %v4269 = vld [vmem:[%s5 + $0xa0] sm:$0xf]
  %v4270 = vld [vmem:[%s5 + $0xa4] sm:$0xf]
  %v4271 = vld [vmem:[%s5 + $0xa8] sm:$0xf]
  %v4272 = vld [vmem:[%s5 + $0xac] sm:$0xf]
  %v4273 = vld [vmem:[%s5 + $0xb0] sm:$0xf]
  %v4274 = vld [vmem:[%s5 + $0xb4] sm:$0xf]
  %v4275 = vld [vmem:[%s5 + $0xb8] sm:$0xf]
  %v4276 = vld [vmem:[%s5 + $0xbc] sm:$0xf]
  %v4277 = vld [vmem:[%s5 + $0xc0] sm:$0xf]
  %v4278 = vld [vmem:[%s5 + $0xc4] sm:$0xf]
  %v4279 = vpack.c.bf16 %v4268, %v4268
  %v4290 = vunpack.c.l.b16 %v4269
  %v4291 = vunpack.c.l.b16 %v4270
  %v4292 = vunpack.c.l.b16 %v4271
  %v4293 = vunpack.c.l.b16 %v4272
  %v4294 = vunpack.c.l.b16 %v4273
  %v4295 = vunpack.c.l.b16 %v4274
  %v4296 = vunpack.c.l.b16 %v4275
  %v4297 = vunpack.c.l.b16 %v4276
  %v4298 = vunpack.c.l.b16 %v4277
  %v4299 = vunpack.c.l.b16 %v4278
  %v4300 = vpack.c.b16 %v4291, %v4290
  %v4301 = vpack.c.b16 %v4293, %v4292
  %v4302 = vpack.c.b16 %v4295, %v4294
  %v4303 = vpack.c.b16 %v4297, %v4296
  %v4304 = vpack.c.b16 %v4299, %v4298
  %v4311 = vsel %vm3955, %v4279, 0
  %4313 = vmatpush.bf16.msra.mxu0 0
  %4314 = vmatpush.bf16.msra.mxu0 0
  %4315 = vmatpush.bf16.msra.mxu0 0
  %4316 = vmatpush.bf16.msra.mxu0 %v4304
  %4317 = vmatpush.bf16.msra.mxu0 %v4303
  %4318 = vmatpush.bf16.msra.mxu0 %v4302
  %4319 = vmatpush.bf16.msra.mxu0 %v4301
  %4320 = vmatpush.bf16.msra.mxu0 %v4300
  %4321 = vmatmul.bf16.gmra.mxu0 %v4311
  %v4322 = vpop.f32.mrf.mxu0
  %v4323 = vadd.f32 0.0, %v4322
  %v4324 = vpop.f32.mrf.mxu0
  %4325 = vdwg.mxu0
  %v4326 = vadd.f32 %v4264, %v4323
  %v4327 = vld [vmem:[%s6] sm:$0x1]
  %v4329 = vperm.slane %v4327, 0
  %v4331 = vadd.f32 %v4326, %v4329
  %v4332 = vmax.f32 %v4331, 0.0
  %v4333 = vpack.c.bf16 %v4332, %v4332
  %v4334 = vld [vmem:[%s7] sm:$0xf]
  %v4335 = vld [vmem:[%s7 + $0x4] sm:$0xf]
  %v4336 = vld [vmem:[%s7 + $0x8] sm:$0xf]
  %v4337 = vld [vmem:[%s7 + $0xc] sm:$0xf]
  %v4338 = vld [vmem:[%s8] sm:$0x1]
  %v4340 = vperm.slane %v4338, 0
  %v4346 = vunpack.c.l.b16 %v4334
  %v4347 = vunpack.c.l.b16 %v4335
  %v4348 = vunpack.c.l.b16 %v4336
  %v4349 = vunpack.c.l.b16 %v4337
  %v4350 = vpack.c.b16 %v4347, %v4346
  %v4351 = vpack.c.b16 %v4349, %v4348
  %vm4354 = vcmask 261120
  %v4356 = vsel %vm4354, %v4333, 0
  %4358 = vmatpush.bf16.msra.mxu0 0
  %4359 = vmatpush.bf16.msra.mxu0 0
  %4360 = vmatpush.bf16.msra.mxu0 0
  %4361 = vmatpush.bf16.msra.mxu0 0
  %4362 = vmatpush.bf16.msra.mxu0 0
  %4363 = vmatpush.bf16.msra.mxu0 0
  %4364 = vmatpush.bf16.msra.mxu0 %v4351
  %4365 = vmatpush.bf16.msra.mxu0 %v4350
  %4366 = vmatmul.bf16.gmra.mxu0 %v4356
  %v4367 = vpop.f32.mrf.mxu0
  %v4368 = vadd.f32 %v4340, %v4367
  %v4369 = vpop.f32.mrf.mxu0
  %4370 = vdwg.mxu0
  %vm4371 = vcmask 80896
  %v4372 = vsel %vm4371, %v4368, -inf
  %4373 = vmax.xlane.f32.xlu0 %v4372
  %v4374 = vpop.xlane.xlu0 %4373
  %v4375 = vsub.f32 %v4368, %v4374
  %v4376 = vmul.f32 %v4375, 1.442695
  %v4377 = vpow.pop %v4376
  %v4378 = vsel %vm4371, %v4377, 0.0
  %4379 = vadd.xlane.f32.xlu0 %v4378
  %v4380 = vpop.xlane.xlu0 %4379
  %v4381 = vrcp.pop %v4380
  %v4382 = vmul.f32 %v4380, %v4381
  %v4383 = vsub.f32 1.0, %v4382
  %v4384 = vmul.f32 %v4381, %v4383
  %v4385 = vadd.f32 %v4381, %v4384
  %vm4386 = vweird.f32 %v4380
  %vm4387 = vweird.f32 %v4381
  %vm4388 = vmor %vm4386, %vm4387
  %v4389 = vsel %vm4388, %v4381, %v4385
  %v4390 = vand.u32 2147483647, %v4380
  %vm4391 = vcmp.eq.f32.partialorder %v4390, 8.507059e+37
  %v4392 = vand.u32 %v4380, 2147483648
  %v4393 = vor.u32 1.1754944e-38, %v4392
  %v4394 = vsel %vm4391, %v4393, %v4389
  %v4395 = vmul.f32 %v4377, %v4394
  %4396 = vst.msk [vmem:[%s9] sm:$0xff] %vm4371, %v4395
  // Predicated region
  $region38: #{_lambda_.1} parent=0 // pred_check
    _
  $region39: #{_lambda_.1} parent=0 // pred_check_branch
    %4398 = sbr.rel (0) target = $region41
  $region40: #{_lambda_.1} parent=0 // pred_region
    _
  $region41: #{_lambda_.1} parent=0 // pred_fallthru
    _
  // Predicated region
  $region42: #{_lambda_.1} parent=0 // pred_check
    _
  $region43: #{_lambda_.1} parent=0 // pred_check_branch
    %4400 = sbr.rel (0) target = $region45
  $region44: #{_lambda_.1} parent=0 // pred_region
    _
  $region45: #{_lambda_.1} parent=0 // pred_fallthru
    _

</llo_original>
